<compile_context>
chip_gen: v7x
topology: tpu7x:2x2x1
jax: 0.10.0
libtpu: 0.0.40
codegen_flags: <defaults>
</compile_context>

<pallas_src>
import functools

import jax
import jax.numpy as jnp
from jax.experimental import pallas as pl
from jax.experimental.pallas import tpu as pltpu

EPS = 1e-5                      # PyTorch BatchNorm2d default
_VMEM_LIMIT = 32 * 1024 * 1024  # explicit scoped-VMEM budget (safe on v5e/v6e/v7x)


# ----------------------------------------------------------------------------
# Kernel 1: fused [optional BN+ReLU of the previous layer on load]
#           + 3x3 conv (padding=1, halo built in VMEM) + bias
#           + per-channel sum / sum-of-squares partial stats.
# One batch element per grid step; batch axis is "parallel".
# ----------------------------------------------------------------------------
def _conv_bn_stats_kernel(x_ref, scale_ref, shift_ref, w_ref, b_ref,
                          y_ref, stats_ref, xp_ref, *, apply_input_bn):
    # x_ref    : (1, H, W, Cin)     raw input (or raw previous conv output)
    # scale_ref: (1, Cin)           previous layer's BN scale   (unused if !apply_input_bn)
    # shift_ref: (1, Cin)           previous layer's BN shift   (unused if !apply_input_bn)
    # w_ref    : (9*Cin, Cout)      3x3 taps packed row-major by (kh, kw, cin)
    # b_ref    : (1, Cout)
    # y_ref    : (1, H, W, Cout)    raw conv output
    # stats_ref: (1, 2, Cout)       per-image [sum, sum_sq] partials
    # xp_ref   : VMEM scratch (H+2, W+2, Cin), zero halo
    H, W, Cout = y_ref.shape[1], y_ref.shape[2], y_ref.shape[3]
    Cin = x_ref.shape[3]

    x = x_ref[...][0].astype(jnp.float32)                      # (H, W, Cin)
    if apply_input_bn:
        # previous layer's BatchNorm (precomputed affine) + ReLU fused into
        # this conv's input load -> removes one full HBM round trip.
        x = jnp.maximum(x * scale_ref[...] + shift_ref[...], 0.0)

    # 1-pixel zero halo built in VMEM (replaces wrapper-side jnp.pad).
    xp_ref[...] = jnp.zeros_like(xp_ref)
    xp_ref[1:H + 1, 1:W + 1, :] = x

    w_all = w_ref[...]                                          # (9*Cin, Cout)
    acc = jnp.zeros((H, W, Cout), jnp.float32)
    for kh in range(3):
        for kw in range(3):
            t = kh * 3 + kw
            patch = xp_ref[kh:kh + H, kw:kw + W, :]             # (H, W, Cin)
            # TODO(synk): cast patch/weights to bf16 (f32 accumulate) once the
            # verification tolerance is relaxed; keep f32 for the 1e-4 check.
            acc = acc + jax.lax.dot_general(
                patch, w_all[t * Cin:(t + 1) * Cin, :],
                dimension_numbers=(((2,), (0,)), ((), ())),
                preferred_element_type=jnp.float32)
    acc = acc + b_ref[...]                                      # bias broadcast

    y_ref[...] = jnp.expand_dims(acc, 0).astype(y_ref.dtype)

    # Per-image partial BatchNorm stats (reduced over the batch in JAX so the
    # batch grid axis stays "parallel" -> both TensorCores on v7x).
    ssum = jnp.sum(acc, axis=(0, 1), keepdims=True)             # (1, 1, Cout)
    ssq = jnp.sum(acc * acc, axis=(0, 1), keepdims=True)        # (1, 1, Cout)
    stats_ref[...] = jnp.concatenate([ssum, ssq], axis=1)       # (1, 2, Cout)


def conv_bn_fused(x_nhwc, w2d, bias, scale=None, shift=None):
    """3x3 conv (+ optional fused input BN+ReLU) + bias + partial BN stats."""
    N, H, W, Cin = x_nhwc.shape
    Cout = w2d.shape[1]
    apply_input_bn = scale is not None
    if not apply_input_bn:
        scale = jnp.ones((1, Cin), jnp.float32)
        shift = jnp.zeros((1, Cin), jnp.float32)
    else:
        scale = scale.reshape(1, Cin).astype(jnp.float32)
        shift = shift.reshape(1, Cin).astype(jnp.float32)

    kernel = functools.partial(_conv_bn_stats_kernel,
                               apply_input_bn=apply_input_bn)
    # TODO(synk): for very large H*W (full-res UNet on v7x's 64 MiB VMEM) add
    # halo-aware row tiling of the image instead of one whole image per step.
    y, stats = pl.pallas_call(
        kernel,
        out_shape=(
            jax.ShapeDtypeStruct((N, H, W, Cout), jnp.float32),
            jax.ShapeDtypeStruct((N, 2, Cout), jnp.float32),
        ),
        grid=(N,),
        in_specs=[
            pl.BlockSpec((1, H, W, Cin), lambda n: (n, 0, 0, 0)),
            pl.BlockSpec((1, Cin), lambda n: (0, 0)),
            pl.BlockSpec((1, Cin), lambda n: (0, 0)),
            pl.BlockSpec((9 * Cin, Cout), lambda n: (0, 0)),
            pl.BlockSpec((1, Cout), lambda n: (0, 0)),
        ],
        out_specs=(
            pl.BlockSpec((1, H, W, Cout), lambda n: (n, 0, 0, 0)),
            pl.BlockSpec((1, 2, Cout), lambda n: (n, 0, 0)),
        ),
        scratch_shapes=[pltpu.VMEM((H + 2, W + 2, Cin), jnp.float32)],
        compiler_params=pltpu.CompilerParams(
            dimension_semantics=("parallel",),
            vmem_limit_bytes=_VMEM_LIMIT),
    )(x_nhwc, scale, shift, w2d, bias.reshape(1, Cout))
    return y, stats


# ----------------------------------------------------------------------------
# BN affine coefficients from accumulated stats (tiny, done in plain JAX).
# ----------------------------------------------------------------------------
def _bn_affine(stats_per_n, count, gamma, beta):
    s = jnp.sum(stats_per_n, axis=0)                            # (2, C)
    mean = s[0] / count
    # clamp guards f32 cancellation in E[x^2] - mean^2
    var = jnp.maximum(s[1] / count - mean * mean, 0.0)
    scale = gamma * jax.lax.rsqrt(var + EPS)
    shift = beta - mean * scale
    return scale, shift


# ----------------------------------------------------------------------------
# Kernel 2: final BN affine + ReLU on a lane-dense (rows, W*C) 2-D view.
# ----------------------------------------------------------------------------
def _bn_relu_kernel(x_ref, scale_ref, shift_ref, o_ref):
    y = x_ref[...] * scale_ref[...] + shift_ref[...]
    o_ref[...] = jnp.maximum(y, 0.0).astype(o_ref.dtype)


def _pick_row_tile(n_rows, row_bytes, budget=2 * 1024 * 1024):
    if n_rows * row_bytes <= budget:
        return n_rows
    cap = max(8, budget // row_bytes)
    cap -= cap % 8
    for th in range(cap, 0, -8):
        if n_rows % th == 0:
            return th
    return n_rows


def bn_relu_lane_dense(y_nhwc, scale, shift):
    N, H, W, C = y_nhwc.shape
    L = W * C                                   # lane-dense last dim
    x2 = y_nhwc.reshape(N, H, L)
    scale_t = jnp.tile(scale.astype(jnp.float32), W).reshape(1, L)
    shift_t = jnp.tile(shift.astype(jnp.float32), W).reshape(1, L)
    TH = _pick_row_tile(H, L * 4)
    out = pl.pallas_call(
        _bn_relu_kernel,
        out_shape=jax.ShapeDtypeStruct((N, H, L), jnp.float32),
        grid=(N, H // TH),
        in_specs=[
            pl.BlockSpec((1, TH, L), lambda n, r: (n, r, 0)),
            pl.BlockSpec((1, L), lambda n, r: (0, 0)),
            pl.BlockSpec((1, L), lambda n, r: (0, 0)),
        ],
        out_specs=pl.BlockSpec((1, TH, L), lambda n, r: (n, r, 0)),
        compiler_params=pltpu.CompilerParams(
            dimension_semantics=("parallel", "parallel"),
            vmem_limit_bytes=_VMEM_LIMIT),
    )(x2, scale_t, shift_t)
    return out.reshape(N, H, W, C)


# ----------------------------------------------------------------------------
# Full UNetConvBlock forward: (conv -> BN(batch stats) -> ReLU) x 2.
# NCHW in / NCHW out to match the PyTorch module.
# ----------------------------------------------------------------------------
def unet_conv_block(x_nchw, params):
    x = jnp.transpose(x_nchw, (0, 2, 3, 1)).astype(jnp.float32)   # NCHW -> NHWC
    N, H, W, _ = x.shape
    count = N * H * W

    # layer 1: conv1 + bias + stats (one HBM pass)
    y1, st1 = conv_bn_fused(x, params["w1"], params["b1"])
    scale1, shift1 = _bn_affine(st1, count, params["gamma1"], params["beta1"])

    # layer 2: BN1+ReLU fused into the load, then conv2 + bias + stats
    y2, st2 = conv_bn_fused(y1, params["w2"], params["b2"],
                            scale=scale1, shift=shift1)
    scale2, shift2 = _bn_affine(st2, count, params["gamma2"], params["beta2"])

    # final BN2 + ReLU, lane-dense pass
    out = bn_relu_lane_dense(y2, scale2, shift2)
    return jnp.transpose(out, (0, 3, 1, 2))                        # NHWC -> NCHW


# ----------------------------------------------------------------------------
# Pure-JAX reference (PyTorch semantics) for verification.
# ----------------------------------------------------------------------------
def _reference(x, w1, b1, g1, be1, w2, b2, g2, be2):
    def conv(x, w, b):
        y = jax.lax.conv_general_dilated(
            x, w, window_strides=(1, 1), padding=((1, 1), (1, 1)),
            dimension_numbers=("NCHW", "OIHW", "NCHW"))
        return y + b[None, :, None, None]

    def bn_relu_ref(x, gamma, beta):
        mean = jnp.mean(x, axis=(0, 2, 3), keepdims=True)
        var = jnp.var(x, axis=(0, 2, 3), keepdims=True)
        y = (x - mean) * jax.lax.rsqrt(var + EPS)
        y = y * gamma[None, :, None, None] + beta[None, :, None, None]
        return jnp.maximum(y, 0.0)

    x = bn_relu_ref(conv(x, w1, b1), g1, be1)
    x = bn_relu_ref(conv(x, w2, b2), g2, be2)
    return x


if __name__ == "__main__":
    key = jax.random.PRNGKey(0)
    N, Cin, Cout, H, W = 2, 4, 8, 16, 16
    ks = jax.random.split(key, 9)

    x = jax.random.normal(ks[0], (N, Cin, H, W), jnp.float32)
    # PyTorch-layout conv weights (Cout, Cin, 3, 3), deterministic synthetic init.
    w1_t = 0.1 * jax.random.normal(ks[1], (Cout, Cin, 3, 3), jnp.float32)
    b1 = 0.05 * jax.random.normal(ks[2], (Cout,), jnp.float32)
    w2_t = 0.1 * jax.random.normal(ks[3], (Cout, Cout, 3, 3), jnp.float32)
    b2 = 0.05 * jax.random.normal(ks[4], (Cout,), jnp.float32)
    gamma1 = 1.0 + 0.1 * jax.random.normal(ks[5], (Cout,), jnp.float32)
    beta1 = 0.1 * jax.random.normal(ks[6], (Cout,), jnp.float32)
    gamma2 = 1.0 + 0.1 * jax.random.normal(ks[7], (Cout,), jnp.float32)
    beta2 = 0.1 * jax.random.normal(ks[8], (Cout,), jnp.float32)

    # (Cout, Cin, kh, kw) -> (kh, kw, Cin, Cout) -> (9*Cin, Cout) 2-D slab.
    params = {
        "w1": jnp.transpose(w1_t, (2, 3, 1, 0)).reshape(9 * Cin, Cout), "b1": b1,
        "gamma1": gamma1, "beta1": beta1,
        "w2": jnp.transpose(w2_t, (2, 3, 1, 0)).reshape(9 * Cout, Cout), "b2": b2,
        "gamma2": gamma2, "beta2": beta2,
    }

    out = jax.block_until_ready(unet_conv_block(x, params))
    ref = jax.block_until_ready(
        _reference(x, w1_t, b1, gamma1, beta1, w2_t, b2, gamma2, beta2))

    assert out.shape == (N, Cout, H, W), out.shape
    assert jnp.allclose(out, ref, atol=1e-4, rtol=1e-4), float(jnp.max(jnp.abs(out - ref)))
    print("KERNEL_OK")
</pallas_src>

<mosaic_0001>
module attributes {stable_mosaic.version = 11 : i64} {
  func.func @_conv_bn_stats_kernel(%arg0: i32, %arg1: memref<1x16x16x4xf32, #tpu.memory_space<vmem>>, %arg2: memref<1x4xf32, #tpu.memory_space<vmem>>, %arg3: memref<1x4xf32, #tpu.memory_space<vmem>>, %arg4: memref<36x8xf32, #tpu.memory_space<vmem>>, %arg5: memref<1x8xf32, #tpu.memory_space<vmem>>, %arg6: memref<1x16x16x8xf32, #tpu.memory_space<vmem>>, %arg7: memref<1x2x8xf32, #tpu.memory_space<vmem>>, %arg8: memref<18x18x4xf32, #tpu.memory_space<vmem>>) attributes {dimension_semantics = [#tpu.dimension_semantics<parallel>], iteration_bounds = array<i64: 2>, scalar_prefetch = 0 : i64, scratch_operands = 1 : i64, tpu.core_type = #tpu.core_type<tc>, window_params = [{transform_indices = @transform_0, window_bounds = array<i64: 1, 16, 16, 4>}, {pipeline_mode = #tpu.pipeline_mode<synchronous>, transform_indices = @transform_1, window_bounds = array<i64: 1, 4>}, {pipeline_mode = #tpu.pipeline_mode<synchronous>, transform_indices = @transform_2, window_bounds = array<i64: 1, 4>}, {pipeline_mode = #tpu.pipeline_mode<synchronous>, transform_indices = @transform_3, window_bounds = array<i64: 36, 8>}, {pipeline_mode = #tpu.pipeline_mode<synchronous>, transform_indices = @transform_4, window_bounds = array<i64: 1, 8>}, {transform_indices = @transform_5, window_bounds = array<i64: 1, 16, 16, 8>}, {transform_indices = @transform_6, window_bounds = array<i64: 1, 2, 8>}]} {
    %c0 = arith.constant 0 : index
    %c0_0 = arith.constant 0 : index
    %c0_1 = arith.constant 0 : index
    %c0_2 = arith.constant 0 : index
    %0 = vector.load %arg1[%c0, %c0_0, %c0_1, %c0_2] : memref<1x16x16x4xf32, #tpu.memory_space<vmem>>, vector<1x16x16x4xf32>
    %1 = vector.shape_cast %0 : vector<1x16x16x4xf32> to vector<16x16x4xf32>
    %cst = arith.constant 0.000000e+00 : f32
    %2 = vector.broadcast %cst : f32 to vector<18x18x4xf32>
    %c0_3 = arith.constant 0 : index
    %c0_4 = arith.constant 0 : index
    %c0_5 = arith.constant 0 : index
    %3 = vector.load %arg8[%c0_3, %c0_4, %c0_5] : memref<18x18x4xf32, #tpu.memory_space<vmem>>, vector<18x18x4xf32>
    tpu.vector_store %arg8[%c0_3, %c0_4, %c0_5], %2 {strides = array<i32>} : memref<18x18x4xf32, #tpu.memory_space<vmem>>, vector<18x18x4xf32>,
    %c1 = arith.constant 1 : index
    %c1_6 = arith.constant 1 : index
    %c0_7 = arith.constant 0 : index
    %4 = vector.load %arg8[%c1, %c1_6, %c0_7] : memref<18x18x4xf32, #tpu.memory_space<vmem>>, vector<16x16x4xf32>
    tpu.vector_store %arg8[%c1, %c1_6, %c0_7], %1 {strides = array<i32>} : memref<18x18x4xf32, #tpu.memory_space<vmem>>, vector<16x16x4xf32>,
    %c0_8 = arith.constant 0 : index
    %c0_9 = arith.constant 0 : index
    %5 = vector.load %arg4[%c0_8, %c0_9] : memref<36x8xf32, #tpu.memory_space<vmem>>, vector<36x8xf32>
    %cst_10 = arith.constant 0.000000e+00 : f32
    %6 = vector.broadcast %cst_10 : f32 to vector<16x16x8xf32>
    %c0_11 = arith.constant 0 : index
    %c0_12 = arith.constant 0 : index
    %c0_13 = arith.constant 0 : index
    %7 = vector.load %arg8[%c0_11, %c0_12, %c0_13] : memref<18x18x4xf32, #tpu.memory_space<vmem>>, vector<16x16x4xf32>
    %8 = vector.extract_strided_slice %5 {offsets = [0, 0], sizes = [4, 8], strides = [1, 1]} : vector<36x8xf32> to vector<4x8xf32>
    %cst_14 = arith.constant dense<0.000000e+00> : vector<16x16x8xf32>
    %9 = tpu.matmul %7, %8, %cst_14 {dimension_numbers = #tpu.dot_dimension_numbers<[2], [0], [0, 1], [1], [0, 0, 0, 1, 1, 1], [], []>} : vector<16x16x4xf32>, vector<4x8xf32>, vector<16x16x8xf32> -> vector<16x16x8xf32>
    %10 = arith.addf %6, %9 : vector<16x16x8xf32>
    %c0_15 = arith.constant 0 : index
    %c1_16 = arith.constant 1 : index
    %c0_17 = arith.constant 0 : index
    %11 = vector.load %arg8[%c0_15, %c1_16, %c0_17] : memref<18x18x4xf32, #tpu.memory_space<vmem>>, vector<16x16x4xf32>
    %12 = vector.extract_strided_slice %5 {offsets = [4, 0], sizes = [4, 8], strides = [1, 1]} : vector<36x8xf32> to vector<4x8xf32>
    %cst_18 = arith.constant dense<0.000000e+00> : vector<16x16x8xf32>
    %13 = tpu.matmul %11, %12, %cst_18 {dimension_numbers = #tpu.dot_dimension_numbers<[2], [0], [0, 1], [1], [0, 0, 0, 1, 1, 1], [], []>} : vector<16x16x4xf32>, vector<4x8xf32>, vector<16x16x8xf32> -> vector<16x16x8xf32>
    %14 = arith.addf %10, %13 : vector<16x16x8xf32>
    %c0_19 = arith.constant 0 : index
    %c2 = arith.constant 2 : index
    %c0_20 = arith.constant 0 : index
    %15 = vector.load %arg8[%c0_19, %c2, %c0_20] : memref<18x18x4xf32, #tpu.memory_space<vmem>>, vector<16x16x4xf32>
    %16 = vector.extract_strided_slice %5 {offsets = [8, 0], sizes = [4, 8], strides = [1, 1]} : vector<36x8xf32> to vector<4x8xf32>
    %cst_21 = arith.constant dense<0.000000e+00> : vector<16x16x8xf32>
    %17 = tpu.matmul %15, %16, %cst_21 {dimension_numbers = #tpu.dot_dimension_numbers<[2], [0], [0, 1], [1], [0, 0, 0, 1, 1, 1], [], []>} : vector<16x16x4xf32>, vector<4x8xf32>, vector<16x16x8xf32> -> vector<16x16x8xf32>
    %18 = arith.addf %14, %17 : vector<16x16x8xf32>
    %c1_22 = arith.constant 1 : index
    %c0_23 = arith.constant 0 : index
    %c0_24 = arith.constant 0 : index
    %19 = vector.load %arg8[%c1_22, %c0_23, %c0_24] : memref<18x18x4xf32, #tpu.memory_space<vmem>>, vector<16x16x4xf32>
    %20 = vector.extract_strided_slice %5 {offsets = [12, 0], sizes = [4, 8], strides = [1, 1]} : vector<36x8xf32> to vector<4x8xf32>
    %cst_25 = arith.constant dense<0.000000e+00> : vector<16x16x8xf32>
    %21 = tpu.matmul %19, %20, %cst_25 {dimension_numbers = #tpu.dot_dimension_numbers<[2], [0], [0, 1], [1], [0, 0, 0, 1, 1, 1], [], []>} : vector<16x16x4xf32>, vector<4x8xf32>, vector<16x16x8xf32> -> vector<16x16x8xf32>
    %22 = arith.addf %18, %21 : vector<16x16x8xf32>
    %c1_26 = arith.constant 1 : index
    %c1_27 = arith.constant 1 : index
    %c0_28 = arith.constant 0 : index
    %23 = vector.load %arg8[%c1_26, %c1_27, %c0_28] : memref<18x18x4xf32, #tpu.memory_space<vmem>>, vector<16x16x4xf32>
    %24 = vector.extract_strided_slice %5 {offsets = [16, 0], sizes = [4, 8], strides = [1, 1]} : vector<36x8xf32> to vector<4x8xf32>
    %cst_29 = arith.constant dense<0.000000e+00> : vector<16x16x8xf32>
    %25 = tpu.matmul %23, %24, %cst_29 {dimension_numbers = #tpu.dot_dimension_numbers<[2], [0], [0, 1], [1], [0, 0, 0, 1, 1, 1], [], []>} : vector<16x16x4xf32>, vector<4x8xf32>, vector<16x16x8xf32> -> vector<16x16x8xf32>
    %26 = arith.addf %22, %25 : vector<16x16x8xf32>
    %c1_30 = arith.constant 1 : index
    %c2_31 = arith.constant 2 : index
    %c0_32 = arith.constant 0 : index
    %27 = vector.load %arg8[%c1_30, %c2_31, %c0_32] : memref<18x18x4xf32, #tpu.memory_space<vmem>>, vector<16x16x4xf32>
    %28 = vector.extract_strided_slice %5 {offsets = [20, 0], sizes = [4, 8], strides = [1, 1]} : vector<36x8xf32> to vector<4x8xf32>
    %cst_33 = arith.constant dense<0.000000e+00> : vector<16x16x8xf32>
    %29 = tpu.matmul %27, %28, %cst_33 {dimension_numbers = #tpu.dot_dimension_numbers<[2], [0], [0, 1], [1], [0, 0, 0, 1, 1, 1], [], []>} : vector<16x16x4xf32>, vector<4x8xf32>, vector<16x16x8xf32> -> vector<16x16x8xf32>
    %30 = arith.addf %26, %29 : vector<16x16x8xf32>
    %c2_34 = arith.constant 2 : index
    %c0_35 = arith.constant 0 : index
    %c0_36 = arith.constant 0 : index
    %31 = vector.load %arg8[%c2_34, %c0_35, %c0_36] : memref<18x18x4xf32, #tpu.memory_space<vmem>>, vector<16x16x4xf32>
    %32 = vector.extract_strided_slice %5 {offsets = [24, 0], sizes = [4, 8], strides = [1, 1]} : vector<36x8xf32> to vector<4x8xf32>
    %cst_37 = arith.constant dense<0.000000e+00> : vector<16x16x8xf32>
    %33 = tpu.matmul %31, %32, %cst_37 {dimension_numbers = #tpu.dot_dimension_numbers<[2], [0], [0, 1], [1], [0, 0, 0, 1, 1, 1], [], []>} : vector<16x16x4xf32>, vector<4x8xf32>, vector<16x16x8xf32> -> vector<16x16x8xf32>
    %34 = arith.addf %30, %33 : vector<16x16x8xf32>
    %c2_38 = arith.constant 2 : index
    %c1_39 = arith.constant 1 : index
    %c0_40 = arith.constant 0 : index
    %35 = vector.load %arg8[%c2_38, %c1_39, %c0_40] : memref<18x18x4xf32, #tpu.memory_space<vmem>>, vector<16x16x4xf32>
    %36 = vector.extract_strided_slice %5 {offsets = [28, 0], sizes = [4, 8], strides = [1, 1]} : vector<36x8xf32> to vector<4x8xf32>
    %cst_41 = arith.constant dense<0.000000e+00> : vector<16x16x8xf32>
    %37 = tpu.matmul %35, %36, %cst_41 {dimension_numbers = #tpu.dot_dimension_numbers<[2], [0], [0, 1], [1], [0, 0, 0, 1, 1, 1], [], []>} : vector<16x16x4xf32>, vector<4x8xf32>, vector<16x16x8xf32> -> vector<16x16x8xf32>
    %38 = arith.addf %34, %37 : vector<16x16x8xf32>
    %c2_42 = arith.constant 2 : index
    %c2_43 = arith.constant 2 : index
    %c0_44 = arith.constant 0 : index
    %39 = vector.load %arg8[%c2_42, %c2_43, %c0_44] : memref<18x18x4xf32, #tpu.memory_space<vmem>>, vector<16x16x4xf32>
    %40 = vector.extract_strided_slice %5 {offsets = [32, 0], sizes = [4, 8], strides = [1, 1]} : vector<36x8xf32> to vector<4x8xf32>
    %cst_45 = arith.constant dense<0.000000e+00> : vector<16x16x8xf32>
    %41 = tpu.matmul %39, %40, %cst_45 {dimension_numbers = #tpu.dot_dimension_numbers<[2], [0], [0, 1], [1], [0, 0, 0, 1, 1, 1], [], []>} : vector<16x16x4xf32>, vector<4x8xf32>, vector<16x16x8xf32> -> vector<16x16x8xf32>
    %42 = arith.addf %38, %41 : vector<16x16x8xf32>
    %c0_46 = arith.constant 0 : index
    %c0_47 = arith.constant 0 : index
    %43 = vector.load %arg5[%c0_46, %c0_47] : memref<1x8xf32, #tpu.memory_space<vmem>>, vector<1x8xf32>
    %44 = vector.shape_cast %43 : vector<1x8xf32> to vector<1x1x8xf32>
    %45 = vector.broadcast %44 : vector<1x1x8xf32> to vector<16x16x8xf32>
    %46 = arith.addf %42, %45 : vector<16x16x8xf32>
    %47 = vector.shape_cast %46 : vector<16x16x8xf32> to vector<1x16x16x8xf32>
    %c0_48 = arith.constant 0 : index
    %c0_49 = arith.constant 0 : index
    %c0_50 = arith.constant 0 : index
    %c0_51 = arith.constant 0 : index
    %48 = vector.load %arg6[%c0_48, %c0_49, %c0_50, %c0_51] : memref<1x16x16x8xf32, #tpu.memory_space<vmem>>, vector<1x16x16x8xf32>
    tpu.vector_store %arg6[%c0_48, %c0_49, %c0_50, %c0_51], %47 {strides = array<i32>} : memref<1x16x16x8xf32, #tpu.memory_space<vmem>>, vector<1x16x16x8xf32>,
    %cst_52 = arith.constant dense<0.000000e+00> : vector<8xf32>
    %49 = vector.multi_reduction <add>, %46, %cst_52 [0, 1] : vector<16x16x8xf32> to vector<8xf32>
    %50 = vector.shape_cast %49 : vector<8xf32> to vector<1x1x8xf32>
    %51 = arith.mulf %46, %46 : vector<16x16x8xf32>
    %cst_53 = arith.constant dense<0.000000e+00> : vector<8xf32>
    %52 = vector.multi_reduction <add>, %51, %cst_53 [0, 1] : vector<16x16x8xf32> to vector<8xf32>
    %53 = vector.shape_cast %52 : vector<8xf32> to vector<1x1x8xf32>
    %54 = tpu.concatenate %50, %53 in 1 : vector<1x1x8xf32>, vector<1x1x8xf32> -> vector<1x2x8xf32>
    %c0_54 = arith.constant 0 : index
    %c0_55 = arith.constant 0 : index
    %c0_56 = arith.constant 0 : index
    %55 = vector.load %arg7[%c0_54, %c0_55, %c0_56] : memref<1x2x8xf32, #tpu.memory_space<vmem>>, vector<1x2x8xf32>
    tpu.vector_store %arg7[%c0_54, %c0_55, %c0_56], %54 {strides = array<i32>} : memref<1x2x8xf32, #tpu.memory_space<vmem>>, vector<1x2x8xf32>,
    return
  }
  func.func @transform_0(%arg0: i32) -> (i32, i32, i32, i32) {
    %c0_i32 = arith.constant 0 : i32
    %c0_i32_0 = arith.constant 0 : i32
    %c0_i32_1 = arith.constant 0 : i32
    %c0_i32_2 = arith.constant 0 : i32
    return %arg0, %c0_i32, %c0_i32_0, %c0_i32_1 : i32, i32, i32, i32
  }
  func.func @transform_1(%arg0: i32) -> (i32, i32) {
    %c0_i32 = arith.constant 0 : i32
    %c0_i32_0 = arith.constant 0 : i32
    %c0_i32_1 = arith.constant 0 : i32
    return %c0_i32, %c0_i32_0 : i32, i32
  }
  func.func @transform_2(%arg0: i32) -> (i32, i32) {
    %c0_i32 = arith.constant 0 : i32
    %c0_i32_0 = arith.constant 0 : i32
    %c0_i32_1 = arith.constant 0 : i32
    return %c0_i32, %c0_i32_0 : i32, i32
  }
  func.func @transform_3(%arg0: i32) -> (i32, i32) {
    %c0_i32 = arith.constant 0 : i32
    %c0_i32_0 = arith.constant 0 : i32
    %c0_i32_1 = arith.constant 0 : i32
    return %c0_i32, %c0_i32_0 : i32, i32
  }
  func.func @transform_4(%arg0: i32) -> (i32, i32) {
    %c0_i32 = arith.constant 0 : i32
    %c0_i32_0 = arith.constant 0 : i32
    %c0_i32_1 = arith.constant 0 : i32
    return %c0_i32, %c0_i32_0 : i32, i32
  }
  func.func @transform_5(%arg0: i32) -> (i32, i32, i32, i32) {
    %c0_i32 = arith.constant 0 : i32
    %c0_i32_0 = arith.constant 0 : i32
    %c0_i32_1 = arith.constant 0 : i32
    %c0_i32_2 = arith.constant 0 : i32
    return %arg0, %c0_i32, %c0_i32_0, %c0_i32_1 : i32, i32, i32, i32
  }
  func.func @transform_6(%arg0: i32) -> (i32, i32, i32) {
    %c0_i32 = arith.constant 0 : i32
    %c0_i32_0 = arith.constant 0 : i32
    %c0_i32_1 = arith.constant 0 : i32
    return %arg0, %c0_i32, %c0_i32_0 : i32, i32, i32
  }
}

</mosaic_0001>

<llo_original>
// kernel: tpu_custom_call.1
$region0: #{tpu_custom_call.1}
  #allocation0 [shape = 'u32[]', space=smem, size = 0x4, offset = 0x4, fixed_abs, tag = 'smem constant byte address 0x4 - core index']
  #allocation1 [shape = 'u32[144,128]{1,0:T(1,128)}', space=vmem, size = 0x12000, scoped, tag = 'internal scratch']
  #allocation2 [shape = 'f32[18,18,4]{2,1,0:T(8,128)}', space=vmem, size = 0x36000, scoped, tag = 'scratch operand']
  %s0 = inlined_call_operand.vmem [shape: f32[2,16,16,4], index: 0, kind: input, shape index: {}]
  %s1 = inlined_call_operand.vmem [shape: f32[1,4], index: 1, kind: input, shape index: {}]
  %s2 = inlined_call_operand.vmem [shape: f32[1,4], index: 2, kind: input, shape index: {}]
  %s3 = inlined_call_operand.vmem [shape: f32[36,8], index: 3, kind: input, shape index: {}]
  %s4 = inlined_call_operand.vmem [shape: f32[1,8], index: 4, kind: input, shape index: {}]
  %s5 = inlined_call_operand.vmem [shape: f32[2,16,16,8], index: 5, kind: output, shape index: {0}]
  %s6 = inlined_call_operand.hbm [shape: f32[2,2,8], index: 6, kind: output, shape index: {1}]
  %7 = xla_tuple %s5, %s6
  %s8 = sld [smem:[#allocation0]]
  $region61: #{tpu_custom_call.1} parent=0
    _
  %s10 = ssub.s32 1, %s8
  %s11 = scalar_select 0, %s10, %s8
  $region1: #{tpu_custom_call.1} parent=0
    #allocation3 [shape = 'u8[2048]{0}', space=vmem, size = 0x800, scoped, tag = 'output window, operand 1']
    #allocation4 [shape = 's32[2]{0}', space=sflag, size = 0x8, scoped, tag = 'scoped memory for tpu_custom_call.1']
    %12 = vsyncpa [#allocation4], 0
    %s13 = scalar_lea.sflag [#allocation4], 1
    %14 = vsyncpa %s13, 0
    loop: start=0, step=1, limit=4
    $region2: #{tpu_custom_call.1} parent=1 // loop_pre_header
      _
    $region3: #{tpu_custom_call.1} parent=1 // loop_header
      %s16 = sphi 0, %s20
      %p17 = scmp.ge.s32.totalorder %s16, 4
      %s26 = sphi 0, %s28
      %s29 = sphi 0, %s26
      %s30 = sphi 0, %s29
      %s46 = sphi 0, %s30
      %s50 = sphi 0, %s50
      %s52 = sphi 0, %s50
      %s53 = sphi 0, %s52
      %s67 = sphi 0, %s53
      %s71 = sphi 0, %s71
      %s73 = sphi 0, %s71
      %s74 = sphi 0, %s73
      %s88 = sphi 0, %s74
      %s92 = sphi 0, %s92
      %s94 = sphi 0, %s92
      %s95 = sphi 0, %s94
      %s109 = sphi 0, %s95
      %s113 = sphi 0, %s113
      %s115 = sphi 0, %s113
      %s116 = sphi 0, %s115
      %s130 = sphi 0, %s116
      %s136 = sphi 0, %s138
      %s139 = sphi 0, %s136
      %s140 = sphi 0, %s139
      %s156 = sphi 0, %s140
      %s162 = sphi 0, %s164
      %s165 = sphi 0, %s162
      %s166 = sphi 0, %s165
      %s182 = sphi 0, %s166
    $region4: #{tpu_custom_call.1} parent=1 // loop_header_branch
      %19 = sbr.rel (%p17) target = $region8
    $region5: #{tpu_custom_call.1} parent=1 // loop_body
      %s21 = ssub.s32 %s16, 1
      %s22 = ssub.s32 %s16, 2
      %s23 = sadd.s32 %s16, 1
      %s24 = ssub.s32 %s16, %s23
      %p25 = scmp.eq.s32.totalorder %s24, 0
      %s27 = sadd.s32 %s26, 1
      %s28 = scalar_select %p25, %s26, %s27
      %p31 = pneg %p25
      %p32 = scmp.eq.s32.totalorder %s16, 1
      %p33 = por %p31, %p32
      %p34 = scmp.ne.s32.totalorder %s26, %s29
      %p35 = scmp.eq.s32.totalorder %s16, 0
      %p36 = por %p34, %p35
      %p37 = scmp.ne.s32.totalorder %s26, %s29
      %p38 = scmp.eq.s32.totalorder %s21, 1
      %p39 = por %p37, %p38
      %p40 = scmp.ne.s32.totalorder %s29, %s30
      %p41 = scmp.eq.s32.totalorder %s21, 0
      %p42 = por %p40, %p41
      %p43 = scmp.ne.s32.totalorder %s29, %s30
      %p44 = scmp.eq.s32.totalorder %s22, 1
      %p45 = por %p43, %p44
      %p47 = scmp.ne.s32.totalorder %s30, %s46
      %p48 = scmp.eq.s32.totalorder %s22, 0
      %p49 = por %p47, %p48
      %s51 = sadd.s32 %s50, 1
      %p54 = scmp.eq.s32.totalorder %s16, 1
      %p55 = scmp.ne.s32.totalorder %s50, %s52
      %p56 = scmp.eq.s32.totalorder %s16, 0
      %p57 = por %p55, %p56
      %p58 = scmp.ne.s32.totalorder %s50, %s52
      %p59 = scmp.eq.s32.totalorder %s21, 1
      %p60 = por %p58, %p59
      %p61 = scmp.ne.s32.totalorder %s52, %s53
      %p62 = scmp.eq.s32.totalorder %s21, 0
      %p63 = por %p61, %p62
      %p64 = scmp.ne.s32.totalorder %s52, %s53
      %p65 = scmp.eq.s32.totalorder %s22, 1
      %p66 = por %p64, %p65
      %p68 = scmp.ne.s32.totalorder %s53, %s67
      %p69 = scmp.eq.s32.totalorder %s22, 0
      %p70 = por %p68, %p69
      %s72 = sadd.s32 %s71, 1
      %p75 = scmp.eq.s32.totalorder %s16, 1
      %p76 = scmp.ne.s32.totalorder %s71, %s73
      %p77 = scmp.eq.s32.totalorder %s16, 0
      %p78 = por %p76, %p77
      %p79 = scmp.ne.s32.totalorder %s71, %s73
      %p80 = scmp.eq.s32.totalorder %s21, 1
      %p81 = por %p79, %p80
      %p82 = scmp.ne.s32.totalorder %s73, %s74
      %p83 = scmp.eq.s32.totalorder %s21, 0
      %p84 = por %p82, %p83
      %p85 = scmp.ne.s32.totalorder %s73, %s74
      %p86 = scmp.eq.s32.totalorder %s22, 1
      %p87 = por %p85, %p86
      %p89 = scmp.ne.s32.totalorder %s74, %s88
      %p90 = scmp.eq.s32.totalorder %s22, 0
      %p91 = por %p89, %p90
      %s93 = sadd.s32 %s92, 1
      %p96 = scmp.eq.s32.totalorder %s16, 1
      %p97 = scmp.ne.s32.totalorder %s92, %s94
      %p98 = scmp.eq.s32.totalorder %s16, 0
      %p99 = por %p97, %p98
      %p100 = scmp.ne.s32.totalorder %s92, %s94
      %p101 = scmp.eq.s32.totalorder %s21, 1
      %p102 = por %p100, %p101
      %p103 = scmp.ne.s32.totalorder %s94, %s95
      %p104 = scmp.eq.s32.totalorder %s21, 0
      %p105 = por %p103, %p104
      %p106 = scmp.ne.s32.totalorder %s94, %s95
      %p107 = scmp.eq.s32.totalorder %s22, 1
      %p108 = por %p106, %p107
      %p110 = scmp.ne.s32.totalorder %s95, %s109
      %p111 = scmp.eq.s32.totalorder %s22, 0
      %p112 = por %p110, %p111
      %s114 = sadd.s32 %s113, 1
      %p117 = scmp.eq.s32.totalorder %s16, 1
      %p118 = scmp.ne.s32.totalorder %s113, %s115
      %p119 = scmp.eq.s32.totalorder %s16, 0
      %p120 = por %p118, %p119
      %p121 = scmp.ne.s32.totalorder %s113, %s115
      %p122 = scmp.eq.s32.totalorder %s21, 1
      %p123 = por %p121, %p122
      %p124 = scmp.ne.s32.totalorder %s115, %s116
      %p125 = scmp.eq.s32.totalorder %s21, 0
      %p126 = por %p124, %p125
      %p127 = scmp.ne.s32.totalorder %s115, %s116
      %p128 = scmp.eq.s32.totalorder %s22, 1
      %p129 = por %p127, %p128
      %p131 = scmp.ne.s32.totalorder %s116, %s130
      %p132 = scmp.eq.s32.totalorder %s22, 0
      %p133 = por %p131, %p132
      %s134 = ssub.s32 %s16, %s23
      %p135 = scmp.eq.s32.totalorder %s134, 0
      %s137 = sadd.s32 %s136, 1
      %s138 = scalar_select %p135, %s136, %s137
      %p141 = pneg %p135
      %p142 = scmp.eq.s32.totalorder %s16, 1
      %p143 = por %p141, %p142
      %p144 = scmp.ne.s32.totalorder %s136, %s139
      %p145 = scmp.eq.s32.totalorder %s16, 0
      %p146 = por %p144, %p145
      %p147 = scmp.ne.s32.totalorder %s136, %s139
      %p148 = scmp.eq.s32.totalorder %s21, 1
      %p149 = por %p147, %p148
      %p150 = scmp.ne.s32.totalorder %s139, %s140
      %p151 = scmp.eq.s32.totalorder %s21, 0
      %p152 = por %p150, %p151
      %p153 = scmp.ne.s32.totalorder %s139, %s140
      %p154 = scmp.eq.s32.totalorder %s22, 1
      %p155 = por %p153, %p154
      %p157 = scmp.ne.s32.totalorder %s140, %s156
      %p158 = scmp.eq.s32.totalorder %s22, 0
      %p159 = por %p157, %p158
      %s160 = ssub.s32 %s16, %s23
      %p161 = scmp.eq.s32.totalorder %s160, 0
      %s163 = sadd.s32 %s162, 1
      %s164 = scalar_select %p161, %s162, %s163
      %p167 = pneg %p161
      %p168 = scmp.eq.s32.totalorder %s16, 1
      %p169 = por %p167, %p168
      %p170 = scmp.ne.s32.totalorder %s162, %s165
      %p171 = scmp.eq.s32.totalorder %s16, 0
      %p172 = por %p170, %p171
      %p173 = scmp.ne.s32.totalorder %s162, %s165
      %p174 = scmp.eq.s32.totalorder %s21, 1
      %p175 = por %p173, %p174
      %p176 = scmp.ne.s32.totalorder %s165, %s166
      %p177 = scmp.eq.s32.totalorder %s21, 0
      %p178 = por %p176, %p177
      %p179 = scmp.ne.s32.totalorder %s165, %s166
      %p180 = scmp.eq.s32.totalorder %s22, 1
      %p181 = por %p179, %p180
      %p183 = scmp.ne.s32.totalorder %s166, %s182
      %p184 = scmp.eq.s32.totalorder %s22, 0
      %p185 = por %p183, %p184
      %p186 = scmp.le.s32.totalorder 1, %s16
      %p187 = scmp.lt.s32.totalorder %s16, 3
      %p188 = pnand %p186, %p187
      %p189 = pneg %p188
      // Predicated region
      $region9: #{tpu_custom_call.1} parent=5 // pred_check
        _
      $region10: #{tpu_custom_call.1} parent=5 // pred_check_branch
        %191 = sbr.rel (%p188) target = $region12
      $region11: #{tpu_custom_call.1} parent=5 // pred_region
        %s192 = ssub.s32 %s16, 1
        // Predicated region
        $region13: #{tpu_custom_call.1} parent=11 // pred_check
          %p193 = pneg %p63
        $region14: #{tpu_custom_call.1} parent=11 // pred_check_branch
          %195 = sbr.rel (%p193) target = $region16
        $region15: #{tpu_custom_call.1} parent=11 // pred_region
          _
        $region16: #{tpu_custom_call.1} parent=11 // pred_fallthru
          _
        // Predicated region
        $region17: #{tpu_custom_call.1} parent=11 // pred_check
          %p196 = pneg %p84
        $region18: #{tpu_custom_call.1} parent=11 // pred_check_branch
          %198 = sbr.rel (%p196) target = $region20
        $region19: #{tpu_custom_call.1} parent=11 // pred_region
          _
        $region20: #{tpu_custom_call.1} parent=11 // pred_fallthru
          _
        // Predicated region
        $region21: #{tpu_custom_call.1} parent=11 // pred_check
          %p199 = pneg %p105
        $region22: #{tpu_custom_call.1} parent=11 // pred_check_branch
          %201 = sbr.rel (%p199) target = $region24
        $region23: #{tpu_custom_call.1} parent=11 // pred_region
          _
        $region24: #{tpu_custom_call.1} parent=11 // pred_fallthru
          _
        // Predicated region
        $region25: #{tpu_custom_call.1} parent=11 // pred_check
          %p202 = pneg %p126
        $region26: #{tpu_custom_call.1} parent=11 // pred_check_branch
          %204 = sbr.rel (%p202) target = $region28
        $region27: #{tpu_custom_call.1} parent=11 // pred_region
          _
        $region28: #{tpu_custom_call.1} parent=11 // pred_fallthru
          _
      $region12: #{tpu_custom_call.1} parent=5 // pred_fallthru
        _
      %p205 = scmp.lt.s32.totalorder %s16, 2
      // Predicated region
      $region29: #{tpu_custom_call.1} parent=5 // pred_check
        %p206 = pneg %p205
      $region30: #{tpu_custom_call.1} parent=5 // pred_check_branch
        %208 = sbr.rel (%p206) target = $region32
      $region31: #{tpu_custom_call.1} parent=5 // pred_region
        // Predicated region
        $region33: #{tpu_custom_call.1} parent=31 // pred_check
          %p209 = pneg %p36
        $region34: #{tpu_custom_call.1} parent=31 // pred_check_branch
          %211 = sbr.rel (%p209) target = $region36
        $region35: #{tpu_custom_call.1} parent=31 // pred_region
          %p212 = scmp.lt.s32.totalorder %s16, 1
          %s213 = scalar_select %p212, %s16, 1
          %s214 = smul.addr %s213, 32
          %s215 = smul.addr %s214, 8
          %s216 = scalar_lea.vmem %s0, %s215
        $region36: #{tpu_custom_call.1} parent=31 // pred_fallthru
          _
      $region32: #{tpu_custom_call.1} parent=5 // pred_fallthru
        _
      %p217 = scmp.le.s32.totalorder 1, %s16
      %p218 = scmp.lt.s32.totalorder %s16, 3
      %p219 = pnand %p217, %p218
      %p220 = pneg %p219
      // Predicated region
      $region37: #{tpu_custom_call.1} parent=5 // pred_check
        _
      $region38: #{tpu_custom_call.1} parent=5 // pred_check_branch
        %222 = sbr.rel (%p219) target = $region40
      $region39: #{tpu_custom_call.1} parent=5 // pred_region
        %s223 = ssub.s32 %s16, 1
        %p224 = scmp.lt.s32.totalorder %s21, 1
        %s225 = scalar_select %p224, %s21, 1
        %s226 = smul.addr %s225, 32
        %s227 = smul.addr %s226, 8
        %s228 = scalar_lea.vmem %s0, %s227
        %p229 = pneg %p42
        %p230 = pneg %p39
        %p231 = pneg %p63
        %p232 = pneg %p60
        %p233 = pneg %p84
        %p234 = pneg %p81
        %p235 = pneg %p105
        %p236 = pneg %p102
        %p237 = pneg %p126
        %p238 = pneg %p123
        %p239 = pneg %p152
        %p240 = pneg %p149
        %p241 = scmp.lt.s32.totalorder %s21, 1
        %s242 = scalar_select %p241, %s21, 1
        %s243 = smul.addr %s242, 32
        %s244 = smul.addr %s243, 8
        %s245 = scalar_lea.vmem %s5, %s244
        %p246 = pneg %p178
        %p247 = pneg %p175
        %s248 = sand.u32 %s165, 1
        %s249 = scalar_lea.sflag [#allocation4], %s248
        %s250 = sand.u32 %s165, 1
        %s251 = smul.addr %s250, 2
        %s252 = scalar_lea.vmem [#allocation3], %s251
        %p253 = scmp.lt.s32.totalorder %s21, 1
        %s254 = scalar_select %p253, %s21, 1
        %s255 = smul.addr %s254, 32
        %s256 = smul.addr %s255, 8
        %s257 = scalar_lea.vmem %s0, %s256
        %p258 = scmp.lt.s32.totalorder %s21, 1
        %s259 = scalar_select %p258, %s21, 1
        %s260 = smul.addr %s259, 32
        %s261 = smul.addr %s260, 8
        %s262 = scalar_lea.vmem %s5, %s261
        %v263 = vld [vmem:[%s257] sm:$0xff]
        %v264 = vld [vmem:[%s257 + $0x8] sm:$0xff]
        %v265 = vld [vmem:[%s257 + $0x10] sm:$0xff]
        %v266 = vld [vmem:[%s257 + $0x18] sm:$0xff]
        %v267 = vld [vmem:[%s257 + $0x20] sm:$0xff]
        %v268 = vld [vmem:[%s257 + $0x28] sm:$0xff]
        %v269 = vld [vmem:[%s257 + $0x30] sm:$0xff]
        %v270 = vld [vmem:[%s257 + $0x38] sm:$0xff]
        %v271 = vld [vmem:[%s257 + $0x40] sm:$0xff]
        %v272 = vld [vmem:[%s257 + $0x48] sm:$0xff]
        %v273 = vld [vmem:[%s257 + $0x50] sm:$0xff]
        %v274 = vld [vmem:[%s257 + $0x58] sm:$0xff]
        %v275 = vld [vmem:[%s257 + $0x60] sm:$0xff]
        %v276 = vld [vmem:[%s257 + $0x68] sm:$0xff]
        %v277 = vld [vmem:[%s257 + $0x70] sm:$0xff]
        %v278 = vld [vmem:[%s257 + $0x78] sm:$0xff]
        %v279 = vld [vmem:[%s257 + $0x80] sm:$0xff]
        %v280 = vld [vmem:[%s257 + $0x88] sm:$0xff]
        %v281 = vld [vmem:[%s257 + $0x90] sm:$0xff]
        %v282 = vld [vmem:[%s257 + $0x98] sm:$0xff]
        %v283 = vld [vmem:[%s257 + $0xa0] sm:$0xff]
        %v284 = vld [vmem:[%s257 + $0xa8] sm:$0xff]
        %v285 = vld [vmem:[%s257 + $0xb0] sm:$0xff]
        %v286 = vld [vmem:[%s257 + $0xb8] sm:$0xff]
        %v287 = vld [vmem:[%s257 + $0xc0] sm:$0xff]
        %v288 = vld [vmem:[%s257 + $0xc8] sm:$0xff]
        %v289 = vld [vmem:[%s257 + $0xd0] sm:$0xff]
        %v290 = vld [vmem:[%s257 + $0xd8] sm:$0xff]
        %v291 = vld [vmem:[%s257 + $0xe0] sm:$0xff]
        %v292 = vld [vmem:[%s257 + $0xe8] sm:$0xff]
        %v293 = vld [vmem:[%s257 + $0xf0] sm:$0xff]
        %v294 = vld [vmem:[%s257 + $0xf8] sm:$0xff]
        %vm295 = vcmask 31744
        %296 = vst.msk [vmem:[#allocation2] sm:$0xff] %vm295, 0.0
        %297 = vst.msk [vmem:[#allocation2 + $0x8] sm:$0xff] %vm295, 0.0
        %vm298 = vcmask 25600
        %299 = vst.msk [vmem:[#allocation2 + $0x10] sm:$0x3] %vm298, 0.0
        %300 = vst.msk [vmem:[#allocation2 + $0x18] sm:$0xff] %vm295, 0.0
        %301 = vst.msk [vmem:[#allocation2 + $0x20] sm:$0xff] %vm295, 0.0
        %302 = vst.msk [vmem:[#allocation2 + $0x28] sm:$0x3] %vm298, 0.0
        %303 = vst.msk [vmem:[#allocation2 + $0x30] sm:$0xff] %vm295, 0.0
        %304 = vst.msk [vmem:[#allocation2 + $0x38] sm:$0xff] %vm295, 0.0
        %305 = vst.msk [vmem:[#allocation2 + $0x40] sm:$0x3] %vm298, 0.0
        %306 = vst.msk [vmem:[#allocation2 + $0x48] sm:$0xff] %vm295, 0.0
        %307 = vst.msk [vmem:[#allocation2 + $0x50] sm:$0xff] %vm295, 0.0
        %308 = vst.msk [vmem:[#allocation2 + $0x58] sm:$0x3] %vm298, 0.0
        %309 = vst.msk [vmem:[#allocation2 + $0x60] sm:$0xff] %vm295, 0.0
        %310 = vst.msk [vmem:[#allocation2 + $0x68] sm:$0xff] %vm295, 0.0
        %311 = vst.msk [vmem:[#allocation2 + $0x70] sm:$0x3] %vm298, 0.0
        %312 = vst.msk [vmem:[#allocation2 + $0x78] sm:$0xff] %vm295, 0.0
        %313 = vst.msk [vmem:[#allocation2 + $0x80] sm:$0xff] %vm295, 0.0
        %314 = vst.msk [vmem:[#allocation2 + $0x88] sm:$0x3] %vm298, 0.0
        %315 = vst.msk [vmem:[#allocation2 + $0x90] sm:$0xff] %vm295, 0.0
        %316 = vst.msk [vmem:[#allocation2 + $0x98] sm:$0xff] %vm295, 0.0
        %317 = vst.msk [vmem:[#allocation2 + $0xa0] sm:$0x3] %vm298, 0.0
        %318 = vst.msk [vmem:[#allocation2 + $0xa8] sm:$0xff] %vm295, 0.0
        %319 = vst.msk [vmem:[#allocation2 + $0xb0] sm:$0xff] %vm295, 0.0
        %320 = vst.msk [vmem:[#allocation2 + $0xb8] sm:$0x3] %vm298, 0.0
        %321 = vst.msk [vmem:[#allocation2 + $0xc0] sm:$0xff] %vm295, 0.0
        %322 = vst.msk [vmem:[#allocation2 + $0xc8] sm:$0xff] %vm295, 0.0
        %323 = vst.msk [vmem:[#allocation2 + $0xd0] sm:$0x3] %vm298, 0.0
        %324 = vst.msk [vmem:[#allocation2 + $0xd8] sm:$0xff] %vm295, 0.0
        %325 = vst.msk [vmem:[#allocation2 + $0xe0] sm:$0xff] %vm295, 0.0
        %326 = vst.msk [vmem:[#allocation2 + $0xe8] sm:$0x3] %vm298, 0.0
        %327 = vst.msk [vmem:[#allocation2 + $0xf0] sm:$0xff] %vm295, 0.0
        %328 = vst.msk [vmem:[#allocation2 + $0xf8] sm:$0xff] %vm295, 0.0
        %329 = vst.msk [vmem:[#allocation2 + $0x100] sm:$0x3] %vm298, 0.0
        %330 = vst.msk [vmem:[#allocation2 + $0x108] sm:$0xff] %vm295, 0.0
        %331 = vst.msk [vmem:[#allocation2 + $0x110] sm:$0xff] %vm295, 0.0
        %332 = vst.msk [vmem:[#allocation2 + $0x118] sm:$0x3] %vm298, 0.0
        %333 = vst.msk [vmem:[#allocation2 + $0x120] sm:$0xff] %vm295, 0.0
        %334 = vst.msk [vmem:[#allocation2 + $0x128] sm:$0xff] %vm295, 0.0
        %335 = vst.msk [vmem:[#allocation2 + $0x130] sm:$0x3] %vm298, 0.0
        %336 = vst.msk [vmem:[#allocation2 + $0x138] sm:$0xff] %vm295, 0.0
        %337 = vst.msk [vmem:[#allocation2 + $0x140] sm:$0xff] %vm295, 0.0
        %338 = vst.msk [vmem:[#allocation2 + $0x148] sm:$0x3] %vm298, 0.0
        %339 = vst.msk [vmem:[#allocation2 + $0x150] sm:$0xff] %vm295, 0.0
        %340 = vst.msk [vmem:[#allocation2 + $0x158] sm:$0xff] %vm295, 0.0
        %341 = vst.msk [vmem:[#allocation2 + $0x160] sm:$0x3] %vm298, 0.0
        %342 = vst.msk [vmem:[#allocation2 + $0x168] sm:$0xff] %vm295, 0.0
        %343 = vst.msk [vmem:[#allocation2 + $0x170] sm:$0xff] %vm295, 0.0
        %344 = vst.msk [vmem:[#allocation2 + $0x178] sm:$0x3] %vm298, 0.0
        %345 = vst.msk [vmem:[#allocation2 + $0x180] sm:$0xff] %vm295, 0.0
        %346 = vst.msk [vmem:[#allocation2 + $0x188] sm:$0xff] %vm295, 0.0
        %347 = vst.msk [vmem:[#allocation2 + $0x190] sm:$0x3] %vm298, 0.0
        %348 = vst.msk [vmem:[#allocation2 + $0x198] sm:$0xff] %vm295, 0.0
        %349 = vst.msk [vmem:[#allocation2 + $0x1a0] sm:$0xff] %vm295, 0.0
        %350 = vst.msk [vmem:[#allocation2 + $0x1a8] sm:$0x3] %vm298, 0.0
        %s351 = scalar_lea.vmem [#allocation2], 24
        %352 = vst.msk [vmem:[%s351 + $0x1] sm:$0xff] %vm295, %v263
        %353 = vst.msk [vmem:[%s351 + $0x9] sm:$0xff] %vm295, %v264
        %354 = vst.msk [vmem:[%s351 + $0x19] sm:$0xff] %vm295, %v265
        %355 = vst.msk [vmem:[%s351 + $0x21] sm:$0xff] %vm295, %v266
        %356 = vst.msk [vmem:[%s351 + $0x31] sm:$0xff] %vm295, %v267
        %357 = vst.msk [vmem:[%s351 + $0x39] sm:$0xff] %vm295, %v268
        %358 = vst.msk [vmem:[%s351 + $0x49] sm:$0xff] %vm295, %v269
        %359 = vst.msk [vmem:[%s351 + $0x51] sm:$0xff] %vm295, %v270
        %360 = vst.msk [vmem:[%s351 + $0x61] sm:$0xff] %vm295, %v271
        %361 = vst.msk [vmem:[%s351 + $0x69] sm:$0xff] %vm295, %v272
        %362 = vst.msk [vmem:[%s351 + $0x79] sm:$0xff] %vm295, %v273
        %363 = vst.msk [vmem:[%s351 + $0x81] sm:$0xff] %vm295, %v274
        %364 = vst.msk [vmem:[%s351 + $0x91] sm:$0xff] %vm295, %v275
        %365 = vst.msk [vmem:[%s351 + $0x99] sm:$0xff] %vm295, %v276
        %366 = vst.msk [vmem:[%s351 + $0xa9] sm:$0xff] %vm295, %v277
        %367 = vst.msk [vmem:[%s351 + $0xb1] sm:$0xff] %vm295, %v278
        %368 = vst.msk [vmem:[%s351 + $0xc1] sm:$0xff] %vm295, %v279
        %369 = vst.msk [vmem:[%s351 + $0xc9] sm:$0xff] %vm295, %v280
        %370 = vst.msk [vmem:[%s351 + $0xd9] sm:$0xff] %vm295, %v281
        %371 = vst.msk [vmem:[%s351 + $0xe1] sm:$0xff] %vm295, %v282
        %372 = vst.msk [vmem:[%s351 + $0xf1] sm:$0xff] %vm295, %v283
        %373 = vst.msk [vmem:[%s351 + $0xf9] sm:$0xff] %vm295, %v284
        %374 = vst.msk [vmem:[%s351 + $0x109] sm:$0xff] %vm295, %v285
        %375 = vst.msk [vmem:[%s351 + $0x111] sm:$0xff] %vm295, %v286
        %376 = vst.msk [vmem:[%s351 + $0x121] sm:$0xff] %vm295, %v287
        %377 = vst.msk [vmem:[%s351 + $0x129] sm:$0xff] %vm295, %v288
        %378 = vst.msk [vmem:[%s351 + $0x139] sm:$0xff] %vm295, %v289
        %379 = vst.msk [vmem:[%s351 + $0x141] sm:$0xff] %vm295, %v290
        %380 = vst.msk [vmem:[%s351 + $0x151] sm:$0xff] %vm295, %v291
        %381 = vst.msk [vmem:[%s351 + $0x159] sm:$0xff] %vm295, %v292
        %382 = vst.msk [vmem:[%s351 + $0x169] sm:$0xff] %vm295, %v293
        %383 = vst.msk [vmem:[%s351 + $0x171] sm:$0xff] %vm295, %v294
        %v384 = vld [vmem:[%s3] sm:$0xff]
        %v385 = vld [vmem:[%s3 + $0x8] sm:$0xff]
        %v386 = vld [vmem:[%s3 + $0x10] sm:$0xff]
        %v387 = vld [vmem:[%s3 + $0x18] sm:$0xff]
        %v388 = vld [vmem:[%s3 + $0x20] sm:$0xf]
        %v389 = vld [vmem:[#allocation2] sm:$0xff]
        %v390 = vld [vmem:[#allocation2 + $0x8] sm:$0xff]
        %v391 = vld [vmem:[#allocation2 + $0x18] sm:$0xff]
        %v392 = vld [vmem:[#allocation2 + $0x20] sm:$0xff]
        %v393 = vld [vmem:[#allocation2 + $0x30] sm:$0xff]
        %v394 = vld [vmem:[#allocation2 + $0x38] sm:$0xff]
        %v395 = vld [vmem:[#allocation2 + $0x48] sm:$0xff]
        %v396 = vld [vmem:[#allocation2 + $0x50] sm:$0xff]
        %v397 = vld [vmem:[#allocation2 + $0x60] sm:$0xff]
        %v398 = vld [vmem:[#allocation2 + $0x68] sm:$0xff]
        %v399 = vld [vmem:[#allocation2 + $0x78] sm:$0xff]
        %v400 = vld [vmem:[#allocation2 + $0x80] sm:$0xff]
        %v401 = vld [vmem:[#allocation2 + $0x90] sm:$0xff]
        %v402 = vld [vmem:[#allocation2 + $0x98] sm:$0xff]
        %v403 = vld [vmem:[#allocation2 + $0xa8] sm:$0xff]
        %v404 = vld [vmem:[#allocation2 + $0xb0] sm:$0xff]
        %v405 = vld [vmem:[#allocation2 + $0xc0] sm:$0xff]
        %v406 = vld [vmem:[#allocation2 + $0xc8] sm:$0xff]
        %v407 = vld [vmem:[#allocation2 + $0xd8] sm:$0xff]
        %v408 = vld [vmem:[#allocation2 + $0xe0] sm:$0xff]
        %v409 = vld [vmem:[#allocation2 + $0xf0] sm:$0xff]
        %v410 = vld [vmem:[#allocation2 + $0xf8] sm:$0xff]
        %v411 = vld [vmem:[#allocation2 + $0x108] sm:$0xff]
        %v412 = vld [vmem:[#allocation2 + $0x110] sm:$0xff]
        %v413 = vld [vmem:[#allocation2 + $0x120] sm:$0xff]
        %v414 = vld [vmem:[#allocation2 + $0x128] sm:$0xff]
        %v415 = vld [vmem:[#allocation2 + $0x138] sm:$0xff]
        %v416 = vld [vmem:[#allocation2 + $0x140] sm:$0xff]
        %v417 = vld [vmem:[#allocation2 + $0x150] sm:$0xff]
        %v418 = vld [vmem:[#allocation2 + $0x158] sm:$0xff]
        %v419 = vld [vmem:[#allocation2 + $0x168] sm:$0xff]
        %v420 = vld [vmem:[#allocation2 + $0x170] sm:$0xff]
        %v421 = vld [vmem:[#allocation2 + $0x1] sm:$0xff]
        %v422 = vld [vmem:[#allocation2 + $0x9] sm:$0xff]
        %v423 = vld [vmem:[#allocation2 + $0x19] sm:$0xff]
        %v424 = vld [vmem:[#allocation2 + $0x21] sm:$0xff]
        %v425 = vld [vmem:[#allocation2 + $0x31] sm:$0xff]
        %v426 = vld [vmem:[#allocation2 + $0x39] sm:$0xff]
        %v427 = vld [vmem:[#allocation2 + $0x49] sm:$0xff]
        %v428 = vld [vmem:[#allocation2 + $0x51] sm:$0xff]
        %v429 = vld [vmem:[#allocation2 + $0x61] sm:$0xff]
        %v430 = vld [vmem:[#allocation2 + $0x69] sm:$0xff]
        %v431 = vld [vmem:[#allocation2 + $0x79] sm:$0xff]
        %v432 = vld [vmem:[#allocation2 + $0x81] sm:$0xff]
        %v433 = vld [vmem:[#allocation2 + $0x91] sm:$0xff]
        %v434 = vld [vmem:[#allocation2 + $0x99] sm:$0xff]
        %v435 = vld [vmem:[#allocation2 + $0xa9] sm:$0xff]
        %v436 = vld [vmem:[#allocation2 + $0xb1] sm:$0xff]
        %v437 = vld [vmem:[#allocation2 + $0xc1] sm:$0xff]
        %v438 = vld [vmem:[#allocation2 + $0xc9] sm:$0xff]
        %v439 = vld [vmem:[#allocation2 + $0xd9] sm:$0xff]
        %v440 = vld [vmem:[#allocation2 + $0xe1] sm:$0xff]
        %v441 = vld [vmem:[#allocation2 + $0xf1] sm:$0xff]
        %v442 = vld [vmem:[#allocation2 + $0xf9] sm:$0xff]
        %v443 = vld [vmem:[#allocation2 + $0x109] sm:$0xff]
        %v444 = vld [vmem:[#allocation2 + $0x111] sm:$0xff]
        %v445 = vld [vmem:[#allocation2 + $0x121] sm:$0xff]
        %v446 = vld [vmem:[#allocation2 + $0x129] sm:$0xff]
        %v447 = vld [vmem:[#allocation2 + $0x139] sm:$0xff]
        %v448 = vld [vmem:[#allocation2 + $0x141] sm:$0xff]
        %v449 = vld [vmem:[#allocation2 + $0x151] sm:$0xff]
        %v450 = vld [vmem:[#allocation2 + $0x159] sm:$0xff]
        %v451 = vld [vmem:[#allocation2 + $0x169] sm:$0xff]
        %v452 = vld [vmem:[#allocation2 + $0x171] sm:$0xff]
        %v454 = vrot.slane %v384, 4
        %v456 = vsel %vm295, %v421, 0
        %v459 = vsel %vm295, %v422, 0
        %v462 = vsel %vm295, %v423, 0
        %v465 = vsel %vm295, %v424, 0
        %v468 = vsel %vm295, %v425, 0
        %v471 = vsel %vm295, %v426, 0
        %v474 = vsel %vm295, %v427, 0
        %v477 = vsel %vm295, %v428, 0
        %v480 = vsel %vm295, %v429, 0
        %v483 = vsel %vm295, %v430, 0
        %v486 = vsel %vm295, %v431, 0
        %v489 = vsel %vm295, %v432, 0
        %v492 = vsel %vm295, %v433, 0
        %v495 = vsel %vm295, %v434, 0
        %v498 = vsel %vm295, %v435, 0
        %v501 = vsel %vm295, %v436, 0
        %v504 = vsel %vm295, %v437, 0
        %v507 = vsel %vm295, %v438, 0
        %v510 = vsel %vm295, %v439, 0
        %v513 = vsel %vm295, %v440, 0
        %v516 = vsel %vm295, %v441, 0
        %v519 = vsel %vm295, %v442, 0
        %v522 = vsel %vm295, %v443, 0
        %v525 = vsel %vm295, %v444, 0
        %v528 = vsel %vm295, %v445, 0
        %v531 = vsel %vm295, %v446, 0
        %v534 = vsel %vm295, %v447, 0
        %v537 = vsel %vm295, %v448, 0
        %v540 = vsel %vm295, %v449, 0
        %v543 = vsel %vm295, %v450, 0
        %v546 = vsel %vm295, %v451, 0
        %v549 = vsel %vm295, %v452, 0
        %vm551 = vcmask 1043456
        %v552 = vsel %vm551, %v454, 0
        %554 = vmatprep.subr.mxu0 0.0
        %555 = vmatpush1.msra.mxu0 %v552
        %556 = vmatprep.subr.mxu0 0.0
        %557 = vmatpush1.msra.mxu0 0.0
        %558 = vmatprep.subr.mxu0 0.0
        %559 = vmatpush1.msra.mxu0 0.0
        %560 = vmatprep.subr.mxu0 0.0
        %561 = vmatpush1.msra.mxu0 0.0
        %562 = vmatprep.subr.mxu0 0.0
        %563 = vmatpush1.msra.mxu0 0.0
        %564 = vmatprep.subr.mxu0 0.0
        %565 = vmatpush1.msra.mxu0 0.0
        %566 = vmatprep.subr.mxu0 0.0
        %567 = vmatpush1.msra.mxu0 0.0
        %568 = vmatprep.subr.mxu0 0.0
        %569 = vmatpush1.msra.mxu0 0.0
        %570 = vmatprep.subr.mxu0 0.0
        %571 = vmatpush1.msra.mxu0 0.0
        %572 = vmatprep.subr.mxu0 0.0
        %573 = vmatpush1.msra.mxu0 0.0
        %574 = vmatprep.subr.mxu0 0.0
        %575 = vmatpush1.msra.mxu0 0.0
        %576 = vmatprep.subr.mxu0 0.0
        %577 = vmatpush1.msra.mxu0 0.0
        %578 = vmatprep.subr.mxu0 0.0
        %579 = vmatpush1.msra.mxu0 0.0
        %580 = vmatprep.subr.mxu0 0.0
        %581 = vmatpush1.msra.mxu0 0.0
        %582 = vmatprep.subr.mxu0 0.0
        %583 = vmatpush1.msra.mxu0 0.0
        %584 = vmatprep.subr.mxu0 0.0
        %585 = vmatpush1.msra.mxu0 0.0
        %586 = vmatprep.subr.mxu0 0.0
        %587 = vmatpush1.msra.mxu0 0.0
        %588 = vmatprep.subr.mxu0 0.0
        %589 = vmatpush1.msra.mxu0 0.0
        %590 = vmatprep.subr.mxu0 0.0
        %591 = vmatpush1.msra.mxu0 0.0
        %592 = vmatprep.subr.mxu0 0.0
        %593 = vmatpush1.msra.mxu0 0.0
        %594 = vmatprep.subr.mxu0 0.0
        %595 = vmatpush1.msra.mxu0 0.0
        %596 = vmatprep.subr.mxu0 0.0
        %597 = vmatpush1.msra.mxu0 0.0
        %598 = vmatprep.subr.mxu0 0.0
        %599 = vmatpush1.msra.mxu0 0.0
        %600 = vmatprep.subr.mxu0 0.0
        %601 = vmatpush1.msra.mxu0 0.0
        %602 = vmatprep.subr.mxu0 0.0
        %603 = vmatpush1.msra.mxu0 0.0
        %604 = vmatprep.subr.mxu0 0.0
        %605 = vmatpush1.msra.mxu0 0.0
        %606 = vmatprep.subr.mxu0 0.0
        %607 = vmatpush1.msra.mxu0 0.0
        %608 = vmatprep.subr.mxu0 0.0
        %609 = vmatpush1.msra.mxu0 0.0
        %610 = vmatprep.subr.mxu0 0.0
        %611 = vmatpush1.msra.mxu0 0.0
        %612 = vmatprep.subr.mxu0 0.0
        %613 = vmatpush1.msra.mxu0 0.0
        %614 = vmatprep.subr.mxu0 0.0
        %615 = vmatpush1.msra.mxu0 0.0
        %616 = vmatprep.subr.mxu0 0.0
        %617 = vmatpush1.msra.mxu0 0.0
        %618 = vmatprep.mubr.f32.mxu0 0.0
        %619 = vmatmul.mubr.f32.gmra.mrb[0].mxu0 %v456
        %v620 = vpop.f32.mrb[0].mxu0
        %v621 = vadd.f32 0.0, %v620
        %v622 = vpop.f32.mrb[0].mxu0
        %623 = vmatprep.mubr.f32.mxu0 0.0
        %624 = vmatmul.mubr.f32.gmra.mrb[0].mxu0 %v459
        %v625 = vpop.f32.mrb[0].mxu0
        %v626 = vadd.f32 0.0, %v625
        %v627 = vpop.f32.mrb[0].mxu0
        %628 = vmatprep.mubr.f32.mxu0 0.0
        %629 = vmatmul.mubr.f32.gmra.mrb[0].mxu0 %v462
        %v630 = vpop.f32.mrb[0].mxu0
        %v631 = vadd.f32 0.0, %v630
        %v632 = vpop.f32.mrb[0].mxu0
        %633 = vmatprep.mubr.f32.mxu0 0.0
        %634 = vmatmul.mubr.f32.gmra.mrb[0].mxu0 %v465
        %v635 = vpop.f32.mrb[0].mxu0
        %v636 = vadd.f32 0.0, %v635
        %v637 = vpop.f32.mrb[0].mxu0
        %638 = vmatprep.mubr.f32.mxu0 0.0
        %639 = vmatmul.mubr.f32.gmra.mrb[0].mxu0 %v468
        %v640 = vpop.f32.mrb[0].mxu0
        %v641 = vadd.f32 0.0, %v640
        %v642 = vpop.f32.mrb[0].mxu0
        %643 = vmatprep.mubr.f32.mxu0 0.0
        %644 = vmatmul.mubr.f32.gmra.mrb[0].mxu0 %v471
        %v645 = vpop.f32.mrb[0].mxu0
        %v646 = vadd.f32 0.0, %v645
        %v647 = vpop.f32.mrb[0].mxu0
        %648 = vmatprep.mubr.f32.mxu0 0.0
        %649 = vmatmul.mubr.f32.gmra.mrb[0].mxu0 %v474
        %v650 = vpop.f32.mrb[0].mxu0
        %v651 = vadd.f32 0.0, %v650
        %v652 = vpop.f32.mrb[0].mxu0
        %653 = vmatprep.mubr.f32.mxu0 0.0
        %654 = vmatmul.mubr.f32.gmra.mrb[0].mxu0 %v477
        %v655 = vpop.f32.mrb[0].mxu0
        %v656 = vadd.f32 0.0, %v655
        %v657 = vpop.f32.mrb[0].mxu0
        %658 = vmatprep.mubr.f32.mxu0 0.0
        %659 = vmatmul.mubr.f32.gmra.mrb[0].mxu0 %v480
        %v660 = vpop.f32.mrb[0].mxu0
        %v661 = vadd.f32 0.0, %v660
        %v662 = vpop.f32.mrb[0].mxu0
        %663 = vmatprep.mubr.f32.mxu0 0.0
        %664 = vmatmul.mubr.f32.gmra.mrb[0].mxu0 %v483
        %v665 = vpop.f32.mrb[0].mxu0
        %v666 = vadd.f32 0.0, %v665
        %v667 = vpop.f32.mrb[0].mxu0
        %668 = vmatprep.mubr.f32.mxu0 0.0
        %669 = vmatmul.mubr.f32.gmra.mrb[0].mxu0 %v486
        %v670 = vpop.f32.mrb[0].mxu0
        %v671 = vadd.f32 0.0, %v670
        %v672 = vpop.f32.mrb[0].mxu0
        %673 = vmatprep.mubr.f32.mxu0 0.0
        %674 = vmatmul.mubr.f32.gmra.mrb[0].mxu0 %v489
        %v675 = vpop.f32.mrb[0].mxu0
        %v676 = vadd.f32 0.0, %v675
        %v677 = vpop.f32.mrb[0].mxu0
        %678 = vmatprep.mubr.f32.mxu0 0.0
        %679 = vmatmul.mubr.f32.gmra.mrb[0].mxu0 %v492
        %v680 = vpop.f32.mrb[0].mxu0
        %v681 = vadd.f32 0.0, %v680
        %v682 = vpop.f32.mrb[0].mxu0
        %683 = vmatprep.mubr.f32.mxu0 0.0
        %684 = vmatmul.mubr.f32.gmra.mrb[0].mxu0 %v495
        %v685 = vpop.f32.mrb[0].mxu0
        %v686 = vadd.f32 0.0, %v685
        %v687 = vpop.f32.mrb[0].mxu0
        %688 = vmatprep.mubr.f32.mxu0 0.0
        %689 = vmatmul.mubr.f32.gmra.mrb[0].mxu0 %v498
        %v690 = vpop.f32.mrb[0].mxu0
        %v691 = vadd.f32 0.0, %v690
        %v692 = vpop.f32.mrb[0].mxu0
        %693 = vmatprep.mubr.f32.mxu0 0.0
        %694 = vmatmul.mubr.f32.gmra.mrb[0].mxu0 %v501
        %v695 = vpop.f32.mrb[0].mxu0
        %v696 = vadd.f32 0.0, %v695
        %v697 = vpop.f32.mrb[0].mxu0
        %698 = vmatprep.mubr.f32.mxu0 0.0
        %699 = vmatmul.mubr.f32.gmra.mrb[0].mxu0 %v504
        %v700 = vpop.f32.mrb[0].mxu0
        %v701 = vadd.f32 0.0, %v700
        %v702 = vpop.f32.mrb[0].mxu0
        %703 = vmatprep.mubr.f32.mxu0 0.0
        %704 = vmatmul.mubr.f32.gmra.mrb[0].mxu0 %v507
        %v705 = vpop.f32.mrb[0].mxu0
        %v706 = vadd.f32 0.0, %v705
        %v707 = vpop.f32.mrb[0].mxu0
        %708 = vmatprep.mubr.f32.mxu0 0.0
        %709 = vmatmul.mubr.f32.gmra.mrb[0].mxu0 %v510
        %v710 = vpop.f32.mrb[0].mxu0
        %v711 = vadd.f32 0.0, %v710
        %v712 = vpop.f32.mrb[0].mxu0
        %713 = vmatprep.mubr.f32.mxu0 0.0
        %714 = vmatmul.mubr.f32.gmra.mrb[0].mxu0 %v513
        %v715 = vpop.f32.mrb[0].mxu0
        %v716 = vadd.f32 0.0, %v715
        %v717 = vpop.f32.mrb[0].mxu0
        %718 = vmatprep.mubr.f32.mxu0 0.0
        %719 = vmatmul.mubr.f32.gmra.mrb[0].mxu0 %v516
        %v720 = vpop.f32.mrb[0].mxu0
        %v721 = vadd.f32 0.0, %v720
        %v722 = vpop.f32.mrb[0].mxu0
        %723 = vmatprep.mubr.f32.mxu0 0.0
        %724 = vmatmul.mubr.f32.gmra.mrb[0].mxu0 %v519
        %v725 = vpop.f32.mrb[0].mxu0
        %v726 = vadd.f32 0.0, %v725
        %v727 = vpop.f32.mrb[0].mxu0
        %728 = vmatprep.mubr.f32.mxu0 0.0
        %729 = vmatmul.mubr.f32.gmra.mrb[0].mxu0 %v522
        %v730 = vpop.f32.mrb[0].mxu0
        %v731 = vadd.f32 0.0, %v730
        %v732 = vpop.f32.mrb[0].mxu0
        %733 = vmatprep.mubr.f32.mxu0 0.0
        %734 = vmatmul.mubr.f32.gmra.mrb[0].mxu0 %v525
        %v735 = vpop.f32.mrb[0].mxu0
        %v736 = vadd.f32 0.0, %v735
        %v737 = vpop.f32.mrb[0].mxu0
        %738 = vmatprep.mubr.f32.mxu0 0.0
        %739 = vmatmul.mubr.f32.gmra.mrb[0].mxu0 %v528
        %v740 = vpop.f32.mrb[0].mxu0
        %v741 = vadd.f32 0.0, %v740
        %v742 = vpop.f32.mrb[0].mxu0
        %743 = vmatprep.mubr.f32.mxu0 0.0
        %744 = vmatmul.mubr.f32.gmra.mrb[0].mxu0 %v531
        %v745 = vpop.f32.mrb[0].mxu0
        %v746 = vadd.f32 0.0, %v745
        %v747 = vpop.f32.mrb[0].mxu0
        %748 = vmatprep.mubr.f32.mxu0 0.0
        %749 = vmatmul.mubr.f32.gmra.mrb[0].mxu0 %v534
        %v750 = vpop.f32.mrb[0].mxu0
        %v751 = vadd.f32 0.0, %v750
        %v752 = vpop.f32.mrb[0].mxu0
        %753 = vmatprep.mubr.f32.mxu0 0.0
        %754 = vmatmul.mubr.f32.gmra.mrb[0].mxu0 %v537
        %v755 = vpop.f32.mrb[0].mxu0
        %v756 = vadd.f32 0.0, %v755
        %v757 = vpop.f32.mrb[0].mxu0
        %758 = vmatprep.mubr.f32.mxu0 0.0
        %759 = vmatmul.mubr.f32.gmra.mrb[0].mxu0 %v540
        %v760 = vpop.f32.mrb[0].mxu0
        %v761 = vadd.f32 0.0, %v760
        %v762 = vpop.f32.mrb[0].mxu0
        %763 = vmatprep.mubr.f32.mxu0 0.0
        %764 = vmatmul.mubr.f32.gmra.mrb[0].mxu0 %v543
        %v765 = vpop.f32.mrb[0].mxu0
        %v766 = vadd.f32 0.0, %v765
        %v767 = vpop.f32.mrb[0].mxu0
        %768 = vmatprep.mubr.f32.mxu0 0.0
        %769 = vmatmul.mubr.f32.gmra.mrb[0].mxu0 %v546
        %v770 = vpop.f32.mrb[0].mxu0
        %v771 = vadd.f32 0.0, %v770
        %v772 = vpop.f32.mrb[0].mxu0
        %773 = vmatprep.mubr.f32.mxu0 0.0
        %774 = vmatmul.mubr.f32.gmra.mrb[0].mxu0 %v549
        %v775 = vpop.f32.mrb[0].mxu0
        %v776 = vadd.f32 0.0, %v775
        %v777 = vpop.f32.mrb[0].mxu0
        %778 = vdwg.mxu0
        %v780 = vsel %vm295, %v389, 0
        %v783 = vsel %vm295, %v390, 0
        %v786 = vsel %vm295, %v391, 0
        %v789 = vsel %vm295, %v392, 0
        %v792 = vsel %vm295, %v393, 0
        %v795 = vsel %vm295, %v394, 0
        %v798 = vsel %vm295, %v395, 0
        %v801 = vsel %vm295, %v396, 0
        %v804 = vsel %vm295, %v397, 0
        %v807 = vsel %vm295, %v398, 0
        %v810 = vsel %vm295, %v399, 0
        %v813 = vsel %vm295, %v400, 0
        %v816 = vsel %vm295, %v401, 0
        %v819 = vsel %vm295, %v402, 0
        %v822 = vsel %vm295, %v403, 0
        %v825 = vsel %vm295, %v404, 0
        %v828 = vsel %vm295, %v405, 0
        %v831 = vsel %vm295, %v406, 0
        %v834 = vsel %vm295, %v407, 0
        %v837 = vsel %vm295, %v408, 0
        %v840 = vsel %vm295, %v409, 0
        %v843 = vsel %vm295, %v410, 0
        %v846 = vsel %vm295, %v411, 0
        %v849 = vsel %vm295, %v412, 0
        %v852 = vsel %vm295, %v413, 0
        %v855 = vsel %vm295, %v414, 0
        %v858 = vsel %vm295, %v415, 0
        %v861 = vsel %vm295, %v416, 0
        %v864 = vsel %vm295, %v417, 0
        %v867 = vsel %vm295, %v418, 0
        %v870 = vsel %vm295, %v419, 0
        %v873 = vsel %vm295, %v420, 0
        %v875 = vsel %vm551, %v384, 0
        %877 = vmatprep.subr.mxu0 0.0
        %878 = vmatpush1.msra.mxu0 %v875
        %879 = vmatprep.subr.mxu0 0.0
        %880 = vmatpush1.msra.mxu0 0.0
        %881 = vmatprep.subr.mxu0 0.0
        %882 = vmatpush1.msra.mxu0 0.0
        %883 = vmatprep.subr.mxu0 0.0
        %884 = vmatpush1.msra.mxu0 0.0
        %885 = vmatprep.subr.mxu0 0.0
        %886 = vmatpush1.msra.mxu0 0.0
        %887 = vmatprep.subr.mxu0 0.0
        %888 = vmatpush1.msra.mxu0 0.0
        %889 = vmatprep.subr.mxu0 0.0
        %890 = vmatpush1.msra.mxu0 0.0
        %891 = vmatprep.subr.mxu0 0.0
        %892 = vmatpush1.msra.mxu0 0.0
        %893 = vmatprep.subr.mxu0 0.0
        %894 = vmatpush1.msra.mxu0 0.0
        %895 = vmatprep.subr.mxu0 0.0
        %896 = vmatpush1.msra.mxu0 0.0
        %897 = vmatprep.subr.mxu0 0.0
        %898 = vmatpush1.msra.mxu0 0.0
        %899 = vmatprep.subr.mxu0 0.0
        %900 = vmatpush1.msra.mxu0 0.0
        %901 = vmatprep.subr.mxu0 0.0
        %902 = vmatpush1.msra.mxu0 0.0
        %903 = vmatprep.subr.mxu0 0.0
        %904 = vmatpush1.msra.mxu0 0.0
        %905 = vmatprep.subr.mxu0 0.0
        %906 = vmatpush1.msra.mxu0 0.0
        %907 = vmatprep.subr.mxu0 0.0
        %908 = vmatpush1.msra.mxu0 0.0
        %909 = vmatprep.subr.mxu0 0.0
        %910 = vmatpush1.msra.mxu0 0.0
        %911 = vmatprep.subr.mxu0 0.0
        %912 = vmatpush1.msra.mxu0 0.0
        %913 = vmatprep.subr.mxu0 0.0
        %914 = vmatpush1.msra.mxu0 0.0
        %915 = vmatprep.subr.mxu0 0.0
        %916 = vmatpush1.msra.mxu0 0.0
        %917 = vmatprep.subr.mxu0 0.0
        %918 = vmatpush1.msra.mxu0 0.0
        %919 = vmatprep.subr.mxu0 0.0
        %920 = vmatpush1.msra.mxu0 0.0
        %921 = vmatprep.subr.mxu0 0.0
        %922 = vmatpush1.msra.mxu0 0.0
        %923 = vmatprep.subr.mxu0 0.0
        %924 = vmatpush1.msra.mxu0 0.0
        %925 = vmatprep.subr.mxu0 0.0
        %926 = vmatpush1.msra.mxu0 0.0
        %927 = vmatprep.subr.mxu0 0.0
        %928 = vmatpush1.msra.mxu0 0.0
        %929 = vmatprep.subr.mxu0 0.0
        %930 = vmatpush1.msra.mxu0 0.0
        %931 = vmatprep.subr.mxu0 0.0
        %932 = vmatpush1.msra.mxu0 0.0
        %933 = vmatprep.subr.mxu0 0.0
        %934 = vmatpush1.msra.mxu0 0.0
        %935 = vmatprep.subr.mxu0 0.0
        %936 = vmatpush1.msra.mxu0 0.0
        %937 = vmatprep.subr.mxu0 0.0
        %938 = vmatpush1.msra.mxu0 0.0
        %939 = vmatprep.subr.mxu0 0.0
        %940 = vmatpush1.msra.mxu0 0.0
        %941 = vmatprep.mubr.f32.mxu0 0.0
        %942 = vmatmul.mubr.f32.gmra.mrb[0].mxu0 %v780
        %v943 = vpop.f32.mrb[0].mxu0
        %v944 = vadd.f32 %v621, %v943
        %v945 = vpop.f32.mrb[0].mxu0
        %946 = vmatprep.mubr.f32.mxu0 0.0
        %947 = vmatmul.mubr.f32.gmra.mrb[0].mxu0 %v783
        %v948 = vpop.f32.mrb[0].mxu0
        %v949 = vadd.f32 %v626, %v948
        %v950 = vpop.f32.mrb[0].mxu0
        %951 = vmatprep.mubr.f32.mxu0 0.0
        %952 = vmatmul.mubr.f32.gmra.mrb[0].mxu0 %v786
        %v953 = vpop.f32.mrb[0].mxu0
        %v954 = vadd.f32 %v631, %v953
        %v955 = vpop.f32.mrb[0].mxu0
        %956 = vmatprep.mubr.f32.mxu0 0.0
        %957 = vmatmul.mubr.f32.gmra.mrb[0].mxu0 %v789
        %v958 = vpop.f32.mrb[0].mxu0
        %v959 = vadd.f32 %v636, %v958
        %v960 = vpop.f32.mrb[0].mxu0
        %961 = vmatprep.mubr.f32.mxu0 0.0
        %962 = vmatmul.mubr.f32.gmra.mrb[0].mxu0 %v792
        %v963 = vpop.f32.mrb[0].mxu0
        %v964 = vadd.f32 %v641, %v963
        %v965 = vpop.f32.mrb[0].mxu0
        %966 = vmatprep.mubr.f32.mxu0 0.0
        %967 = vmatmul.mubr.f32.gmra.mrb[0].mxu0 %v795
        %v968 = vpop.f32.mrb[0].mxu0
        %v969 = vadd.f32 %v646, %v968
        %v970 = vpop.f32.mrb[0].mxu0
        %971 = vmatprep.mubr.f32.mxu0 0.0
        %972 = vmatmul.mubr.f32.gmra.mrb[0].mxu0 %v798
        %v973 = vpop.f32.mrb[0].mxu0
        %v974 = vadd.f32 %v651, %v973
        %v975 = vpop.f32.mrb[0].mxu0
        %976 = vmatprep.mubr.f32.mxu0 0.0
        %977 = vmatmul.mubr.f32.gmra.mrb[0].mxu0 %v801
        %v978 = vpop.f32.mrb[0].mxu0
        %v979 = vadd.f32 %v656, %v978
        %v980 = vpop.f32.mrb[0].mxu0
        %981 = vmatprep.mubr.f32.mxu0 0.0
        %982 = vmatmul.mubr.f32.gmra.mrb[0].mxu0 %v804
        %v983 = vpop.f32.mrb[0].mxu0
        %v984 = vadd.f32 %v661, %v983
        %v985 = vpop.f32.mrb[0].mxu0
        %986 = vmatprep.mubr.f32.mxu0 0.0
        %987 = vmatmul.mubr.f32.gmra.mrb[0].mxu0 %v807
        %v988 = vpop.f32.mrb[0].mxu0
        %v989 = vadd.f32 %v666, %v988
        %v990 = vpop.f32.mrb[0].mxu0
        %991 = vmatprep.mubr.f32.mxu0 0.0
        %992 = vmatmul.mubr.f32.gmra.mrb[0].mxu0 %v810
        %v993 = vpop.f32.mrb[0].mxu0
        %v994 = vadd.f32 %v671, %v993
        %v995 = vpop.f32.mrb[0].mxu0
        %996 = vmatprep.mubr.f32.mxu0 0.0
        %997 = vmatmul.mubr.f32.gmra.mrb[0].mxu0 %v813
        %v998 = vpop.f32.mrb[0].mxu0
        %v999 = vadd.f32 %v676, %v998
        %v1000 = vpop.f32.mrb[0].mxu0
        %1001 = vmatprep.mubr.f32.mxu0 0.0
        %1002 = vmatmul.mubr.f32.gmra.mrb[0].mxu0 %v816
        %v1003 = vpop.f32.mrb[0].mxu0
        %v1004 = vadd.f32 %v681, %v1003
        %v1005 = vpop.f32.mrb[0].mxu0
        %1006 = vmatprep.mubr.f32.mxu0 0.0
        %1007 = vmatmul.mubr.f32.gmra.mrb[0].mxu0 %v819
        %v1008 = vpop.f32.mrb[0].mxu0
        %v1009 = vadd.f32 %v686, %v1008
        %v1010 = vpop.f32.mrb[0].mxu0
        %1011 = vmatprep.mubr.f32.mxu0 0.0
        %1012 = vmatmul.mubr.f32.gmra.mrb[0].mxu0 %v822
        %v1013 = vpop.f32.mrb[0].mxu0
        %v1014 = vadd.f32 %v691, %v1013
        %v1015 = vpop.f32.mrb[0].mxu0
        %1016 = vmatprep.mubr.f32.mxu0 0.0
        %1017 = vmatmul.mubr.f32.gmra.mrb[0].mxu0 %v825
        %v1018 = vpop.f32.mrb[0].mxu0
        %v1019 = vadd.f32 %v696, %v1018
        %v1020 = vpop.f32.mrb[0].mxu0
        %1021 = vmatprep.mubr.f32.mxu0 0.0
        %1022 = vmatmul.mubr.f32.gmra.mrb[0].mxu0 %v828
        %v1023 = vpop.f32.mrb[0].mxu0
        %v1024 = vadd.f32 %v701, %v1023
        %v1025 = vpop.f32.mrb[0].mxu0
        %1026 = vmatprep.mubr.f32.mxu0 0.0
        %1027 = vmatmul.mubr.f32.gmra.mrb[0].mxu0 %v831
        %v1028 = vpop.f32.mrb[0].mxu0
        %v1029 = vadd.f32 %v706, %v1028
        %v1030 = vpop.f32.mrb[0].mxu0
        %1031 = vmatprep.mubr.f32.mxu0 0.0
        %1032 = vmatmul.mubr.f32.gmra.mrb[0].mxu0 %v834
        %v1033 = vpop.f32.mrb[0].mxu0
        %v1034 = vadd.f32 %v711, %v1033
        %v1035 = vpop.f32.mrb[0].mxu0
        %1036 = vmatprep.mubr.f32.mxu0 0.0
        %1037 = vmatmul.mubr.f32.gmra.mrb[0].mxu0 %v837
        %v1038 = vpop.f32.mrb[0].mxu0
        %v1039 = vadd.f32 %v716, %v1038
        %v1040 = vpop.f32.mrb[0].mxu0
        %1041 = vmatprep.mubr.f32.mxu0 0.0
        %1042 = vmatmul.mubr.f32.gmra.mrb[0].mxu0 %v840
        %v1043 = vpop.f32.mrb[0].mxu0
        %v1044 = vadd.f32 %v721, %v1043
        %v1045 = vpop.f32.mrb[0].mxu0
        %1046 = vmatprep.mubr.f32.mxu0 0.0
        %1047 = vmatmul.mubr.f32.gmra.mrb[0].mxu0 %v843
        %v1048 = vpop.f32.mrb[0].mxu0
        %v1049 = vadd.f32 %v726, %v1048
        %v1050 = vpop.f32.mrb[0].mxu0
        %1051 = vmatprep.mubr.f32.mxu0 0.0
        %1052 = vmatmul.mubr.f32.gmra.mrb[0].mxu0 %v846
        %v1053 = vpop.f32.mrb[0].mxu0
        %v1054 = vadd.f32 %v731, %v1053
        %v1055 = vpop.f32.mrb[0].mxu0
        %1056 = vmatprep.mubr.f32.mxu0 0.0
        %1057 = vmatmul.mubr.f32.gmra.mrb[0].mxu0 %v849
        %v1058 = vpop.f32.mrb[0].mxu0
        %v1059 = vadd.f32 %v736, %v1058
        %v1060 = vpop.f32.mrb[0].mxu0
        %1061 = vmatprep.mubr.f32.mxu0 0.0
        %1062 = vmatmul.mubr.f32.gmra.mrb[0].mxu0 %v852
        %v1063 = vpop.f32.mrb[0].mxu0
        %v1064 = vadd.f32 %v741, %v1063
        %v1065 = vpop.f32.mrb[0].mxu0
        %1066 = vmatprep.mubr.f32.mxu0 0.0
        %1067 = vmatmul.mubr.f32.gmra.mrb[0].mxu0 %v855
        %v1068 = vpop.f32.mrb[0].mxu0
        %v1069 = vadd.f32 %v746, %v1068
        %v1070 = vpop.f32.mrb[0].mxu0
        %1071 = vmatprep.mubr.f32.mxu0 0.0
        %1072 = vmatmul.mubr.f32.gmra.mrb[0].mxu0 %v858
        %v1073 = vpop.f32.mrb[0].mxu0
        %v1074 = vadd.f32 %v751, %v1073
        %v1075 = vpop.f32.mrb[0].mxu0
        %1076 = vmatprep.mubr.f32.mxu0 0.0
        %1077 = vmatmul.mubr.f32.gmra.mrb[0].mxu0 %v861
        %v1078 = vpop.f32.mrb[0].mxu0
        %v1079 = vadd.f32 %v756, %v1078
        %v1080 = vpop.f32.mrb[0].mxu0
        %1081 = vmatprep.mubr.f32.mxu0 0.0
        %1082 = vmatmul.mubr.f32.gmra.mrb[0].mxu0 %v864
        %v1083 = vpop.f32.mrb[0].mxu0
        %v1084 = vadd.f32 %v761, %v1083
        %v1085 = vpop.f32.mrb[0].mxu0
        %1086 = vmatprep.mubr.f32.mxu0 0.0
        %1087 = vmatmul.mubr.f32.gmra.mrb[0].mxu0 %v867
        %v1088 = vpop.f32.mrb[0].mxu0
        %v1089 = vadd.f32 %v766, %v1088
        %v1090 = vpop.f32.mrb[0].mxu0
        %1091 = vmatprep.mubr.f32.mxu0 0.0
        %1092 = vmatmul.mubr.f32.gmra.mrb[0].mxu0 %v870
        %v1093 = vpop.f32.mrb[0].mxu0
        %v1094 = vadd.f32 %v771, %v1093
        %v1095 = vpop.f32.mrb[0].mxu0
        %1096 = vmatprep.mubr.f32.mxu0 0.0
        %1097 = vmatmul.mubr.f32.gmra.mrb[0].mxu0 %v873
        %v1098 = vpop.f32.mrb[0].mxu0
        %v1099 = vadd.f32 %v776, %v1098
        %v1100 = vpop.f32.mrb[0].mxu0
        %1101 = vdwg.mxu0
        %v1102 = vld [vmem:[#allocation2 + $0x2] sm:$0xff]
        %v1103 = vld [vmem:[#allocation2 + $0xa] sm:$0xff]
        %v1104 = vld [vmem:[#allocation2 + $0x1a] sm:$0xff]
        %v1105 = vld [vmem:[#allocation2 + $0x22] sm:$0xff]
        %v1106 = vld [vmem:[#allocation2 + $0x32] sm:$0xff]
        %v1107 = vld [vmem:[#allocation2 + $0x3a] sm:$0xff]
        %v1108 = vld [vmem:[#allocation2 + $0x4a] sm:$0xff]
        %v1109 = vld [vmem:[#allocation2 + $0x52] sm:$0xff]
        %v1110 = vld [vmem:[#allocation2 + $0x62] sm:$0xff]
        %v1111 = vld [vmem:[#allocation2 + $0x6a] sm:$0xff]
        %v1112 = vld [vmem:[#allocation2 + $0x7a] sm:$0xff]
        %v1113 = vld [vmem:[#allocation2 + $0x82] sm:$0xff]
        %v1114 = vld [vmem:[#allocation2 + $0x92] sm:$0xff]
        %v1115 = vld [vmem:[#allocation2 + $0x9a] sm:$0xff]
        %v1116 = vld [vmem:[#allocation2 + $0xaa] sm:$0xff]
        %v1117 = vld [vmem:[#allocation2 + $0xb2] sm:$0xff]
        %v1118 = vld [vmem:[#allocation2 + $0xc2] sm:$0xff]
        %v1119 = vld [vmem:[#allocation2 + $0xca] sm:$0xff]
        %v1120 = vld [vmem:[#allocation2 + $0xda] sm:$0xff]
        %v1121 = vld [vmem:[#allocation2 + $0xe2] sm:$0xff]
        %v1122 = vld [vmem:[#allocation2 + $0xf2] sm:$0xff]
        %v1123 = vld [vmem:[#allocation2 + $0xfa] sm:$0xff]
        %v1124 = vld [vmem:[#allocation2 + $0x10a] sm:$0xff]
        %v1125 = vld [vmem:[#allocation2 + $0x112] sm:$0xff]
        %v1126 = vld [vmem:[#allocation2 + $0x122] sm:$0xff]
        %v1127 = vld [vmem:[#allocation2 + $0x12a] sm:$0xff]
        %v1128 = vld [vmem:[#allocation2 + $0x13a] sm:$0xff]
        %v1129 = vld [vmem:[#allocation2 + $0x142] sm:$0xff]
        %v1130 = vld [vmem:[#allocation2 + $0x152] sm:$0xff]
        %v1131 = vld [vmem:[#allocation2 + $0x15a] sm:$0xff]
        %v1132 = vld [vmem:[#allocation2 + $0x16a] sm:$0xff]
        %v1133 = vld [vmem:[#allocation2 + $0x172] sm:$0xff]
        %v1135 = vsel %vm295, %v1102, 0
        %v1138 = vsel %vm295, %v1103, 0
        %v1141 = vsel %vm295, %v1104, 0
        %v1144 = vsel %vm295, %v1105, 0
        %v1147 = vsel %vm295, %v1106, 0
        %v1150 = vsel %vm295, %v1107, 0
        %v1153 = vsel %vm295, %v1108, 0
        %v1156 = vsel %vm295, %v1109, 0
        %v1159 = vsel %vm295, %v1110, 0
        %v1162 = vsel %vm295, %v1111, 0
        %v1165 = vsel %vm295, %v1112, 0
        %v1168 = vsel %vm295, %v1113, 0
        %v1171 = vsel %vm295, %v1114, 0
        %v1174 = vsel %vm295, %v1115, 0
        %v1177 = vsel %vm295, %v1116, 0
        %v1180 = vsel %vm295, %v1117, 0
        %v1183 = vsel %vm295, %v1118, 0
        %v1186 = vsel %vm295, %v1119, 0
        %v1189 = vsel %vm295, %v1120, 0
        %v1192 = vsel %vm295, %v1121, 0
        %v1195 = vsel %vm295, %v1122, 0
        %v1198 = vsel %vm295, %v1123, 0
        %v1201 = vsel %vm295, %v1124, 0
        %v1204 = vsel %vm295, %v1125, 0
        %v1207 = vsel %vm295, %v1126, 0
        %v1210 = vsel %vm295, %v1127, 0
        %v1213 = vsel %vm295, %v1128, 0
        %v1216 = vsel %vm295, %v1129, 0
        %v1219 = vsel %vm295, %v1130, 0
        %v1222 = vsel %vm295, %v1131, 0
        %v1225 = vsel %vm295, %v1132, 0
        %v1228 = vsel %vm295, %v1133, 0
        %v1231 = vsel %vm551, %v385, 0
        %1233 = vmatprep.subr.mxu0 0.0
        %1234 = vmatpush1.msra.mxu0 %v1231
        %1235 = vmatprep.subr.mxu0 0.0
        %1236 = vmatpush1.msra.mxu0 0.0
        %1237 = vmatprep.subr.mxu0 0.0
        %1238 = vmatpush1.msra.mxu0 0.0
        %1239 = vmatprep.subr.mxu0 0.0
        %1240 = vmatpush1.msra.mxu0 0.0
        %1241 = vmatprep.subr.mxu0 0.0
        %1242 = vmatpush1.msra.mxu0 0.0
        %1243 = vmatprep.subr.mxu0 0.0
        %1244 = vmatpush1.msra.mxu0 0.0
        %1245 = vmatprep.subr.mxu0 0.0
        %1246 = vmatpush1.msra.mxu0 0.0
        %1247 = vmatprep.subr.mxu0 0.0
        %1248 = vmatpush1.msra.mxu0 0.0
        %1249 = vmatprep.subr.mxu0 0.0
        %1250 = vmatpush1.msra.mxu0 0.0
        %1251 = vmatprep.subr.mxu0 0.0
        %1252 = vmatpush1.msra.mxu0 0.0
        %1253 = vmatprep.subr.mxu0 0.0
        %1254 = vmatpush1.msra.mxu0 0.0
        %1255 = vmatprep.subr.mxu0 0.0
        %1256 = vmatpush1.msra.mxu0 0.0
        %1257 = vmatprep.subr.mxu0 0.0
        %1258 = vmatpush1.msra.mxu0 0.0
        %1259 = vmatprep.subr.mxu0 0.0
        %1260 = vmatpush1.msra.mxu0 0.0
        %1261 = vmatprep.subr.mxu0 0.0
        %1262 = vmatpush1.msra.mxu0 0.0
        %1263 = vmatprep.subr.mxu0 0.0
        %1264 = vmatpush1.msra.mxu0 0.0
        %1265 = vmatprep.subr.mxu0 0.0
        %1266 = vmatpush1.msra.mxu0 0.0
        %1267 = vmatprep.subr.mxu0 0.0
        %1268 = vmatpush1.msra.mxu0 0.0
        %1269 = vmatprep.subr.mxu0 0.0
        %1270 = vmatpush1.msra.mxu0 0.0
        %1271 = vmatprep.subr.mxu0 0.0
        %1272 = vmatpush1.msra.mxu0 0.0
        %1273 = vmatprep.subr.mxu0 0.0
        %1274 = vmatpush1.msra.mxu0 0.0
        %1275 = vmatprep.subr.mxu0 0.0
        %1276 = vmatpush1.msra.mxu0 0.0
        %1277 = vmatprep.subr.mxu0 0.0
        %1278 = vmatpush1.msra.mxu0 0.0
        %1279 = vmatprep.subr.mxu0 0.0
        %1280 = vmatpush1.msra.mxu0 0.0
        %1281 = vmatprep.subr.mxu0 0.0
        %1282 = vmatpush1.msra.mxu0 0.0
        %1283 = vmatprep.subr.mxu0 0.0
        %1284 = vmatpush1.msra.mxu0 0.0
        %1285 = vmatprep.subr.mxu0 0.0
        %1286 = vmatpush1.msra.mxu0 0.0
        %1287 = vmatprep.subr.mxu0 0.0
        %1288 = vmatpush1.msra.mxu0 0.0
        %1289 = vmatprep.subr.mxu0 0.0
        %1290 = vmatpush1.msra.mxu0 0.0
        %1291 = vmatprep.subr.mxu0 0.0
        %1292 = vmatpush1.msra.mxu0 0.0
        %1293 = vmatprep.subr.mxu0 0.0
        %1294 = vmatpush1.msra.mxu0 0.0
        %1295 = vmatprep.subr.mxu0 0.0
        %1296 = vmatpush1.msra.mxu0 0.0
        %1297 = vmatprep.mubr.f32.mxu0 0.0
        %1298 = vmatmul.mubr.f32.gmra.mrb[0].mxu0 %v1135
        %v1299 = vpop.f32.mrb[0].mxu0
        %v1300 = vadd.f32 0.0, %v1299
        %v1301 = vpop.f32.mrb[0].mxu0
        %1302 = vmatprep.mubr.f32.mxu0 0.0
        %1303 = vmatmul.mubr.f32.gmra.mrb[0].mxu0 %v1138
        %v1304 = vpop.f32.mrb[0].mxu0
        %v1305 = vadd.f32 0.0, %v1304
        %v1306 = vpop.f32.mrb[0].mxu0
        %1307 = vmatprep.mubr.f32.mxu0 0.0
        %1308 = vmatmul.mubr.f32.gmra.mrb[0].mxu0 %v1141
        %v1309 = vpop.f32.mrb[0].mxu0
        %v1310 = vadd.f32 0.0, %v1309
        %v1311 = vpop.f32.mrb[0].mxu0
        %1312 = vmatprep.mubr.f32.mxu0 0.0
        %1313 = vmatmul.mubr.f32.gmra.mrb[0].mxu0 %v1144
        %v1314 = vpop.f32.mrb[0].mxu0
        %v1315 = vadd.f32 0.0, %v1314
        %v1316 = vpop.f32.mrb[0].mxu0
        %1317 = vmatprep.mubr.f32.mxu0 0.0
        %1318 = vmatmul.mubr.f32.gmra.mrb[0].mxu0 %v1147
        %v1319 = vpop.f32.mrb[0].mxu0
        %v1320 = vadd.f32 0.0, %v1319
        %v1321 = vpop.f32.mrb[0].mxu0
        %1322 = vmatprep.mubr.f32.mxu0 0.0
        %1323 = vmatmul.mubr.f32.gmra.mrb[0].mxu0 %v1150
        %v1324 = vpop.f32.mrb[0].mxu0
        %v1325 = vadd.f32 0.0, %v1324
        %v1326 = vpop.f32.mrb[0].mxu0
        %1327 = vmatprep.mubr.f32.mxu0 0.0
        %1328 = vmatmul.mubr.f32.gmra.mrb[0].mxu0 %v1153
        %v1329 = vpop.f32.mrb[0].mxu0
        %v1330 = vadd.f32 0.0, %v1329
        %v1331 = vpop.f32.mrb[0].mxu0
        %1332 = vmatprep.mubr.f32.mxu0 0.0
        %1333 = vmatmul.mubr.f32.gmra.mrb[0].mxu0 %v1156
        %v1334 = vpop.f32.mrb[0].mxu0
        %v1335 = vadd.f32 0.0, %v1334
        %v1336 = vpop.f32.mrb[0].mxu0
        %1337 = vmatprep.mubr.f32.mxu0 0.0
        %1338 = vmatmul.mubr.f32.gmra.mrb[0].mxu0 %v1159
        %v1339 = vpop.f32.mrb[0].mxu0
        %v1340 = vadd.f32 0.0, %v1339
        %v1341 = vpop.f32.mrb[0].mxu0
        %1342 = vmatprep.mubr.f32.mxu0 0.0
        %1343 = vmatmul.mubr.f32.gmra.mrb[0].mxu0 %v1162
        %v1344 = vpop.f32.mrb[0].mxu0
        %v1345 = vadd.f32 0.0, %v1344
        %v1346 = vpop.f32.mrb[0].mxu0
        %1347 = vmatprep.mubr.f32.mxu0 0.0
        %1348 = vmatmul.mubr.f32.gmra.mrb[0].mxu0 %v1165
        %v1349 = vpop.f32.mrb[0].mxu0
        %v1350 = vadd.f32 0.0, %v1349
        %v1351 = vpop.f32.mrb[0].mxu0
        %1352 = vmatprep.mubr.f32.mxu0 0.0
        %1353 = vmatmul.mubr.f32.gmra.mrb[0].mxu0 %v1168
        %v1354 = vpop.f32.mrb[0].mxu0
        %v1355 = vadd.f32 0.0, %v1354
        %v1356 = vpop.f32.mrb[0].mxu0
        %1357 = vmatprep.mubr.f32.mxu0 0.0
        %1358 = vmatmul.mubr.f32.gmra.mrb[0].mxu0 %v1171
        %v1359 = vpop.f32.mrb[0].mxu0
        %v1360 = vadd.f32 0.0, %v1359
        %v1361 = vpop.f32.mrb[0].mxu0
        %1362 = vmatprep.mubr.f32.mxu0 0.0
        %1363 = vmatmul.mubr.f32.gmra.mrb[0].mxu0 %v1174
        %v1364 = vpop.f32.mrb[0].mxu0
        %v1365 = vadd.f32 0.0, %v1364
        %v1366 = vpop.f32.mrb[0].mxu0
        %1367 = vmatprep.mubr.f32.mxu0 0.0
        %1368 = vmatmul.mubr.f32.gmra.mrb[0].mxu0 %v1177
        %v1369 = vpop.f32.mrb[0].mxu0
        %v1370 = vadd.f32 0.0, %v1369
        %v1371 = vpop.f32.mrb[0].mxu0
        %1372 = vmatprep.mubr.f32.mxu0 0.0
        %1373 = vmatmul.mubr.f32.gmra.mrb[0].mxu0 %v1180
        %v1374 = vpop.f32.mrb[0].mxu0
        %v1375 = vadd.f32 0.0, %v1374
        %v1376 = vpop.f32.mrb[0].mxu0
        %1377 = vmatprep.mubr.f32.mxu0 0.0
        %1378 = vmatmul.mubr.f32.gmra.mrb[0].mxu0 %v1183
        %v1379 = vpop.f32.mrb[0].mxu0
        %v1380 = vadd.f32 0.0, %v1379
        %v1381 = vpop.f32.mrb[0].mxu0
        %1382 = vmatprep.mubr.f32.mxu0 0.0
        %1383 = vmatmul.mubr.f32.gmra.mrb[0].mxu0 %v1186
        %v1384 = vpop.f32.mrb[0].mxu0
        %v1385 = vadd.f32 0.0, %v1384
        %v1386 = vpop.f32.mrb[0].mxu0
        %1387 = vmatprep.mubr.f32.mxu0 0.0
        %1388 = vmatmul.mubr.f32.gmra.mrb[0].mxu0 %v1189
        %v1389 = vpop.f32.mrb[0].mxu0
        %v1390 = vadd.f32 0.0, %v1389
        %v1391 = vpop.f32.mrb[0].mxu0
        %1392 = vmatprep.mubr.f32.mxu0 0.0
        %1393 = vmatmul.mubr.f32.gmra.mrb[0].mxu0 %v1192
        %v1394 = vpop.f32.mrb[0].mxu0
        %v1395 = vadd.f32 0.0, %v1394
        %v1396 = vpop.f32.mrb[0].mxu0
        %1397 = vmatprep.mubr.f32.mxu0 0.0
        %1398 = vmatmul.mubr.f32.gmra.mrb[0].mxu0 %v1195
        %v1399 = vpop.f32.mrb[0].mxu0
        %v1400 = vadd.f32 0.0, %v1399
        %v1401 = vpop.f32.mrb[0].mxu0
        %1402 = vmatprep.mubr.f32.mxu0 0.0
        %1403 = vmatmul.mubr.f32.gmra.mrb[0].mxu0 %v1198
        %v1404 = vpop.f32.mrb[0].mxu0
        %v1405 = vadd.f32 0.0, %v1404
        %v1406 = vpop.f32.mrb[0].mxu0
        %1407 = vmatprep.mubr.f32.mxu0 0.0
        %1408 = vmatmul.mubr.f32.gmra.mrb[0].mxu0 %v1201
        %v1409 = vpop.f32.mrb[0].mxu0
        %v1410 = vadd.f32 0.0, %v1409
        %v1411 = vpop.f32.mrb[0].mxu0
        %1412 = vmatprep.mubr.f32.mxu0 0.0
        %1413 = vmatmul.mubr.f32.gmra.mrb[0].mxu0 %v1204
        %v1414 = vpop.f32.mrb[0].mxu0
        %v1415 = vadd.f32 0.0, %v1414
        %v1416 = vpop.f32.mrb[0].mxu0
        %1417 = vmatprep.mubr.f32.mxu0 0.0
        %1418 = vmatmul.mubr.f32.gmra.mrb[0].mxu0 %v1207
        %v1419 = vpop.f32.mrb[0].mxu0
        %v1420 = vadd.f32 0.0, %v1419
        %v1421 = vpop.f32.mrb[0].mxu0
        %1422 = vmatprep.mubr.f32.mxu0 0.0
        %1423 = vmatmul.mubr.f32.gmra.mrb[0].mxu0 %v1210
        %v1424 = vpop.f32.mrb[0].mxu0
        %v1425 = vadd.f32 0.0, %v1424
        %v1426 = vpop.f32.mrb[0].mxu0
        %1427 = vmatprep.mubr.f32.mxu0 0.0
        %1428 = vmatmul.mubr.f32.gmra.mrb[0].mxu0 %v1213
        %v1429 = vpop.f32.mrb[0].mxu0
        %v1430 = vadd.f32 0.0, %v1429
        %v1431 = vpop.f32.mrb[0].mxu0
        %1432 = vmatprep.mubr.f32.mxu0 0.0
        %1433 = vmatmul.mubr.f32.gmra.mrb[0].mxu0 %v1216
        %v1434 = vpop.f32.mrb[0].mxu0
        %v1435 = vadd.f32 0.0, %v1434
        %v1436 = vpop.f32.mrb[0].mxu0
        %1437 = vmatprep.mubr.f32.mxu0 0.0
        %1438 = vmatmul.mubr.f32.gmra.mrb[0].mxu0 %v1219
        %v1439 = vpop.f32.mrb[0].mxu0
        %v1440 = vadd.f32 0.0, %v1439
        %v1441 = vpop.f32.mrb[0].mxu0
        %1442 = vmatprep.mubr.f32.mxu0 0.0
        %1443 = vmatmul.mubr.f32.gmra.mrb[0].mxu0 %v1222
        %v1444 = vpop.f32.mrb[0].mxu0
        %v1445 = vadd.f32 0.0, %v1444
        %v1446 = vpop.f32.mrb[0].mxu0
        %1447 = vmatprep.mubr.f32.mxu0 0.0
        %1448 = vmatmul.mubr.f32.gmra.mrb[0].mxu0 %v1225
        %v1449 = vpop.f32.mrb[0].mxu0
        %v1450 = vadd.f32 0.0, %v1449
        %v1451 = vpop.f32.mrb[0].mxu0
        %1452 = vmatprep.mubr.f32.mxu0 0.0
        %1453 = vmatmul.mubr.f32.gmra.mrb[0].mxu0 %v1228
        %v1454 = vpop.f32.mrb[0].mxu0
        %v1455 = vadd.f32 0.0, %v1454
        %v1456 = vpop.f32.mrb[0].mxu0
        %1457 = vdwg.mxu0
        %v1458 = vadd.f32 %v944, %v1300
        %v1459 = vadd.f32 %v949, %v1305
        %v1460 = vadd.f32 %v954, %v1310
        %v1461 = vadd.f32 %v959, %v1315
        %v1462 = vadd.f32 %v964, %v1320
        %v1463 = vadd.f32 %v969, %v1325
        %v1464 = vadd.f32 %v974, %v1330
        %v1465 = vadd.f32 %v979, %v1335
        %v1466 = vadd.f32 %v984, %v1340
        %v1467 = vadd.f32 %v989, %v1345
        %v1468 = vadd.f32 %v994, %v1350
        %v1469 = vadd.f32 %v999, %v1355
        %v1470 = vadd.f32 %v1004, %v1360
        %v1471 = vadd.f32 %v1009, %v1365
        %v1472 = vadd.f32 %v1014, %v1370
        %v1473 = vadd.f32 %v1019, %v1375
        %v1474 = vadd.f32 %v1024, %v1380
        %v1475 = vadd.f32 %v1029, %v1385
        %v1476 = vadd.f32 %v1034, %v1390
        %v1477 = vadd.f32 %v1039, %v1395
        %v1478 = vadd.f32 %v1044, %v1400
        %v1479 = vadd.f32 %v1049, %v1405
        %v1480 = vadd.f32 %v1054, %v1410
        %v1481 = vadd.f32 %v1059, %v1415
        %v1482 = vadd.f32 %v1064, %v1420
        %v1483 = vadd.f32 %v1069, %v1425
        %v1484 = vadd.f32 %v1074, %v1430
        %v1485 = vadd.f32 %v1079, %v1435
        %v1486 = vadd.f32 %v1084, %v1440
        %v1487 = vadd.f32 %v1089, %v1445
        %v1488 = vadd.f32 %v1094, %v1450
        %v1489 = vadd.f32 %v1099, %v1455
        %v1490 = vld [vmem:[%s351] sm:$0xff]
        %v1491 = vld [vmem:[%s351 + $0x8] sm:$0xff]
        %v1492 = vld [vmem:[%s351 + $0x18] sm:$0xff]
        %v1493 = vld [vmem:[%s351 + $0x20] sm:$0xff]
        %v1494 = vld [vmem:[%s351 + $0x30] sm:$0xff]
        %v1495 = vld [vmem:[%s351 + $0x38] sm:$0xff]
        %v1496 = vld [vmem:[%s351 + $0x48] sm:$0xff]
        %v1497 = vld [vmem:[%s351 + $0x50] sm:$0xff]
        %v1498 = vld [vmem:[%s351 + $0x60] sm:$0xff]
        %v1499 = vld [vmem:[%s351 + $0x68] sm:$0xff]
        %v1500 = vld [vmem:[%s351 + $0x78] sm:$0xff]
        %v1501 = vld [vmem:[%s351 + $0x80] sm:$0xff]
        %v1502 = vld [vmem:[%s351 + $0x90] sm:$0xff]
        %v1503 = vld [vmem:[%s351 + $0x98] sm:$0xff]
        %v1504 = vld [vmem:[%s351 + $0xa8] sm:$0xff]
        %v1505 = vld [vmem:[%s351 + $0xb0] sm:$0xff]
        %v1506 = vld [vmem:[%s351 + $0xc0] sm:$0xff]
        %v1507 = vld [vmem:[%s351 + $0xc8] sm:$0xff]
        %v1508 = vld [vmem:[%s351 + $0xd8] sm:$0xff]
        %v1509 = vld [vmem:[%s351 + $0xe0] sm:$0xff]
        %v1510 = vld [vmem:[%s351 + $0xf0] sm:$0xff]
        %v1511 = vld [vmem:[%s351 + $0xf8] sm:$0xff]
        %v1512 = vld [vmem:[%s351 + $0x108] sm:$0xff]
        %v1513 = vld [vmem:[%s351 + $0x110] sm:$0xff]
        %v1514 = vld [vmem:[%s351 + $0x120] sm:$0xff]
        %v1515 = vld [vmem:[%s351 + $0x128] sm:$0xff]
        %v1516 = vld [vmem:[%s351 + $0x138] sm:$0xff]
        %v1517 = vld [vmem:[%s351 + $0x140] sm:$0xff]
        %v1518 = vld [vmem:[%s351 + $0x150] sm:$0xff]
        %v1519 = vld [vmem:[%s351 + $0x158] sm:$0xff]
        %v1520 = vld [vmem:[%s351 + $0x168] sm:$0xff]
        %v1521 = vld [vmem:[%s351 + $0x170] sm:$0xff]
        %v1522 = vrot.slane %v385, 4
        %v1524 = vsel %vm295, %v1490, 0
        %v1527 = vsel %vm295, %v1491, 0
        %v1530 = vsel %vm295, %v1492, 0
        %v1533 = vsel %vm295, %v1493, 0
        %v1536 = vsel %vm295, %v1494, 0
        %v1539 = vsel %vm295, %v1495, 0
        %v1542 = vsel %vm295, %v1496, 0
        %v1545 = vsel %vm295, %v1497, 0
        %v1548 = vsel %vm295, %v1498, 0
        %v1551 = vsel %vm295, %v1499, 0
        %v1554 = vsel %vm295, %v1500, 0
        %v1557 = vsel %vm295, %v1501, 0
        %v1560 = vsel %vm295, %v1502, 0
        %v1563 = vsel %vm295, %v1503, 0
        %v1566 = vsel %vm295, %v1504, 0
        %v1569 = vsel %vm295, %v1505, 0
        %v1572 = vsel %vm295, %v1506, 0
        %v1575 = vsel %vm295, %v1507, 0
        %v1578 = vsel %vm295, %v1508, 0
        %v1581 = vsel %vm295, %v1509, 0
        %v1584 = vsel %vm295, %v1510, 0
        %v1587 = vsel %vm295, %v1511, 0
        %v1590 = vsel %vm295, %v1512, 0
        %v1593 = vsel %vm295, %v1513, 0
        %v1596 = vsel %vm295, %v1514, 0
        %v1599 = vsel %vm295, %v1515, 0
        %v1602 = vsel %vm295, %v1516, 0
        %v1605 = vsel %vm295, %v1517, 0
        %v1608 = vsel %vm295, %v1518, 0
        %v1611 = vsel %vm295, %v1519, 0
        %v1614 = vsel %vm295, %v1520, 0
        %v1617 = vsel %vm295, %v1521, 0
        %v1619 = vsel %vm551, %v1522, 0
        %1621 = vmatprep.subr.mxu0 0.0
        %1622 = vmatpush1.msra.mxu0 %v1619
        %1623 = vmatprep.subr.mxu0 0.0
        %1624 = vmatpush1.msra.mxu0 0.0
        %1625 = vmatprep.subr.mxu0 0.0
        %1626 = vmatpush1.msra.mxu0 0.0
        %1627 = vmatprep.subr.mxu0 0.0
        %1628 = vmatpush1.msra.mxu0 0.0
        %1629 = vmatprep.subr.mxu0 0.0
        %1630 = vmatpush1.msra.mxu0 0.0
        %1631 = vmatprep.subr.mxu0 0.0
        %1632 = vmatpush1.msra.mxu0 0.0
        %1633 = vmatprep.subr.mxu0 0.0
        %1634 = vmatpush1.msra.mxu0 0.0
        %1635 = vmatprep.subr.mxu0 0.0
        %1636 = vmatpush1.msra.mxu0 0.0
        %1637 = vmatprep.subr.mxu0 0.0
        %1638 = vmatpush1.msra.mxu0 0.0
        %1639 = vmatprep.subr.mxu0 0.0
        %1640 = vmatpush1.msra.mxu0 0.0
        %1641 = vmatprep.subr.mxu0 0.0
        %1642 = vmatpush1.msra.mxu0 0.0
        %1643 = vmatprep.subr.mxu0 0.0
        %1644 = vmatpush1.msra.mxu0 0.0
        %1645 = vmatprep.subr.mxu0 0.0
        %1646 = vmatpush1.msra.mxu0 0.0
        %1647 = vmatprep.subr.mxu0 0.0
        %1648 = vmatpush1.msra.mxu0 0.0
        %1649 = vmatprep.subr.mxu0 0.0
        %1650 = vmatpush1.msra.mxu0 0.0
        %1651 = vmatprep.subr.mxu0 0.0
        %1652 = vmatpush1.msra.mxu0 0.0
        %1653 = vmatprep.subr.mxu0 0.0
        %1654 = vmatpush1.msra.mxu0 0.0
        %1655 = vmatprep.subr.mxu0 0.0
        %1656 = vmatpush1.msra.mxu0 0.0
        %1657 = vmatprep.subr.mxu0 0.0
        %1658 = vmatpush1.msra.mxu0 0.0
        %1659 = vmatprep.subr.mxu0 0.0
        %1660 = vmatpush1.msra.mxu0 0.0
        %1661 = vmatprep.subr.mxu0 0.0
        %1662 = vmatpush1.msra.mxu0 0.0
        %1663 = vmatprep.subr.mxu0 0.0
        %1664 = vmatpush1.msra.mxu0 0.0
        %1665 = vmatprep.subr.mxu0 0.0
        %1666 = vmatpush1.msra.mxu0 0.0
        %1667 = vmatprep.subr.mxu0 0.0
        %1668 = vmatpush1.msra.mxu0 0.0
        %1669 = vmatprep.subr.mxu0 0.0
        %1670 = vmatpush1.msra.mxu0 0.0
        %1671 = vmatprep.subr.mxu0 0.0
        %1672 = vmatpush1.msra.mxu0 0.0
        %1673 = vmatprep.subr.mxu0 0.0
        %1674 = vmatpush1.msra.mxu0 0.0
        %1675 = vmatprep.subr.mxu0 0.0
        %1676 = vmatpush1.msra.mxu0 0.0
        %1677 = vmatprep.subr.mxu0 0.0
        %1678 = vmatpush1.msra.mxu0 0.0
        %1679 = vmatprep.subr.mxu0 0.0
        %1680 = vmatpush1.msra.mxu0 0.0
        %1681 = vmatprep.subr.mxu0 0.0
        %1682 = vmatpush1.msra.mxu0 0.0
        %1683 = vmatprep.subr.mxu0 0.0
        %1684 = vmatpush1.msra.mxu0 0.0
        %1685 = vmatprep.mubr.f32.mxu0 0.0
        %1686 = vmatmul.mubr.f32.gmra.mrb[0].mxu0 %v1524
        %v1687 = vpop.f32.mrb[0].mxu0
        %v1688 = vadd.f32 0.0, %v1687
        %v1689 = vpop.f32.mrb[0].mxu0
        %1690 = vmatprep.mubr.f32.mxu0 0.0
        %1691 = vmatmul.mubr.f32.gmra.mrb[0].mxu0 %v1527
        %v1692 = vpop.f32.mrb[0].mxu0
        %v1693 = vadd.f32 0.0, %v1692
        %v1694 = vpop.f32.mrb[0].mxu0
        %1695 = vmatprep.mubr.f32.mxu0 0.0
        %1696 = vmatmul.mubr.f32.gmra.mrb[0].mxu0 %v1530
        %v1697 = vpop.f32.mrb[0].mxu0
        %v1698 = vadd.f32 0.0, %v1697
        %v1699 = vpop.f32.mrb[0].mxu0
        %1700 = vmatprep.mubr.f32.mxu0 0.0
        %1701 = vmatmul.mubr.f32.gmra.mrb[0].mxu0 %v1533
        %v1702 = vpop.f32.mrb[0].mxu0
        %v1703 = vadd.f32 0.0, %v1702
        %v1704 = vpop.f32.mrb[0].mxu0
        %1705 = vmatprep.mubr.f32.mxu0 0.0
        %1706 = vmatmul.mubr.f32.gmra.mrb[0].mxu0 %v1536
        %v1707 = vpop.f32.mrb[0].mxu0
        %v1708 = vadd.f32 0.0, %v1707
        %v1709 = vpop.f32.mrb[0].mxu0
        %1710 = vmatprep.mubr.f32.mxu0 0.0
        %1711 = vmatmul.mubr.f32.gmra.mrb[0].mxu0 %v1539
        %v1712 = vpop.f32.mrb[0].mxu0
        %v1713 = vadd.f32 0.0, %v1712
        %v1714 = vpop.f32.mrb[0].mxu0
        %1715 = vmatprep.mubr.f32.mxu0 0.0
        %1716 = vmatmul.mubr.f32.gmra.mrb[0].mxu0 %v1542
        %v1717 = vpop.f32.mrb[0].mxu0
        %v1718 = vadd.f32 0.0, %v1717
        %v1719 = vpop.f32.mrb[0].mxu0
        %1720 = vmatprep.mubr.f32.mxu0 0.0
        %1721 = vmatmul.mubr.f32.gmra.mrb[0].mxu0 %v1545
        %v1722 = vpop.f32.mrb[0].mxu0
        %v1723 = vadd.f32 0.0, %v1722
        %v1724 = vpop.f32.mrb[0].mxu0
        %1725 = vmatprep.mubr.f32.mxu0 0.0
        %1726 = vmatmul.mubr.f32.gmra.mrb[0].mxu0 %v1548
        %v1727 = vpop.f32.mrb[0].mxu0
        %v1728 = vadd.f32 0.0, %v1727
        %v1729 = vpop.f32.mrb[0].mxu0
        %1730 = vmatprep.mubr.f32.mxu0 0.0
        %1731 = vmatmul.mubr.f32.gmra.mrb[0].mxu0 %v1551
        %v1732 = vpop.f32.mrb[0].mxu0
        %v1733 = vadd.f32 0.0, %v1732
        %v1734 = vpop.f32.mrb[0].mxu0
        %1735 = vmatprep.mubr.f32.mxu0 0.0
        %1736 = vmatmul.mubr.f32.gmra.mrb[0].mxu0 %v1554
        %v1737 = vpop.f32.mrb[0].mxu0
        %v1738 = vadd.f32 0.0, %v1737
        %v1739 = vpop.f32.mrb[0].mxu0
        %1740 = vmatprep.mubr.f32.mxu0 0.0
        %1741 = vmatmul.mubr.f32.gmra.mrb[0].mxu0 %v1557
        %v1742 = vpop.f32.mrb[0].mxu0
        %v1743 = vadd.f32 0.0, %v1742
        %v1744 = vpop.f32.mrb[0].mxu0
        %1745 = vmatprep.mubr.f32.mxu0 0.0
        %1746 = vmatmul.mubr.f32.gmra.mrb[0].mxu0 %v1560
        %v1747 = vpop.f32.mrb[0].mxu0
        %v1748 = vadd.f32 0.0, %v1747
        %v1749 = vpop.f32.mrb[0].mxu0
        %1750 = vmatprep.mubr.f32.mxu0 0.0
        %1751 = vmatmul.mubr.f32.gmra.mrb[0].mxu0 %v1563
        %v1752 = vpop.f32.mrb[0].mxu0
        %v1753 = vadd.f32 0.0, %v1752
        %v1754 = vpop.f32.mrb[0].mxu0
        %1755 = vmatprep.mubr.f32.mxu0 0.0
        %1756 = vmatmul.mubr.f32.gmra.mrb[0].mxu0 %v1566
        %v1757 = vpop.f32.mrb[0].mxu0
        %v1758 = vadd.f32 0.0, %v1757
        %v1759 = vpop.f32.mrb[0].mxu0
        %1760 = vmatprep.mubr.f32.mxu0 0.0
        %1761 = vmatmul.mubr.f32.gmra.mrb[0].mxu0 %v1569
        %v1762 = vpop.f32.mrb[0].mxu0
        %v1763 = vadd.f32 0.0, %v1762
        %v1764 = vpop.f32.mrb[0].mxu0
        %1765 = vmatprep.mubr.f32.mxu0 0.0
        %1766 = vmatmul.mubr.f32.gmra.mrb[0].mxu0 %v1572
        %v1767 = vpop.f32.mrb[0].mxu0
        %v1768 = vadd.f32 0.0, %v1767
        %v1769 = vpop.f32.mrb[0].mxu0
        %1770 = vmatprep.mubr.f32.mxu0 0.0
        %1771 = vmatmul.mubr.f32.gmra.mrb[0].mxu0 %v1575
        %v1772 = vpop.f32.mrb[0].mxu0
        %v1773 = vadd.f32 0.0, %v1772
        %v1774 = vpop.f32.mrb[0].mxu0
        %1775 = vmatprep.mubr.f32.mxu0 0.0
        %1776 = vmatmul.mubr.f32.gmra.mrb[0].mxu0 %v1578
        %v1777 = vpop.f32.mrb[0].mxu0
        %v1778 = vadd.f32 0.0, %v1777
        %v1779 = vpop.f32.mrb[0].mxu0
        %1780 = vmatprep.mubr.f32.mxu0 0.0
        %1781 = vmatmul.mubr.f32.gmra.mrb[0].mxu0 %v1581
        %v1782 = vpop.f32.mrb[0].mxu0
        %v1783 = vadd.f32 0.0, %v1782
        %v1784 = vpop.f32.mrb[0].mxu0
        %1785 = vmatprep.mubr.f32.mxu0 0.0
        %1786 = vmatmul.mubr.f32.gmra.mrb[0].mxu0 %v1584
        %v1787 = vpop.f32.mrb[0].mxu0
        %v1788 = vadd.f32 0.0, %v1787
        %v1789 = vpop.f32.mrb[0].mxu0
        %1790 = vmatprep.mubr.f32.mxu0 0.0
        %1791 = vmatmul.mubr.f32.gmra.mrb[0].mxu0 %v1587
        %v1792 = vpop.f32.mrb[0].mxu0
        %v1793 = vadd.f32 0.0, %v1792
        %v1794 = vpop.f32.mrb[0].mxu0
        %1795 = vmatprep.mubr.f32.mxu0 0.0
        %1796 = vmatmul.mubr.f32.gmra.mrb[0].mxu0 %v1590
        %v1797 = vpop.f32.mrb[0].mxu0
        %v1798 = vadd.f32 0.0, %v1797
        %v1799 = vpop.f32.mrb[0].mxu0
        %1800 = vmatprep.mubr.f32.mxu0 0.0
        %1801 = vmatmul.mubr.f32.gmra.mrb[0].mxu0 %v1593
        %v1802 = vpop.f32.mrb[0].mxu0
        %v1803 = vadd.f32 0.0, %v1802
        %v1804 = vpop.f32.mrb[0].mxu0
        %1805 = vmatprep.mubr.f32.mxu0 0.0
        %1806 = vmatmul.mubr.f32.gmra.mrb[0].mxu0 %v1596
        %v1807 = vpop.f32.mrb[0].mxu0
        %v1808 = vadd.f32 0.0, %v1807
        %v1809 = vpop.f32.mrb[0].mxu0
        %1810 = vmatprep.mubr.f32.mxu0 0.0
        %1811 = vmatmul.mubr.f32.gmra.mrb[0].mxu0 %v1599
        %v1812 = vpop.f32.mrb[0].mxu0
        %v1813 = vadd.f32 0.0, %v1812
        %v1814 = vpop.f32.mrb[0].mxu0
        %1815 = vmatprep.mubr.f32.mxu0 0.0
        %1816 = vmatmul.mubr.f32.gmra.mrb[0].mxu0 %v1602
        %v1817 = vpop.f32.mrb[0].mxu0
        %v1818 = vadd.f32 0.0, %v1817
        %v1819 = vpop.f32.mrb[0].mxu0
        %1820 = vmatprep.mubr.f32.mxu0 0.0
        %1821 = vmatmul.mubr.f32.gmra.mrb[0].mxu0 %v1605
        %v1822 = vpop.f32.mrb[0].mxu0
        %v1823 = vadd.f32 0.0, %v1822
        %v1824 = vpop.f32.mrb[0].mxu0
        %1825 = vmatprep.mubr.f32.mxu0 0.0
        %1826 = vmatmul.mubr.f32.gmra.mrb[0].mxu0 %v1608
        %v1827 = vpop.f32.mrb[0].mxu0
        %v1828 = vadd.f32 0.0, %v1827
        %v1829 = vpop.f32.mrb[0].mxu0
        %1830 = vmatprep.mubr.f32.mxu0 0.0
        %1831 = vmatmul.mubr.f32.gmra.mrb[0].mxu0 %v1611
        %v1832 = vpop.f32.mrb[0].mxu0
        %v1833 = vadd.f32 0.0, %v1832
        %v1834 = vpop.f32.mrb[0].mxu0
        %1835 = vmatprep.mubr.f32.mxu0 0.0
        %1836 = vmatmul.mubr.f32.gmra.mrb[0].mxu0 %v1614
        %v1837 = vpop.f32.mrb[0].mxu0
        %v1838 = vadd.f32 0.0, %v1837
        %v1839 = vpop.f32.mrb[0].mxu0
        %1840 = vmatprep.mubr.f32.mxu0 0.0
        %1841 = vmatmul.mubr.f32.gmra.mrb[0].mxu0 %v1617
        %v1842 = vpop.f32.mrb[0].mxu0
        %v1843 = vadd.f32 0.0, %v1842
        %v1844 = vpop.f32.mrb[0].mxu0
        %1845 = vdwg.mxu0
        %v1846 = vadd.f32 %v1458, %v1688
        %v1847 = vadd.f32 %v1459, %v1693
        %v1848 = vadd.f32 %v1460, %v1698
        %v1849 = vadd.f32 %v1461, %v1703
        %v1850 = vadd.f32 %v1462, %v1708
        %v1851 = vadd.f32 %v1463, %v1713
        %v1852 = vadd.f32 %v1464, %v1718
        %v1853 = vadd.f32 %v1465, %v1723
        %v1854 = vadd.f32 %v1466, %v1728
        %v1855 = vadd.f32 %v1467, %v1733
        %v1856 = vadd.f32 %v1468, %v1738
        %v1857 = vadd.f32 %v1469, %v1743
        %v1858 = vadd.f32 %v1470, %v1748
        %v1859 = vadd.f32 %v1471, %v1753
        %v1860 = vadd.f32 %v1472, %v1758
        %v1861 = vadd.f32 %v1473, %v1763
        %v1862 = vadd.f32 %v1474, %v1768
        %v1863 = vadd.f32 %v1475, %v1773
        %v1864 = vadd.f32 %v1476, %v1778
        %v1865 = vadd.f32 %v1477, %v1783
        %v1866 = vadd.f32 %v1478, %v1788
        %v1867 = vadd.f32 %v1479, %v1793
        %v1868 = vadd.f32 %v1480, %v1798
        %v1869 = vadd.f32 %v1481, %v1803
        %v1870 = vadd.f32 %v1482, %v1808
        %v1871 = vadd.f32 %v1483, %v1813
        %v1872 = vadd.f32 %v1484, %v1818
        %v1873 = vadd.f32 %v1485, %v1823
        %v1874 = vadd.f32 %v1486, %v1828
        %v1875 = vadd.f32 %v1487, %v1833
        %v1876 = vadd.f32 %v1488, %v1838
        %v1877 = vadd.f32 %v1489, %v1843
        %v1878 = vld [vmem:[%s351 + $0x1] sm:$0xff]
        %v1879 = vld [vmem:[%s351 + $0x9] sm:$0xff]
        %v1880 = vld [vmem:[%s351 + $0x19] sm:$0xff]
        %v1881 = vld [vmem:[%s351 + $0x21] sm:$0xff]
        %v1882 = vld [vmem:[%s351 + $0x31] sm:$0xff]
        %v1883 = vld [vmem:[%s351 + $0x39] sm:$0xff]
        %v1884 = vld [vmem:[%s351 + $0x49] sm:$0xff]
        %v1885 = vld [vmem:[%s351 + $0x51] sm:$0xff]
        %v1886 = vld [vmem:[%s351 + $0x61] sm:$0xff]
        %v1887 = vld [vmem:[%s351 + $0x69] sm:$0xff]
        %v1888 = vld [vmem:[%s351 + $0x79] sm:$0xff]
        %v1889 = vld [vmem:[%s351 + $0x81] sm:$0xff]
        %v1890 = vld [vmem:[%s351 + $0x91] sm:$0xff]
        %v1891 = vld [vmem:[%s351 + $0x99] sm:$0xff]
        %v1892 = vld [vmem:[%s351 + $0xa9] sm:$0xff]
        %v1893 = vld [vmem:[%s351 + $0xb1] sm:$0xff]
        %v1894 = vld [vmem:[%s351 + $0xc1] sm:$0xff]
        %v1895 = vld [vmem:[%s351 + $0xc9] sm:$0xff]
        %v1896 = vld [vmem:[%s351 + $0xd9] sm:$0xff]
        %v1897 = vld [vmem:[%s351 + $0xe1] sm:$0xff]
        %v1898 = vld [vmem:[%s351 + $0xf1] sm:$0xff]
        %v1899 = vld [vmem:[%s351 + $0xf9] sm:$0xff]
        %v1900 = vld [vmem:[%s351 + $0x109] sm:$0xff]
        %v1901 = vld [vmem:[%s351 + $0x111] sm:$0xff]
        %v1902 = vld [vmem:[%s351 + $0x121] sm:$0xff]
        %v1903 = vld [vmem:[%s351 + $0x129] sm:$0xff]
        %v1904 = vld [vmem:[%s351 + $0x139] sm:$0xff]
        %v1905 = vld [vmem:[%s351 + $0x141] sm:$0xff]
        %v1906 = vld [vmem:[%s351 + $0x151] sm:$0xff]
        %v1907 = vld [vmem:[%s351 + $0x159] sm:$0xff]
        %v1908 = vld [vmem:[%s351 + $0x169] sm:$0xff]
        %v1909 = vld [vmem:[%s351 + $0x171] sm:$0xff]
        %v1911 = vsel %vm295, %v1878, 0
        %v1914 = vsel %vm295, %v1879, 0
        %v1917 = vsel %vm295, %v1880, 0
        %v1920 = vsel %vm295, %v1881, 0
        %v1923 = vsel %vm295, %v1882, 0
        %v1926 = vsel %vm295, %v1883, 0
        %v1929 = vsel %vm295, %v1884, 0
        %v1932 = vsel %vm295, %v1885, 0
        %v1935 = vsel %vm295, %v1886, 0
        %v1938 = vsel %vm295, %v1887, 0
        %v1941 = vsel %vm295, %v1888, 0
        %v1944 = vsel %vm295, %v1889, 0
        %v1947 = vsel %vm295, %v1890, 0
        %v1950 = vsel %vm295, %v1891, 0
        %v1953 = vsel %vm295, %v1892, 0
        %v1956 = vsel %vm295, %v1893, 0
        %v1959 = vsel %vm295, %v1894, 0
        %v1962 = vsel %vm295, %v1895, 0
        %v1965 = vsel %vm295, %v1896, 0
        %v1968 = vsel %vm295, %v1897, 0
        %v1971 = vsel %vm295, %v1898, 0
        %v1974 = vsel %vm295, %v1899, 0
        %v1977 = vsel %vm295, %v1900, 0
        %v1980 = vsel %vm295, %v1901, 0
        %v1983 = vsel %vm295, %v1902, 0
        %v1986 = vsel %vm295, %v1903, 0
        %v1989 = vsel %vm295, %v1904, 0
        %v1992 = vsel %vm295, %v1905, 0
        %v1995 = vsel %vm295, %v1906, 0
        %v1998 = vsel %vm295, %v1907, 0
        %v2001 = vsel %vm295, %v1908, 0
        %v2004 = vsel %vm295, %v1909, 0
        %v2007 = vsel %vm551, %v386, 0
        %2009 = vmatprep.subr.mxu0 0.0
        %2010 = vmatpush1.msra.mxu0 %v2007
        %2011 = vmatprep.subr.mxu0 0.0
        %2012 = vmatpush1.msra.mxu0 0.0
        %2013 = vmatprep.subr.mxu0 0.0
        %2014 = vmatpush1.msra.mxu0 0.0
        %2015 = vmatprep.subr.mxu0 0.0
        %2016 = vmatpush1.msra.mxu0 0.0
        %2017 = vmatprep.subr.mxu0 0.0
        %2018 = vmatpush1.msra.mxu0 0.0
        %2019 = vmatprep.subr.mxu0 0.0
        %2020 = vmatpush1.msra.mxu0 0.0
        %2021 = vmatprep.subr.mxu0 0.0
        %2022 = vmatpush1.msra.mxu0 0.0
        %2023 = vmatprep.subr.mxu0 0.0
        %2024 = vmatpush1.msra.mxu0 0.0
        %2025 = vmatprep.subr.mxu0 0.0
        %2026 = vmatpush1.msra.mxu0 0.0
        %2027 = vmatprep.subr.mxu0 0.0
        %2028 = vmatpush1.msra.mxu0 0.0
        %2029 = vmatprep.subr.mxu0 0.0
        %2030 = vmatpush1.msra.mxu0 0.0
        %2031 = vmatprep.subr.mxu0 0.0
        %2032 = vmatpush1.msra.mxu0 0.0
        %2033 = vmatprep.subr.mxu0 0.0
        %2034 = vmatpush1.msra.mxu0 0.0
        %2035 = vmatprep.subr.mxu0 0.0
        %2036 = vmatpush1.msra.mxu0 0.0
        %2037 = vmatprep.subr.mxu0 0.0
        %2038 = vmatpush1.msra.mxu0 0.0
        %2039 = vmatprep.subr.mxu0 0.0
        %2040 = vmatpush1.msra.mxu0 0.0
        %2041 = vmatprep.subr.mxu0 0.0
        %2042 = vmatpush1.msra.mxu0 0.0
        %2043 = vmatprep.subr.mxu0 0.0
        %2044 = vmatpush1.msra.mxu0 0.0
        %2045 = vmatprep.subr.mxu0 0.0
        %2046 = vmatpush1.msra.mxu0 0.0
        %2047 = vmatprep.subr.mxu0 0.0
        %2048 = vmatpush1.msra.mxu0 0.0
        %2049 = vmatprep.subr.mxu0 0.0
        %2050 = vmatpush1.msra.mxu0 0.0
        %2051 = vmatprep.subr.mxu0 0.0
        %2052 = vmatpush1.msra.mxu0 0.0
        %2053 = vmatprep.subr.mxu0 0.0
        %2054 = vmatpush1.msra.mxu0 0.0
        %2055 = vmatprep.subr.mxu0 0.0
        %2056 = vmatpush1.msra.mxu0 0.0
        %2057 = vmatprep.subr.mxu0 0.0
        %2058 = vmatpush1.msra.mxu0 0.0
        %2059 = vmatprep.subr.mxu0 0.0
        %2060 = vmatpush1.msra.mxu0 0.0
        %2061 = vmatprep.subr.mxu0 0.0
        %2062 = vmatpush1.msra.mxu0 0.0
        %2063 = vmatprep.subr.mxu0 0.0
        %2064 = vmatpush1.msra.mxu0 0.0
        %2065 = vmatprep.subr.mxu0 0.0
        %2066 = vmatpush1.msra.mxu0 0.0
        %2067 = vmatprep.subr.mxu0 0.0
        %2068 = vmatpush1.msra.mxu0 0.0
        %2069 = vmatprep.subr.mxu0 0.0
        %2070 = vmatpush1.msra.mxu0 0.0
        %2071 = vmatprep.subr.mxu0 0.0
        %2072 = vmatpush1.msra.mxu0 0.0
        %2073 = vmatprep.mubr.f32.mxu0 0.0
        %2074 = vmatmul.mubr.f32.gmra.mrb[0].mxu0 %v1911
        %v2075 = vpop.f32.mrb[0].mxu0
        %v2076 = vadd.f32 0.0, %v2075
        %v2077 = vpop.f32.mrb[0].mxu0
        %2078 = vmatprep.mubr.f32.mxu0 0.0
        %2079 = vmatmul.mubr.f32.gmra.mrb[0].mxu0 %v1914
        %v2080 = vpop.f32.mrb[0].mxu0
        %v2081 = vadd.f32 0.0, %v2080
        %v2082 = vpop.f32.mrb[0].mxu0
        %2083 = vmatprep.mubr.f32.mxu0 0.0
        %2084 = vmatmul.mubr.f32.gmra.mrb[0].mxu0 %v1917
        %v2085 = vpop.f32.mrb[0].mxu0
        %v2086 = vadd.f32 0.0, %v2085
        %v2087 = vpop.f32.mrb[0].mxu0
        %2088 = vmatprep.mubr.f32.mxu0 0.0
        %2089 = vmatmul.mubr.f32.gmra.mrb[0].mxu0 %v1920
        %v2090 = vpop.f32.mrb[0].mxu0
        %v2091 = vadd.f32 0.0, %v2090
        %v2092 = vpop.f32.mrb[0].mxu0
        %2093 = vmatprep.mubr.f32.mxu0 0.0
        %2094 = vmatmul.mubr.f32.gmra.mrb[0].mxu0 %v1923
        %v2095 = vpop.f32.mrb[0].mxu0
        %v2096 = vadd.f32 0.0, %v2095
        %v2097 = vpop.f32.mrb[0].mxu0
        %2098 = vmatprep.mubr.f32.mxu0 0.0
        %2099 = vmatmul.mubr.f32.gmra.mrb[0].mxu0 %v1926
        %v2100 = vpop.f32.mrb[0].mxu0
        %v2101 = vadd.f32 0.0, %v2100
        %v2102 = vpop.f32.mrb[0].mxu0
        %2103 = vmatprep.mubr.f32.mxu0 0.0
        %2104 = vmatmul.mubr.f32.gmra.mrb[0].mxu0 %v1929
        %v2105 = vpop.f32.mrb[0].mxu0
        %v2106 = vadd.f32 0.0, %v2105
        %v2107 = vpop.f32.mrb[0].mxu0
        %2108 = vmatprep.mubr.f32.mxu0 0.0
        %2109 = vmatmul.mubr.f32.gmra.mrb[0].mxu0 %v1932
        %v2110 = vpop.f32.mrb[0].mxu0
        %v2111 = vadd.f32 0.0, %v2110
        %v2112 = vpop.f32.mrb[0].mxu0
        %2113 = vmatprep.mubr.f32.mxu0 0.0
        %2114 = vmatmul.mubr.f32.gmra.mrb[0].mxu0 %v1935
        %v2115 = vpop.f32.mrb[0].mxu0
        %v2116 = vadd.f32 0.0, %v2115
        %v2117 = vpop.f32.mrb[0].mxu0
        %2118 = vmatprep.mubr.f32.mxu0 0.0
        %2119 = vmatmul.mubr.f32.gmra.mrb[0].mxu0 %v1938
        %v2120 = vpop.f32.mrb[0].mxu0
        %v2121 = vadd.f32 0.0, %v2120
        %v2122 = vpop.f32.mrb[0].mxu0
        %2123 = vmatprep.mubr.f32.mxu0 0.0
        %2124 = vmatmul.mubr.f32.gmra.mrb[0].mxu0 %v1941
        %v2125 = vpop.f32.mrb[0].mxu0
        %v2126 = vadd.f32 0.0, %v2125
        %v2127 = vpop.f32.mrb[0].mxu0
        %2128 = vmatprep.mubr.f32.mxu0 0.0
        %2129 = vmatmul.mubr.f32.gmra.mrb[0].mxu0 %v1944
        %v2130 = vpop.f32.mrb[0].mxu0
        %v2131 = vadd.f32 0.0, %v2130
        %v2132 = vpop.f32.mrb[0].mxu0
        %2133 = vmatprep.mubr.f32.mxu0 0.0
        %2134 = vmatmul.mubr.f32.gmra.mrb[0].mxu0 %v1947
        %v2135 = vpop.f32.mrb[0].mxu0
        %v2136 = vadd.f32 0.0, %v2135
        %v2137 = vpop.f32.mrb[0].mxu0
        %2138 = vmatprep.mubr.f32.mxu0 0.0
        %2139 = vmatmul.mubr.f32.gmra.mrb[0].mxu0 %v1950
        %v2140 = vpop.f32.mrb[0].mxu0
        %v2141 = vadd.f32 0.0, %v2140
        %v2142 = vpop.f32.mrb[0].mxu0
        %2143 = vmatprep.mubr.f32.mxu0 0.0
        %2144 = vmatmul.mubr.f32.gmra.mrb[0].mxu0 %v1953
        %v2145 = vpop.f32.mrb[0].mxu0
        %v2146 = vadd.f32 0.0, %v2145
        %v2147 = vpop.f32.mrb[0].mxu0
        %2148 = vmatprep.mubr.f32.mxu0 0.0
        %2149 = vmatmul.mubr.f32.gmra.mrb[0].mxu0 %v1956
        %v2150 = vpop.f32.mrb[0].mxu0
        %v2151 = vadd.f32 0.0, %v2150
        %v2152 = vpop.f32.mrb[0].mxu0
        %2153 = vmatprep.mubr.f32.mxu0 0.0
        %2154 = vmatmul.mubr.f32.gmra.mrb[0].mxu0 %v1959
        %v2155 = vpop.f32.mrb[0].mxu0
        %v2156 = vadd.f32 0.0, %v2155
        %v2157 = vpop.f32.mrb[0].mxu0
        %2158 = vmatprep.mubr.f32.mxu0 0.0
        %2159 = vmatmul.mubr.f32.gmra.mrb[0].mxu0 %v1962
        %v2160 = vpop.f32.mrb[0].mxu0
        %v2161 = vadd.f32 0.0, %v2160
        %v2162 = vpop.f32.mrb[0].mxu0
        %2163 = vmatprep.mubr.f32.mxu0 0.0
        %2164 = vmatmul.mubr.f32.gmra.mrb[0].mxu0 %v1965
        %v2165 = vpop.f32.mrb[0].mxu0
        %v2166 = vadd.f32 0.0, %v2165
        %v2167 = vpop.f32.mrb[0].mxu0
        %2168 = vmatprep.mubr.f32.mxu0 0.0
        %2169 = vmatmul.mubr.f32.gmra.mrb[0].mxu0 %v1968
        %v2170 = vpop.f32.mrb[0].mxu0
        %v2171 = vadd.f32 0.0, %v2170
        %v2172 = vpop.f32.mrb[0].mxu0
        %2173 = vmatprep.mubr.f32.mxu0 0.0
        %2174 = vmatmul.mubr.f32.gmra.mrb[0].mxu0 %v1971
        %v2175 = vpop.f32.mrb[0].mxu0
        %v2176 = vadd.f32 0.0, %v2175
        %v2177 = vpop.f32.mrb[0].mxu0
        %2178 = vmatprep.mubr.f32.mxu0 0.0
        %2179 = vmatmul.mubr.f32.gmra.mrb[0].mxu0 %v1974
        %v2180 = vpop.f32.mrb[0].mxu0
        %v2181 = vadd.f32 0.0, %v2180
        %v2182 = vpop.f32.mrb[0].mxu0
        %2183 = vmatprep.mubr.f32.mxu0 0.0
        %2184 = vmatmul.mubr.f32.gmra.mrb[0].mxu0 %v1977
        %v2185 = vpop.f32.mrb[0].mxu0
        %v2186 = vadd.f32 0.0, %v2185
        %v2187 = vpop.f32.mrb[0].mxu0
        %2188 = vmatprep.mubr.f32.mxu0 0.0
        %2189 = vmatmul.mubr.f32.gmra.mrb[0].mxu0 %v1980
        %v2190 = vpop.f32.mrb[0].mxu0
        %v2191 = vadd.f32 0.0, %v2190
        %v2192 = vpop.f32.mrb[0].mxu0
        %2193 = vmatprep.mubr.f32.mxu0 0.0
        %2194 = vmatmul.mubr.f32.gmra.mrb[0].mxu0 %v1983
        %v2195 = vpop.f32.mrb[0].mxu0
        %v2196 = vadd.f32 0.0, %v2195
        %v2197 = vpop.f32.mrb[0].mxu0
        %2198 = vmatprep.mubr.f32.mxu0 0.0
        %2199 = vmatmul.mubr.f32.gmra.mrb[0].mxu0 %v1986
        %v2200 = vpop.f32.mrb[0].mxu0
        %v2201 = vadd.f32 0.0, %v2200
        %v2202 = vpop.f32.mrb[0].mxu0
        %2203 = vmatprep.mubr.f32.mxu0 0.0
        %2204 = vmatmul.mubr.f32.gmra.mrb[0].mxu0 %v1989
        %v2205 = vpop.f32.mrb[0].mxu0
        %v2206 = vadd.f32 0.0, %v2205
        %v2207 = vpop.f32.mrb[0].mxu0
        %2208 = vmatprep.mubr.f32.mxu0 0.0
        %2209 = vmatmul.mubr.f32.gmra.mrb[0].mxu0 %v1992
        %v2210 = vpop.f32.mrb[0].mxu0
        %v2211 = vadd.f32 0.0, %v2210
        %v2212 = vpop.f32.mrb[0].mxu0
        %2213 = vmatprep.mubr.f32.mxu0 0.0
        %2214 = vmatmul.mubr.f32.gmra.mrb[0].mxu0 %v1995
        %v2215 = vpop.f32.mrb[0].mxu0
        %v2216 = vadd.f32 0.0, %v2215
        %v2217 = vpop.f32.mrb[0].mxu0
        %2218 = vmatprep.mubr.f32.mxu0 0.0
        %2219 = vmatmul.mubr.f32.gmra.mrb[0].mxu0 %v1998
        %v2220 = vpop.f32.mrb[0].mxu0
        %v2221 = vadd.f32 0.0, %v2220
        %v2222 = vpop.f32.mrb[0].mxu0
        %2223 = vmatprep.mubr.f32.mxu0 0.0
        %2224 = vmatmul.mubr.f32.gmra.mrb[0].mxu0 %v2001
        %v2225 = vpop.f32.mrb[0].mxu0
        %v2226 = vadd.f32 0.0, %v2225
        %v2227 = vpop.f32.mrb[0].mxu0
        %2228 = vmatprep.mubr.f32.mxu0 0.0
        %2229 = vmatmul.mubr.f32.gmra.mrb[0].mxu0 %v2004
        %v2230 = vpop.f32.mrb[0].mxu0
        %v2231 = vadd.f32 0.0, %v2230
        %v2232 = vpop.f32.mrb[0].mxu0
        %2233 = vdwg.mxu0
        %v2234 = vadd.f32 %v1846, %v2076
        %v2235 = vadd.f32 %v1847, %v2081
        %v2236 = vadd.f32 %v1848, %v2086
        %v2237 = vadd.f32 %v1849, %v2091
        %v2238 = vadd.f32 %v1850, %v2096
        %v2239 = vadd.f32 %v1851, %v2101
        %v2240 = vadd.f32 %v1852, %v2106
        %v2241 = vadd.f32 %v1853, %v2111
        %v2242 = vadd.f32 %v1854, %v2116
        %v2243 = vadd.f32 %v1855, %v2121
        %v2244 = vadd.f32 %v1856, %v2126
        %v2245 = vadd.f32 %v1857, %v2131
        %v2246 = vadd.f32 %v1858, %v2136
        %v2247 = vadd.f32 %v1859, %v2141
        %v2248 = vadd.f32 %v1860, %v2146
        %v2249 = vadd.f32 %v1861, %v2151
        %v2250 = vadd.f32 %v1862, %v2156
        %v2251 = vadd.f32 %v1863, %v2161
        %v2252 = vadd.f32 %v1864, %v2166
        %v2253 = vadd.f32 %v1865, %v2171
        %v2254 = vadd.f32 %v1866, %v2176
        %v2255 = vadd.f32 %v1867, %v2181
        %v2256 = vadd.f32 %v1868, %v2186
        %v2257 = vadd.f32 %v1869, %v2191
        %v2258 = vadd.f32 %v1870, %v2196
        %v2259 = vadd.f32 %v1871, %v2201
        %v2260 = vadd.f32 %v1872, %v2206
        %v2261 = vadd.f32 %v1873, %v2211
        %v2262 = vadd.f32 %v1874, %v2216
        %v2263 = vadd.f32 %v1875, %v2221
        %v2264 = vadd.f32 %v1876, %v2226
        %v2265 = vadd.f32 %v1877, %v2231
        %v2266 = vld [vmem:[%s351 + $0x2] sm:$0xff]
        %v2267 = vld [vmem:[%s351 + $0xa] sm:$0xff]
        %v2268 = vld [vmem:[%s351 + $0x1a] sm:$0xff]
        %v2269 = vld [vmem:[%s351 + $0x22] sm:$0xff]
        %v2270 = vld [vmem:[%s351 + $0x32] sm:$0xff]
        %v2271 = vld [vmem:[%s351 + $0x3a] sm:$0xff]
        %v2272 = vld [vmem:[%s351 + $0x4a] sm:$0xff]
        %v2273 = vld [vmem:[%s351 + $0x52] sm:$0xff]
        %v2274 = vld [vmem:[%s351 + $0x62] sm:$0xff]
        %v2275 = vld [vmem:[%s351 + $0x6a] sm:$0xff]
        %v2276 = vld [vmem:[%s351 + $0x7a] sm:$0xff]
        %v2277 = vld [vmem:[%s351 + $0x82] sm:$0xff]
        %v2278 = vld [vmem:[%s351 + $0x92] sm:$0xff]
        %v2279 = vld [vmem:[%s351 + $0x9a] sm:$0xff]
        %v2280 = vld [vmem:[%s351 + $0xaa] sm:$0xff]
        %v2281 = vld [vmem:[%s351 + $0xb2] sm:$0xff]
        %v2282 = vld [vmem:[%s351 + $0xc2] sm:$0xff]
        %v2283 = vld [vmem:[%s351 + $0xca] sm:$0xff]
        %v2284 = vld [vmem:[%s351 + $0xda] sm:$0xff]
        %v2285 = vld [vmem:[%s351 + $0xe2] sm:$0xff]
        %v2286 = vld [vmem:[%s351 + $0xf2] sm:$0xff]
        %v2287 = vld [vmem:[%s351 + $0xfa] sm:$0xff]
        %v2288 = vld [vmem:[%s351 + $0x10a] sm:$0xff]
        %v2289 = vld [vmem:[%s351 + $0x112] sm:$0xff]
        %v2290 = vld [vmem:[%s351 + $0x122] sm:$0xff]
        %v2291 = vld [vmem:[%s351 + $0x12a] sm:$0xff]
        %v2292 = vld [vmem:[%s351 + $0x13a] sm:$0xff]
        %v2293 = vld [vmem:[%s351 + $0x142] sm:$0xff]
        %v2294 = vld [vmem:[%s351 + $0x152] sm:$0xff]
        %v2295 = vld [vmem:[%s351 + $0x15a] sm:$0xff]
        %v2296 = vld [vmem:[%s351 + $0x16a] sm:$0xff]
        %v2297 = vld [vmem:[%s351 + $0x172] sm:$0xff]
        %v2298 = vrot.slane %v386, 4
        %v2300 = vsel %vm295, %v2266, 0
        %v2303 = vsel %vm295, %v2267, 0
        %v2306 = vsel %vm295, %v2268, 0
        %v2309 = vsel %vm295, %v2269, 0
        %v2312 = vsel %vm295, %v2270, 0
        %v2315 = vsel %vm295, %v2271, 0
        %v2318 = vsel %vm295, %v2272, 0
        %v2321 = vsel %vm295, %v2273, 0
        %v2324 = vsel %vm295, %v2274, 0
        %v2327 = vsel %vm295, %v2275, 0
        %v2330 = vsel %vm295, %v2276, 0
        %v2333 = vsel %vm295, %v2277, 0
        %v2336 = vsel %vm295, %v2278, 0
        %v2339 = vsel %vm295, %v2279, 0
        %v2342 = vsel %vm295, %v2280, 0
        %v2345 = vsel %vm295, %v2281, 0
        %v2348 = vsel %vm295, %v2282, 0
        %v2351 = vsel %vm295, %v2283, 0
        %v2354 = vsel %vm295, %v2284, 0
        %v2357 = vsel %vm295, %v2285, 0
        %v2360 = vsel %vm295, %v2286, 0
        %v2363 = vsel %vm295, %v2287, 0
        %v2366 = vsel %vm295, %v2288, 0
        %v2369 = vsel %vm295, %v2289, 0
        %v2372 = vsel %vm295, %v2290, 0
        %v2375 = vsel %vm295, %v2291, 0
        %v2378 = vsel %vm295, %v2292, 0
        %v2381 = vsel %vm295, %v2293, 0
        %v2384 = vsel %vm295, %v2294, 0
        %v2387 = vsel %vm295, %v2295, 0
        %v2390 = vsel %vm295, %v2296, 0
        %v2393 = vsel %vm295, %v2297, 0
        %v2395 = vsel %vm551, %v2298, 0
        %2397 = vmatprep.subr.mxu0 0.0
        %2398 = vmatpush1.msra.mxu0 %v2395
        %2399 = vmatprep.subr.mxu0 0.0
        %2400 = vmatpush1.msra.mxu0 0.0
        %2401 = vmatprep.subr.mxu0 0.0
        %2402 = vmatpush1.msra.mxu0 0.0
        %2403 = vmatprep.subr.mxu0 0.0
        %2404 = vmatpush1.msra.mxu0 0.0
        %2405 = vmatprep.subr.mxu0 0.0
        %2406 = vmatpush1.msra.mxu0 0.0
        %2407 = vmatprep.subr.mxu0 0.0
        %2408 = vmatpush1.msra.mxu0 0.0
        %2409 = vmatprep.subr.mxu0 0.0
        %2410 = vmatpush1.msra.mxu0 0.0
        %2411 = vmatprep.subr.mxu0 0.0
        %2412 = vmatpush1.msra.mxu0 0.0
        %2413 = vmatprep.subr.mxu0 0.0
        %2414 = vmatpush1.msra.mxu0 0.0
        %2415 = vmatprep.subr.mxu0 0.0
        %2416 = vmatpush1.msra.mxu0 0.0
        %2417 = vmatprep.subr.mxu0 0.0
        %2418 = vmatpush1.msra.mxu0 0.0
        %2419 = vmatprep.subr.mxu0 0.0
        %2420 = vmatpush1.msra.mxu0 0.0
        %2421 = vmatprep.subr.mxu0 0.0
        %2422 = vmatpush1.msra.mxu0 0.0
        %2423 = vmatprep.subr.mxu0 0.0
        %2424 = vmatpush1.msra.mxu0 0.0
        %2425 = vmatprep.subr.mxu0 0.0
        %2426 = vmatpush1.msra.mxu0 0.0
        %2427 = vmatprep.subr.mxu0 0.0
        %2428 = vmatpush1.msra.mxu0 0.0
        %2429 = vmatprep.subr.mxu0 0.0
        %2430 = vmatpush1.msra.mxu0 0.0
        %2431 = vmatprep.subr.mxu0 0.0
        %2432 = vmatpush1.msra.mxu0 0.0
        %2433 = vmatprep.subr.mxu0 0.0
        %2434 = vmatpush1.msra.mxu0 0.0
        %2435 = vmatprep.subr.mxu0 0.0
        %2436 = vmatpush1.msra.mxu0 0.0
        %2437 = vmatprep.subr.mxu0 0.0
        %2438 = vmatpush1.msra.mxu0 0.0
        %2439 = vmatprep.subr.mxu0 0.0
        %2440 = vmatpush1.msra.mxu0 0.0
        %2441 = vmatprep.subr.mxu0 0.0
        %2442 = vmatpush1.msra.mxu0 0.0
        %2443 = vmatprep.subr.mxu0 0.0
        %2444 = vmatpush1.msra.mxu0 0.0
        %2445 = vmatprep.subr.mxu0 0.0
        %2446 = vmatpush1.msra.mxu0 0.0
        %2447 = vmatprep.subr.mxu0 0.0
        %2448 = vmatpush1.msra.mxu0 0.0
        %2449 = vmatprep.subr.mxu0 0.0
        %2450 = vmatpush1.msra.mxu0 0.0
        %2451 = vmatprep.subr.mxu0 0.0
        %2452 = vmatpush1.msra.mxu0 0.0
        %2453 = vmatprep.subr.mxu0 0.0
        %2454 = vmatpush1.msra.mxu0 0.0
        %2455 = vmatprep.subr.mxu0 0.0
        %2456 = vmatpush1.msra.mxu0 0.0
        %2457 = vmatprep.subr.mxu0 0.0
        %2458 = vmatpush1.msra.mxu0 0.0
        %2459 = vmatprep.subr.mxu0 0.0
        %2460 = vmatpush1.msra.mxu0 0.0
        %2461 = vmatprep.mubr.f32.mxu0 0.0
        %2462 = vmatmul.mubr.f32.gmra.mrb[0].mxu0 %v2300
        %v2463 = vpop.f32.mrb[0].mxu0
        %v2464 = vadd.f32 0.0, %v2463
        %v2465 = vpop.f32.mrb[0].mxu0
        %2466 = vmatprep.mubr.f32.mxu0 0.0
        %2467 = vmatmul.mubr.f32.gmra.mrb[0].mxu0 %v2303
        %v2468 = vpop.f32.mrb[0].mxu0
        %v2469 = vadd.f32 0.0, %v2468
        %v2470 = vpop.f32.mrb[0].mxu0
        %2471 = vmatprep.mubr.f32.mxu0 0.0
        %2472 = vmatmul.mubr.f32.gmra.mrb[0].mxu0 %v2306
        %v2473 = vpop.f32.mrb[0].mxu0
        %v2474 = vadd.f32 0.0, %v2473
        %v2475 = vpop.f32.mrb[0].mxu0
        %2476 = vmatprep.mubr.f32.mxu0 0.0
        %2477 = vmatmul.mubr.f32.gmra.mrb[0].mxu0 %v2309
        %v2478 = vpop.f32.mrb[0].mxu0
        %v2479 = vadd.f32 0.0, %v2478
        %v2480 = vpop.f32.mrb[0].mxu0
        %2481 = vmatprep.mubr.f32.mxu0 0.0
        %2482 = vmatmul.mubr.f32.gmra.mrb[0].mxu0 %v2312
        %v2483 = vpop.f32.mrb[0].mxu0
        %v2484 = vadd.f32 0.0, %v2483
        %v2485 = vpop.f32.mrb[0].mxu0
        %2486 = vmatprep.mubr.f32.mxu0 0.0
        %2487 = vmatmul.mubr.f32.gmra.mrb[0].mxu0 %v2315
        %v2488 = vpop.f32.mrb[0].mxu0
        %v2489 = vadd.f32 0.0, %v2488
        %v2490 = vpop.f32.mrb[0].mxu0
        %2491 = vmatprep.mubr.f32.mxu0 0.0
        %2492 = vmatmul.mubr.f32.gmra.mrb[0].mxu0 %v2318
        %v2493 = vpop.f32.mrb[0].mxu0
        %v2494 = vadd.f32 0.0, %v2493
        %v2495 = vpop.f32.mrb[0].mxu0
        %2496 = vmatprep.mubr.f32.mxu0 0.0
        %2497 = vmatmul.mubr.f32.gmra.mrb[0].mxu0 %v2321
        %v2498 = vpop.f32.mrb[0].mxu0
        %v2499 = vadd.f32 0.0, %v2498
        %v2500 = vpop.f32.mrb[0].mxu0
        %2501 = vmatprep.mubr.f32.mxu0 0.0
        %2502 = vmatmul.mubr.f32.gmra.mrb[0].mxu0 %v2324
        %v2503 = vpop.f32.mrb[0].mxu0
        %v2504 = vadd.f32 0.0, %v2503
        %v2505 = vpop.f32.mrb[0].mxu0
        %2506 = vmatprep.mubr.f32.mxu0 0.0
        %2507 = vmatmul.mubr.f32.gmra.mrb[0].mxu0 %v2327
        %v2508 = vpop.f32.mrb[0].mxu0
        %v2509 = vadd.f32 0.0, %v2508
        %v2510 = vpop.f32.mrb[0].mxu0
        %2511 = vmatprep.mubr.f32.mxu0 0.0
        %2512 = vmatmul.mubr.f32.gmra.mrb[0].mxu0 %v2330
        %v2513 = vpop.f32.mrb[0].mxu0
        %v2514 = vadd.f32 0.0, %v2513
        %v2515 = vpop.f32.mrb[0].mxu0
        %2516 = vmatprep.mubr.f32.mxu0 0.0
        %2517 = vmatmul.mubr.f32.gmra.mrb[0].mxu0 %v2333
        %v2518 = vpop.f32.mrb[0].mxu0
        %v2519 = vadd.f32 0.0, %v2518
        %v2520 = vpop.f32.mrb[0].mxu0
        %2521 = vmatprep.mubr.f32.mxu0 0.0
        %2522 = vmatmul.mubr.f32.gmra.mrb[0].mxu0 %v2336
        %v2523 = vpop.f32.mrb[0].mxu0
        %v2524 = vadd.f32 0.0, %v2523
        %v2525 = vpop.f32.mrb[0].mxu0
        %2526 = vmatprep.mubr.f32.mxu0 0.0
        %2527 = vmatmul.mubr.f32.gmra.mrb[0].mxu0 %v2339
        %v2528 = vpop.f32.mrb[0].mxu0
        %v2529 = vadd.f32 0.0, %v2528
        %v2530 = vpop.f32.mrb[0].mxu0
        %2531 = vmatprep.mubr.f32.mxu0 0.0
        %2532 = vmatmul.mubr.f32.gmra.mrb[0].mxu0 %v2342
        %v2533 = vpop.f32.mrb[0].mxu0
        %v2534 = vadd.f32 0.0, %v2533
        %v2535 = vpop.f32.mrb[0].mxu0
        %2536 = vmatprep.mubr.f32.mxu0 0.0
        %2537 = vmatmul.mubr.f32.gmra.mrb[0].mxu0 %v2345
        %v2538 = vpop.f32.mrb[0].mxu0
        %v2539 = vadd.f32 0.0, %v2538
        %v2540 = vpop.f32.mrb[0].mxu0
        %2541 = vmatprep.mubr.f32.mxu0 0.0
        %2542 = vmatmul.mubr.f32.gmra.mrb[0].mxu0 %v2348
        %v2543 = vpop.f32.mrb[0].mxu0
        %v2544 = vadd.f32 0.0, %v2543
        %v2545 = vpop.f32.mrb[0].mxu0
        %2546 = vmatprep.mubr.f32.mxu0 0.0
        %2547 = vmatmul.mubr.f32.gmra.mrb[0].mxu0 %v2351
        %v2548 = vpop.f32.mrb[0].mxu0
        %v2549 = vadd.f32 0.0, %v2548
        %v2550 = vpop.f32.mrb[0].mxu0
        %2551 = vmatprep.mubr.f32.mxu0 0.0
        %2552 = vmatmul.mubr.f32.gmra.mrb[0].mxu0 %v2354
        %v2553 = vpop.f32.mrb[0].mxu0
        %v2554 = vadd.f32 0.0, %v2553
        %v2555 = vpop.f32.mrb[0].mxu0
        %2556 = vmatprep.mubr.f32.mxu0 0.0
        %2557 = vmatmul.mubr.f32.gmra.mrb[0].mxu0 %v2357
        %v2558 = vpop.f32.mrb[0].mxu0
        %v2559 = vadd.f32 0.0, %v2558
        %v2560 = vpop.f32.mrb[0].mxu0
        %2561 = vmatprep.mubr.f32.mxu0 0.0
        %2562 = vmatmul.mubr.f32.gmra.mrb[0].mxu0 %v2360
        %v2563 = vpop.f32.mrb[0].mxu0
        %v2564 = vadd.f32 0.0, %v2563
        %v2565 = vpop.f32.mrb[0].mxu0
        %2566 = vmatprep.mubr.f32.mxu0 0.0
        %2567 = vmatmul.mubr.f32.gmra.mrb[0].mxu0 %v2363
        %v2568 = vpop.f32.mrb[0].mxu0
        %v2569 = vadd.f32 0.0, %v2568
        %v2570 = vpop.f32.mrb[0].mxu0
        %2571 = vmatprep.mubr.f32.mxu0 0.0
        %2572 = vmatmul.mubr.f32.gmra.mrb[0].mxu0 %v2366
        %v2573 = vpop.f32.mrb[0].mxu0
        %v2574 = vadd.f32 0.0, %v2573
        %v2575 = vpop.f32.mrb[0].mxu0
        %2576 = vmatprep.mubr.f32.mxu0 0.0
        %2577 = vmatmul.mubr.f32.gmra.mrb[0].mxu0 %v2369
        %v2578 = vpop.f32.mrb[0].mxu0
        %v2579 = vadd.f32 0.0, %v2578
        %v2580 = vpop.f32.mrb[0].mxu0
        %2581 = vmatprep.mubr.f32.mxu0 0.0
        %2582 = vmatmul.mubr.f32.gmra.mrb[0].mxu0 %v2372
        %v2583 = vpop.f32.mrb[0].mxu0
        %v2584 = vadd.f32 0.0, %v2583
        %v2585 = vpop.f32.mrb[0].mxu0
        %2586 = vmatprep.mubr.f32.mxu0 0.0
        %2587 = vmatmul.mubr.f32.gmra.mrb[0].mxu0 %v2375
        %v2588 = vpop.f32.mrb[0].mxu0
        %v2589 = vadd.f32 0.0, %v2588
        %v2590 = vpop.f32.mrb[0].mxu0
        %2591 = vmatprep.mubr.f32.mxu0 0.0
        %2592 = vmatmul.mubr.f32.gmra.mrb[0].mxu0 %v2378
        %v2593 = vpop.f32.mrb[0].mxu0
        %v2594 = vadd.f32 0.0, %v2593
        %v2595 = vpop.f32.mrb[0].mxu0
        %2596 = vmatprep.mubr.f32.mxu0 0.0
        %2597 = vmatmul.mubr.f32.gmra.mrb[0].mxu0 %v2381
        %v2598 = vpop.f32.mrb[0].mxu0
        %v2599 = vadd.f32 0.0, %v2598
        %v2600 = vpop.f32.mrb[0].mxu0
        %2601 = vmatprep.mubr.f32.mxu0 0.0
        %2602 = vmatmul.mubr.f32.gmra.mrb[0].mxu0 %v2384
        %v2603 = vpop.f32.mrb[0].mxu0
        %v2604 = vadd.f32 0.0, %v2603
        %v2605 = vpop.f32.mrb[0].mxu0
        %2606 = vmatprep.mubr.f32.mxu0 0.0
        %2607 = vmatmul.mubr.f32.gmra.mrb[0].mxu0 %v2387
        %v2608 = vpop.f32.mrb[0].mxu0
        %v2609 = vadd.f32 0.0, %v2608
        %v2610 = vpop.f32.mrb[0].mxu0
        %2611 = vmatprep.mubr.f32.mxu0 0.0
        %2612 = vmatmul.mubr.f32.gmra.mrb[0].mxu0 %v2390
        %v2613 = vpop.f32.mrb[0].mxu0
        %v2614 = vadd.f32 0.0, %v2613
        %v2615 = vpop.f32.mrb[0].mxu0
        %2616 = vmatprep.mubr.f32.mxu0 0.0
        %2617 = vmatmul.mubr.f32.gmra.mrb[0].mxu0 %v2393
        %v2618 = vpop.f32.mrb[0].mxu0
        %v2619 = vadd.f32 0.0, %v2618
        %v2620 = vpop.f32.mrb[0].mxu0
        %2621 = vdwg.mxu0
        %v2622 = vadd.f32 %v2234, %v2464
        %v2623 = vadd.f32 %v2235, %v2469
        %v2624 = vadd.f32 %v2236, %v2474
        %v2625 = vadd.f32 %v2237, %v2479
        %v2626 = vadd.f32 %v2238, %v2484
        %v2627 = vadd.f32 %v2239, %v2489
        %v2628 = vadd.f32 %v2240, %v2494
        %v2629 = vadd.f32 %v2241, %v2499
        %v2630 = vadd.f32 %v2242, %v2504
        %v2631 = vadd.f32 %v2243, %v2509
        %v2632 = vadd.f32 %v2244, %v2514
        %v2633 = vadd.f32 %v2245, %v2519
        %v2634 = vadd.f32 %v2246, %v2524
        %v2635 = vadd.f32 %v2247, %v2529
        %v2636 = vadd.f32 %v2248, %v2534
        %v2637 = vadd.f32 %v2249, %v2539
        %v2638 = vadd.f32 %v2250, %v2544
        %v2639 = vadd.f32 %v2251, %v2549
        %v2640 = vadd.f32 %v2252, %v2554
        %v2641 = vadd.f32 %v2253, %v2559
        %v2642 = vadd.f32 %v2254, %v2564
        %v2643 = vadd.f32 %v2255, %v2569
        %v2644 = vadd.f32 %v2256, %v2574
        %v2645 = vadd.f32 %v2257, %v2579
        %v2646 = vadd.f32 %v2258, %v2584
        %v2647 = vadd.f32 %v2259, %v2589
        %v2648 = vadd.f32 %v2260, %v2594
        %v2649 = vadd.f32 %v2261, %v2599
        %v2650 = vadd.f32 %v2262, %v2604
        %v2651 = vadd.f32 %v2263, %v2609
        %v2652 = vadd.f32 %v2264, %v2614
        %v2653 = vadd.f32 %v2265, %v2619
        %s2654 = scalar_lea.vmem [#allocation2], 48
        %v2655 = vld [vmem:[%s2654] sm:$0xff]
        %v2656 = vld [vmem:[%s2654 + $0x8] sm:$0xff]
        %v2657 = vld [vmem:[%s2654 + $0x18] sm:$0xff]
        %v2658 = vld [vmem:[%s2654 + $0x20] sm:$0xff]
        %v2659 = vld [vmem:[%s2654 + $0x30] sm:$0xff]
        %v2660 = vld [vmem:[%s2654 + $0x38] sm:$0xff]
        %v2661 = vld [vmem:[%s2654 + $0x48] sm:$0xff]
        %v2662 = vld [vmem:[%s2654 + $0x50] sm:$0xff]
        %v2663 = vld [vmem:[%s2654 + $0x60] sm:$0xff]
        %v2664 = vld [vmem:[%s2654 + $0x68] sm:$0xff]
        %v2665 = vld [vmem:[%s2654 + $0x78] sm:$0xff]
        %v2666 = vld [vmem:[%s2654 + $0x80] sm:$0xff]
        %v2667 = vld [vmem:[%s2654 + $0x90] sm:$0xff]
        %v2668 = vld [vmem:[%s2654 + $0x98] sm:$0xff]
        %v2669 = vld [vmem:[%s2654 + $0xa8] sm:$0xff]
        %v2670 = vld [vmem:[%s2654 + $0xb0] sm:$0xff]
        %v2671 = vld [vmem:[%s2654 + $0xc0] sm:$0xff]
        %v2672 = vld [vmem:[%s2654 + $0xc8] sm:$0xff]
        %v2673 = vld [vmem:[%s2654 + $0xd8] sm:$0xff]
        %v2674 = vld [vmem:[%s2654 + $0xe0] sm:$0xff]
        %v2675 = vld [vmem:[%s2654 + $0xf0] sm:$0xff]
        %v2676 = vld [vmem:[%s2654 + $0xf8] sm:$0xff]
        %v2677 = vld [vmem:[%s2654 + $0x108] sm:$0xff]
        %v2678 = vld [vmem:[%s2654 + $0x110] sm:$0xff]
        %v2679 = vld [vmem:[%s2654 + $0x120] sm:$0xff]
        %v2680 = vld [vmem:[%s2654 + $0x128] sm:$0xff]
        %v2681 = vld [vmem:[%s2654 + $0x138] sm:$0xff]
        %v2682 = vld [vmem:[%s2654 + $0x140] sm:$0xff]
        %v2683 = vld [vmem:[%s2654 + $0x150] sm:$0xff]
        %v2684 = vld [vmem:[%s2654 + $0x158] sm:$0xff]
        %v2685 = vld [vmem:[%s2654 + $0x168] sm:$0xff]
        %v2686 = vld [vmem:[%s2654 + $0x170] sm:$0xff]
        %v2688 = vsel %vm295, %v2655, 0
        %v2691 = vsel %vm295, %v2656, 0
        %v2694 = vsel %vm295, %v2657, 0
        %v2697 = vsel %vm295, %v2658, 0
        %v2700 = vsel %vm295, %v2659, 0
        %v2703 = vsel %vm295, %v2660, 0
        %v2706 = vsel %vm295, %v2661, 0
        %v2709 = vsel %vm295, %v2662, 0
        %v2712 = vsel %vm295, %v2663, 0
        %v2715 = vsel %vm295, %v2664, 0
        %v2718 = vsel %vm295, %v2665, 0
        %v2721 = vsel %vm295, %v2666, 0
        %v2724 = vsel %vm295, %v2667, 0
        %v2727 = vsel %vm295, %v2668, 0
        %v2730 = vsel %vm295, %v2669, 0
        %v2733 = vsel %vm295, %v2670, 0
        %v2736 = vsel %vm295, %v2671, 0
        %v2739 = vsel %vm295, %v2672, 0
        %v2742 = vsel %vm295, %v2673, 0
        %v2745 = vsel %vm295, %v2674, 0
        %v2748 = vsel %vm295, %v2675, 0
        %v2751 = vsel %vm295, %v2676, 0
        %v2754 = vsel %vm295, %v2677, 0
        %v2757 = vsel %vm295, %v2678, 0
        %v2760 = vsel %vm295, %v2679, 0
        %v2763 = vsel %vm295, %v2680, 0
        %v2766 = vsel %vm295, %v2681, 0
        %v2769 = vsel %vm295, %v2682, 0
        %v2772 = vsel %vm295, %v2683, 0
        %v2775 = vsel %vm295, %v2684, 0
        %v2778 = vsel %vm295, %v2685, 0
        %v2781 = vsel %vm295, %v2686, 0
        %v2784 = vsel %vm551, %v387, 0
        %2786 = vmatprep.subr.mxu0 0.0
        %2787 = vmatpush1.msra.mxu0 %v2784
        %2788 = vmatprep.subr.mxu0 0.0
        %2789 = vmatpush1.msra.mxu0 0.0
        %2790 = vmatprep.subr.mxu0 0.0
        %2791 = vmatpush1.msra.mxu0 0.0
        %2792 = vmatprep.subr.mxu0 0.0
        %2793 = vmatpush1.msra.mxu0 0.0
        %2794 = vmatprep.subr.mxu0 0.0
        %2795 = vmatpush1.msra.mxu0 0.0
        %2796 = vmatprep.subr.mxu0 0.0
        %2797 = vmatpush1.msra.mxu0 0.0
        %2798 = vmatprep.subr.mxu0 0.0
        %2799 = vmatpush1.msra.mxu0 0.0
        %2800 = vmatprep.subr.mxu0 0.0
        %2801 = vmatpush1.msra.mxu0 0.0
        %2802 = vmatprep.subr.mxu0 0.0
        %2803 = vmatpush1.msra.mxu0 0.0
        %2804 = vmatprep.subr.mxu0 0.0
        %2805 = vmatpush1.msra.mxu0 0.0
        %2806 = vmatprep.subr.mxu0 0.0
        %2807 = vmatpush1.msra.mxu0 0.0
        %2808 = vmatprep.subr.mxu0 0.0
        %2809 = vmatpush1.msra.mxu0 0.0
        %2810 = vmatprep.subr.mxu0 0.0
        %2811 = vmatpush1.msra.mxu0 0.0
        %2812 = vmatprep.subr.mxu0 0.0
        %2813 = vmatpush1.msra.mxu0 0.0
        %2814 = vmatprep.subr.mxu0 0.0
        %2815 = vmatpush1.msra.mxu0 0.0
        %2816 = vmatprep.subr.mxu0 0.0
        %2817 = vmatpush1.msra.mxu0 0.0
        %2818 = vmatprep.subr.mxu0 0.0
        %2819 = vmatpush1.msra.mxu0 0.0
        %2820 = vmatprep.subr.mxu0 0.0
        %2821 = vmatpush1.msra.mxu0 0.0
        %2822 = vmatprep.subr.mxu0 0.0
        %2823 = vmatpush1.msra.mxu0 0.0
        %2824 = vmatprep.subr.mxu0 0.0
        %2825 = vmatpush1.msra.mxu0 0.0
        %2826 = vmatprep.subr.mxu0 0.0
        %2827 = vmatpush1.msra.mxu0 0.0
        %2828 = vmatprep.subr.mxu0 0.0
        %2829 = vmatpush1.msra.mxu0 0.0
        %2830 = vmatprep.subr.mxu0 0.0
        %2831 = vmatpush1.msra.mxu0 0.0
        %2832 = vmatprep.subr.mxu0 0.0
        %2833 = vmatpush1.msra.mxu0 0.0
        %2834 = vmatprep.subr.mxu0 0.0
        %2835 = vmatpush1.msra.mxu0 0.0
        %2836 = vmatprep.subr.mxu0 0.0
        %2837 = vmatpush1.msra.mxu0 0.0
        %2838 = vmatprep.subr.mxu0 0.0
        %2839 = vmatpush1.msra.mxu0 0.0
        %2840 = vmatprep.subr.mxu0 0.0
        %2841 = vmatpush1.msra.mxu0 0.0
        %2842 = vmatprep.subr.mxu0 0.0
        %2843 = vmatpush1.msra.mxu0 0.0
        %2844 = vmatprep.subr.mxu0 0.0
        %2845 = vmatpush1.msra.mxu0 0.0
        %2846 = vmatprep.subr.mxu0 0.0
        %2847 = vmatpush1.msra.mxu0 0.0
        %2848 = vmatprep.subr.mxu0 0.0
        %2849 = vmatpush1.msra.mxu0 0.0
        %2850 = vmatprep.mubr.f32.mxu0 0.0
        %2851 = vmatmul.mubr.f32.gmra.mrb[0].mxu0 %v2688
        %v2852 = vpop.f32.mrb[0].mxu0
        %v2853 = vadd.f32 0.0, %v2852
        %v2854 = vpop.f32.mrb[0].mxu0
        %2855 = vmatprep.mubr.f32.mxu0 0.0
        %2856 = vmatmul.mubr.f32.gmra.mrb[0].mxu0 %v2691
        %v2857 = vpop.f32.mrb[0].mxu0
        %v2858 = vadd.f32 0.0, %v2857
        %v2859 = vpop.f32.mrb[0].mxu0
        %2860 = vmatprep.mubr.f32.mxu0 0.0
        %2861 = vmatmul.mubr.f32.gmra.mrb[0].mxu0 %v2694
        %v2862 = vpop.f32.mrb[0].mxu0
        %v2863 = vadd.f32 0.0, %v2862
        %v2864 = vpop.f32.mrb[0].mxu0
        %2865 = vmatprep.mubr.f32.mxu0 0.0
        %2866 = vmatmul.mubr.f32.gmra.mrb[0].mxu0 %v2697
        %v2867 = vpop.f32.mrb[0].mxu0
        %v2868 = vadd.f32 0.0, %v2867
        %v2869 = vpop.f32.mrb[0].mxu0
        %2870 = vmatprep.mubr.f32.mxu0 0.0
        %2871 = vmatmul.mubr.f32.gmra.mrb[0].mxu0 %v2700
        %v2872 = vpop.f32.mrb[0].mxu0
        %v2873 = vadd.f32 0.0, %v2872
        %v2874 = vpop.f32.mrb[0].mxu0
        %2875 = vmatprep.mubr.f32.mxu0 0.0
        %2876 = vmatmul.mubr.f32.gmra.mrb[0].mxu0 %v2703
        %v2877 = vpop.f32.mrb[0].mxu0
        %v2878 = vadd.f32 0.0, %v2877
        %v2879 = vpop.f32.mrb[0].mxu0
        %2880 = vmatprep.mubr.f32.mxu0 0.0
        %2881 = vmatmul.mubr.f32.gmra.mrb[0].mxu0 %v2706
        %v2882 = vpop.f32.mrb[0].mxu0
        %v2883 = vadd.f32 0.0, %v2882
        %v2884 = vpop.f32.mrb[0].mxu0
        %2885 = vmatprep.mubr.f32.mxu0 0.0
        %2886 = vmatmul.mubr.f32.gmra.mrb[0].mxu0 %v2709
        %v2887 = vpop.f32.mrb[0].mxu0
        %v2888 = vadd.f32 0.0, %v2887
        %v2889 = vpop.f32.mrb[0].mxu0
        %2890 = vmatprep.mubr.f32.mxu0 0.0
        %2891 = vmatmul.mubr.f32.gmra.mrb[0].mxu0 %v2712
        %v2892 = vpop.f32.mrb[0].mxu0
        %v2893 = vadd.f32 0.0, %v2892
        %v2894 = vpop.f32.mrb[0].mxu0
        %2895 = vmatprep.mubr.f32.mxu0 0.0
        %2896 = vmatmul.mubr.f32.gmra.mrb[0].mxu0 %v2715
        %v2897 = vpop.f32.mrb[0].mxu0
        %v2898 = vadd.f32 0.0, %v2897
        %v2899 = vpop.f32.mrb[0].mxu0
        %2900 = vmatprep.mubr.f32.mxu0 0.0
        %2901 = vmatmul.mubr.f32.gmra.mrb[0].mxu0 %v2718
        %v2902 = vpop.f32.mrb[0].mxu0
        %v2903 = vadd.f32 0.0, %v2902
        %v2904 = vpop.f32.mrb[0].mxu0
        %2905 = vmatprep.mubr.f32.mxu0 0.0
        %2906 = vmatmul.mubr.f32.gmra.mrb[0].mxu0 %v2721
        %v2907 = vpop.f32.mrb[0].mxu0
        %v2908 = vadd.f32 0.0, %v2907
        %v2909 = vpop.f32.mrb[0].mxu0
        %2910 = vmatprep.mubr.f32.mxu0 0.0
        %2911 = vmatmul.mubr.f32.gmra.mrb[0].mxu0 %v2724
        %v2912 = vpop.f32.mrb[0].mxu0
        %v2913 = vadd.f32 0.0, %v2912
        %v2914 = vpop.f32.mrb[0].mxu0
        %2915 = vmatprep.mubr.f32.mxu0 0.0
        %2916 = vmatmul.mubr.f32.gmra.mrb[0].mxu0 %v2727
        %v2917 = vpop.f32.mrb[0].mxu0
        %v2918 = vadd.f32 0.0, %v2917
        %v2919 = vpop.f32.mrb[0].mxu0
        %2920 = vmatprep.mubr.f32.mxu0 0.0
        %2921 = vmatmul.mubr.f32.gmra.mrb[0].mxu0 %v2730
        %v2922 = vpop.f32.mrb[0].mxu0
        %v2923 = vadd.f32 0.0, %v2922
        %v2924 = vpop.f32.mrb[0].mxu0
        %2925 = vmatprep.mubr.f32.mxu0 0.0
        %2926 = vmatmul.mubr.f32.gmra.mrb[0].mxu0 %v2733
        %v2927 = vpop.f32.mrb[0].mxu0
        %v2928 = vadd.f32 0.0, %v2927
        %v2929 = vpop.f32.mrb[0].mxu0
        %2930 = vmatprep.mubr.f32.mxu0 0.0
        %2931 = vmatmul.mubr.f32.gmra.mrb[0].mxu0 %v2736
        %v2932 = vpop.f32.mrb[0].mxu0
        %v2933 = vadd.f32 0.0, %v2932
        %v2934 = vpop.f32.mrb[0].mxu0
        %2935 = vmatprep.mubr.f32.mxu0 0.0
        %2936 = vmatmul.mubr.f32.gmra.mrb[0].mxu0 %v2739
        %v2937 = vpop.f32.mrb[0].mxu0
        %v2938 = vadd.f32 0.0, %v2937
        %v2939 = vpop.f32.mrb[0].mxu0
        %2940 = vmatprep.mubr.f32.mxu0 0.0
        %2941 = vmatmul.mubr.f32.gmra.mrb[0].mxu0 %v2742
        %v2942 = vpop.f32.mrb[0].mxu0
        %v2943 = vadd.f32 0.0, %v2942
        %v2944 = vpop.f32.mrb[0].mxu0
        %2945 = vmatprep.mubr.f32.mxu0 0.0
        %2946 = vmatmul.mubr.f32.gmra.mrb[0].mxu0 %v2745
        %v2947 = vpop.f32.mrb[0].mxu0
        %v2948 = vadd.f32 0.0, %v2947
        %v2949 = vpop.f32.mrb[0].mxu0
        %2950 = vmatprep.mubr.f32.mxu0 0.0
        %2951 = vmatmul.mubr.f32.gmra.mrb[0].mxu0 %v2748
        %v2952 = vpop.f32.mrb[0].mxu0
        %v2953 = vadd.f32 0.0, %v2952
        %v2954 = vpop.f32.mrb[0].mxu0
        %2955 = vmatprep.mubr.f32.mxu0 0.0
        %2956 = vmatmul.mubr.f32.gmra.mrb[0].mxu0 %v2751
        %v2957 = vpop.f32.mrb[0].mxu0
        %v2958 = vadd.f32 0.0, %v2957
        %v2959 = vpop.f32.mrb[0].mxu0
        %2960 = vmatprep.mubr.f32.mxu0 0.0
        %2961 = vmatmul.mubr.f32.gmra.mrb[0].mxu0 %v2754
        %v2962 = vpop.f32.mrb[0].mxu0
        %v2963 = vadd.f32 0.0, %v2962
        %v2964 = vpop.f32.mrb[0].mxu0
        %2965 = vmatprep.mubr.f32.mxu0 0.0
        %2966 = vmatmul.mubr.f32.gmra.mrb[0].mxu0 %v2757
        %v2967 = vpop.f32.mrb[0].mxu0
        %v2968 = vadd.f32 0.0, %v2967
        %v2969 = vpop.f32.mrb[0].mxu0
        %2970 = vmatprep.mubr.f32.mxu0 0.0
        %2971 = vmatmul.mubr.f32.gmra.mrb[0].mxu0 %v2760
        %v2972 = vpop.f32.mrb[0].mxu0
        %v2973 = vadd.f32 0.0, %v2972
        %v2974 = vpop.f32.mrb[0].mxu0
        %2975 = vmatprep.mubr.f32.mxu0 0.0
        %2976 = vmatmul.mubr.f32.gmra.mrb[0].mxu0 %v2763
        %v2977 = vpop.f32.mrb[0].mxu0
        %v2978 = vadd.f32 0.0, %v2977
        %v2979 = vpop.f32.mrb[0].mxu0
        %2980 = vmatprep.mubr.f32.mxu0 0.0
        %2981 = vmatmul.mubr.f32.gmra.mrb[0].mxu0 %v2766
        %v2982 = vpop.f32.mrb[0].mxu0
        %v2983 = vadd.f32 0.0, %v2982
        %v2984 = vpop.f32.mrb[0].mxu0
        %2985 = vmatprep.mubr.f32.mxu0 0.0
        %2986 = vmatmul.mubr.f32.gmra.mrb[0].mxu0 %v2769
        %v2987 = vpop.f32.mrb[0].mxu0
        %v2988 = vadd.f32 0.0, %v2987
        %v2989 = vpop.f32.mrb[0].mxu0
        %2990 = vmatprep.mubr.f32.mxu0 0.0
        %2991 = vmatmul.mubr.f32.gmra.mrb[0].mxu0 %v2772
        %v2992 = vpop.f32.mrb[0].mxu0
        %v2993 = vadd.f32 0.0, %v2992
        %v2994 = vpop.f32.mrb[0].mxu0
        %2995 = vmatprep.mubr.f32.mxu0 0.0
        %2996 = vmatmul.mubr.f32.gmra.mrb[0].mxu0 %v2775
        %v2997 = vpop.f32.mrb[0].mxu0
        %v2998 = vadd.f32 0.0, %v2997
        %v2999 = vpop.f32.mrb[0].mxu0
        %3000 = vmatprep.mubr.f32.mxu0 0.0
        %3001 = vmatmul.mubr.f32.gmra.mrb[0].mxu0 %v2778
        %v3002 = vpop.f32.mrb[0].mxu0
        %v3003 = vadd.f32 0.0, %v3002
        %v3004 = vpop.f32.mrb[0].mxu0
        %3005 = vmatprep.mubr.f32.mxu0 0.0
        %3006 = vmatmul.mubr.f32.gmra.mrb[0].mxu0 %v2781
        %v3007 = vpop.f32.mrb[0].mxu0
        %v3008 = vadd.f32 0.0, %v3007
        %v3009 = vpop.f32.mrb[0].mxu0
        %3010 = vdwg.mxu0
        %v3011 = vadd.f32 %v2622, %v2853
        %v3012 = vadd.f32 %v2623, %v2858
        %v3013 = vadd.f32 %v2624, %v2863
        %v3014 = vadd.f32 %v2625, %v2868
        %v3015 = vadd.f32 %v2626, %v2873
        %v3016 = vadd.f32 %v2627, %v2878
        %v3017 = vadd.f32 %v2628, %v2883
        %v3018 = vadd.f32 %v2629, %v2888
        %v3019 = vadd.f32 %v2630, %v2893
        %v3020 = vadd.f32 %v2631, %v2898
        %v3021 = vadd.f32 %v2632, %v2903
        %v3022 = vadd.f32 %v2633, %v2908
        %v3023 = vadd.f32 %v2634, %v2913
        %v3024 = vadd.f32 %v2635, %v2918
        %v3025 = vadd.f32 %v2636, %v2923
        %v3026 = vadd.f32 %v2637, %v2928
        %v3027 = vadd.f32 %v2638, %v2933
        %v3028 = vadd.f32 %v2639, %v2938
        %v3029 = vadd.f32 %v2640, %v2943
        %v3030 = vadd.f32 %v2641, %v2948
        %v3031 = vadd.f32 %v2642, %v2953
        %v3032 = vadd.f32 %v2643, %v2958
        %v3033 = vadd.f32 %v2644, %v2963
        %v3034 = vadd.f32 %v2645, %v2968
        %v3035 = vadd.f32 %v2646, %v2973
        %v3036 = vadd.f32 %v2647, %v2978
        %v3037 = vadd.f32 %v2648, %v2983
        %v3038 = vadd.f32 %v2649, %v2988
        %v3039 = vadd.f32 %v2650, %v2993
        %v3040 = vadd.f32 %v2651, %v2998
        %v3041 = vadd.f32 %v2652, %v3003
        %v3042 = vadd.f32 %v2653, %v3008
        %v3043 = vld [vmem:[%s2654 + $0x1] sm:$0xff]
        %v3044 = vld [vmem:[%s2654 + $0x9] sm:$0xff]
        %v3045 = vld [vmem:[%s2654 + $0x19] sm:$0xff]
        %v3046 = vld [vmem:[%s2654 + $0x21] sm:$0xff]
        %v3047 = vld [vmem:[%s2654 + $0x31] sm:$0xff]
        %v3048 = vld [vmem:[%s2654 + $0x39] sm:$0xff]
        %v3049 = vld [vmem:[%s2654 + $0x49] sm:$0xff]
        %v3050 = vld [vmem:[%s2654 + $0x51] sm:$0xff]
        %v3051 = vld [vmem:[%s2654 + $0x61] sm:$0xff]
        %v3052 = vld [vmem:[%s2654 + $0x69] sm:$0xff]
        %v3053 = vld [vmem:[%s2654 + $0x79] sm:$0xff]
        %v3054 = vld [vmem:[%s2654 + $0x81] sm:$0xff]
        %v3055 = vld [vmem:[%s2654 + $0x91] sm:$0xff]
        %v3056 = vld [vmem:[%s2654 + $0x99] sm:$0xff]
        %v3057 = vld [vmem:[%s2654 + $0xa9] sm:$0xff]
        %v3058 = vld [vmem:[%s2654 + $0xb1] sm:$0xff]
        %v3059 = vld [vmem:[%s2654 + $0xc1] sm:$0xff]
        %v3060 = vld [vmem:[%s2654 + $0xc9] sm:$0xff]
        %v3061 = vld [vmem:[%s2654 + $0xd9] sm:$0xff]
        %v3062 = vld [vmem:[%s2654 + $0xe1] sm:$0xff]
        %v3063 = vld [vmem:[%s2654 + $0xf1] sm:$0xff]
        %v3064 = vld [vmem:[%s2654 + $0xf9] sm:$0xff]
        %v3065 = vld [vmem:[%s2654 + $0x109] sm:$0xff]
        %v3066 = vld [vmem:[%s2654 + $0x111] sm:$0xff]
        %v3067 = vld [vmem:[%s2654 + $0x121] sm:$0xff]
        %v3068 = vld [vmem:[%s2654 + $0x129] sm:$0xff]
        %v3069 = vld [vmem:[%s2654 + $0x139] sm:$0xff]
        %v3070 = vld [vmem:[%s2654 + $0x141] sm:$0xff]
        %v3071 = vld [vmem:[%s2654 + $0x151] sm:$0xff]
        %v3072 = vld [vmem:[%s2654 + $0x159] sm:$0xff]
        %v3073 = vld [vmem:[%s2654 + $0x169] sm:$0xff]
        %v3074 = vld [vmem:[%s2654 + $0x171] sm:$0xff]
        %v3075 = vrot.slane %v387, 4
        %v3077 = vsel %vm295, %v3043, 0
        %v3080 = vsel %vm295, %v3044, 0
        %v3083 = vsel %vm295, %v3045, 0
        %v3086 = vsel %vm295, %v3046, 0
        %v3089 = vsel %vm295, %v3047, 0
        %v3092 = vsel %vm295, %v3048, 0
        %v3095 = vsel %vm295, %v3049, 0
        %v3098 = vsel %vm295, %v3050, 0
        %v3101 = vsel %vm295, %v3051, 0
        %v3104 = vsel %vm295, %v3052, 0
        %v3107 = vsel %vm295, %v3053, 0
        %v3110 = vsel %vm295, %v3054, 0
        %v3113 = vsel %vm295, %v3055, 0
        %v3116 = vsel %vm295, %v3056, 0
        %v3119 = vsel %vm295, %v3057, 0
        %v3122 = vsel %vm295, %v3058, 0
        %v3125 = vsel %vm295, %v3059, 0
        %v3128 = vsel %vm295, %v3060, 0
        %v3131 = vsel %vm295, %v3061, 0
        %v3134 = vsel %vm295, %v3062, 0
        %v3137 = vsel %vm295, %v3063, 0
        %v3140 = vsel %vm295, %v3064, 0
        %v3143 = vsel %vm295, %v3065, 0
        %v3146 = vsel %vm295, %v3066, 0
        %v3149 = vsel %vm295, %v3067, 0
        %v3152 = vsel %vm295, %v3068, 0
        %v3155 = vsel %vm295, %v3069, 0
        %v3158 = vsel %vm295, %v3070, 0
        %v3161 = vsel %vm295, %v3071, 0
        %v3164 = vsel %vm295, %v3072, 0
        %v3167 = vsel %vm295, %v3073, 0
        %v3170 = vsel %vm295, %v3074, 0
        %v3172 = vsel %vm551, %v3075, 0
        %3174 = vmatprep.subr.mxu0 0.0
        %3175 = vmatpush1.msra.mxu0 %v3172
        %3176 = vmatprep.subr.mxu0 0.0
        %3177 = vmatpush1.msra.mxu0 0.0
        %3178 = vmatprep.subr.mxu0 0.0
        %3179 = vmatpush1.msra.mxu0 0.0
        %3180 = vmatprep.subr.mxu0 0.0
        %3181 = vmatpush1.msra.mxu0 0.0
        %3182 = vmatprep.subr.mxu0 0.0
        %3183 = vmatpush1.msra.mxu0 0.0
        %3184 = vmatprep.subr.mxu0 0.0
        %3185 = vmatpush1.msra.mxu0 0.0
        %3186 = vmatprep.subr.mxu0 0.0
        %3187 = vmatpush1.msra.mxu0 0.0
        %3188 = vmatprep.subr.mxu0 0.0
        %3189 = vmatpush1.msra.mxu0 0.0
        %3190 = vmatprep.subr.mxu0 0.0
        %3191 = vmatpush1.msra.mxu0 0.0
        %3192 = vmatprep.subr.mxu0 0.0
        %3193 = vmatpush1.msra.mxu0 0.0
        %3194 = vmatprep.subr.mxu0 0.0
        %3195 = vmatpush1.msra.mxu0 0.0
        %3196 = vmatprep.subr.mxu0 0.0
        %3197 = vmatpush1.msra.mxu0 0.0
        %3198 = vmatprep.subr.mxu0 0.0
        %3199 = vmatpush1.msra.mxu0 0.0
        %3200 = vmatprep.subr.mxu0 0.0
        %3201 = vmatpush1.msra.mxu0 0.0
        %3202 = vmatprep.subr.mxu0 0.0
        %3203 = vmatpush1.msra.mxu0 0.0
        %3204 = vmatprep.subr.mxu0 0.0
        %3205 = vmatpush1.msra.mxu0 0.0
        %3206 = vmatprep.subr.mxu0 0.0
        %3207 = vmatpush1.msra.mxu0 0.0
        %3208 = vmatprep.subr.mxu0 0.0
        %3209 = vmatpush1.msra.mxu0 0.0
        %3210 = vmatprep.subr.mxu0 0.0
        %3211 = vmatpush1.msra.mxu0 0.0
        %3212 = vmatprep.subr.mxu0 0.0
        %3213 = vmatpush1.msra.mxu0 0.0
        %3214 = vmatprep.subr.mxu0 0.0
        %3215 = vmatpush1.msra.mxu0 0.0
        %3216 = vmatprep.subr.mxu0 0.0
        %3217 = vmatpush1.msra.mxu0 0.0
        %3218 = vmatprep.subr.mxu0 0.0
        %3219 = vmatpush1.msra.mxu0 0.0
        %3220 = vmatprep.subr.mxu0 0.0
        %3221 = vmatpush1.msra.mxu0 0.0
        %3222 = vmatprep.subr.mxu0 0.0
        %3223 = vmatpush1.msra.mxu0 0.0
        %3224 = vmatprep.subr.mxu0 0.0
        %3225 = vmatpush1.msra.mxu0 0.0
        %3226 = vmatprep.subr.mxu0 0.0
        %3227 = vmatpush1.msra.mxu0 0.0
        %3228 = vmatprep.subr.mxu0 0.0
        %3229 = vmatpush1.msra.mxu0 0.0
        %3230 = vmatprep.subr.mxu0 0.0
        %3231 = vmatpush1.msra.mxu0 0.0
        %3232 = vmatprep.subr.mxu0 0.0
        %3233 = vmatpush1.msra.mxu0 0.0
        %3234 = vmatprep.subr.mxu0 0.0
        %3235 = vmatpush1.msra.mxu0 0.0
        %3236 = vmatprep.subr.mxu0 0.0
        %3237 = vmatpush1.msra.mxu0 0.0
        %3238 = vmatprep.mubr.f32.mxu0 0.0
        %3239 = vmatmul.mubr.f32.gmra.mrb[0].mxu0 %v3077
        %v3240 = vpop.f32.mrb[0].mxu0
        %v3241 = vadd.f32 0.0, %v3240
        %v3242 = vpop.f32.mrb[0].mxu0
        %3243 = vmatprep.mubr.f32.mxu0 0.0
        %3244 = vmatmul.mubr.f32.gmra.mrb[0].mxu0 %v3080
        %v3245 = vpop.f32.mrb[0].mxu0
        %v3246 = vadd.f32 0.0, %v3245
        %v3247 = vpop.f32.mrb[0].mxu0
        %3248 = vmatprep.mubr.f32.mxu0 0.0
        %3249 = vmatmul.mubr.f32.gmra.mrb[0].mxu0 %v3083
        %v3250 = vpop.f32.mrb[0].mxu0
        %v3251 = vadd.f32 0.0, %v3250
        %v3252 = vpop.f32.mrb[0].mxu0
        %3253 = vmatprep.mubr.f32.mxu0 0.0
        %3254 = vmatmul.mubr.f32.gmra.mrb[0].mxu0 %v3086
        %v3255 = vpop.f32.mrb[0].mxu0
        %v3256 = vadd.f32 0.0, %v3255
        %v3257 = vpop.f32.mrb[0].mxu0
        %3258 = vmatprep.mubr.f32.mxu0 0.0
        %3259 = vmatmul.mubr.f32.gmra.mrb[0].mxu0 %v3089
        %v3260 = vpop.f32.mrb[0].mxu0
        %v3261 = vadd.f32 0.0, %v3260
        %v3262 = vpop.f32.mrb[0].mxu0
        %3263 = vmatprep.mubr.f32.mxu0 0.0
        %3264 = vmatmul.mubr.f32.gmra.mrb[0].mxu0 %v3092
        %v3265 = vpop.f32.mrb[0].mxu0
        %v3266 = vadd.f32 0.0, %v3265
        %v3267 = vpop.f32.mrb[0].mxu0
        %3268 = vmatprep.mubr.f32.mxu0 0.0
        %3269 = vmatmul.mubr.f32.gmra.mrb[0].mxu0 %v3095
        %v3270 = vpop.f32.mrb[0].mxu0
        %v3271 = vadd.f32 0.0, %v3270
        %v3272 = vpop.f32.mrb[0].mxu0
        %3273 = vmatprep.mubr.f32.mxu0 0.0
        %3274 = vmatmul.mubr.f32.gmra.mrb[0].mxu0 %v3098
        %v3275 = vpop.f32.mrb[0].mxu0
        %v3276 = vadd.f32 0.0, %v3275
        %v3277 = vpop.f32.mrb[0].mxu0
        %3278 = vmatprep.mubr.f32.mxu0 0.0
        %3279 = vmatmul.mubr.f32.gmra.mrb[0].mxu0 %v3101
        %v3280 = vpop.f32.mrb[0].mxu0
        %v3281 = vadd.f32 0.0, %v3280
        %v3282 = vpop.f32.mrb[0].mxu0
        %3283 = vmatprep.mubr.f32.mxu0 0.0
        %3284 = vmatmul.mubr.f32.gmra.mrb[0].mxu0 %v3104
        %v3285 = vpop.f32.mrb[0].mxu0
        %v3286 = vadd.f32 0.0, %v3285
        %v3287 = vpop.f32.mrb[0].mxu0
        %3288 = vmatprep.mubr.f32.mxu0 0.0
        %3289 = vmatmul.mubr.f32.gmra.mrb[0].mxu0 %v3107
        %v3290 = vpop.f32.mrb[0].mxu0
        %v3291 = vadd.f32 0.0, %v3290
        %v3292 = vpop.f32.mrb[0].mxu0
        %3293 = vmatprep.mubr.f32.mxu0 0.0
        %3294 = vmatmul.mubr.f32.gmra.mrb[0].mxu0 %v3110
        %v3295 = vpop.f32.mrb[0].mxu0
        %v3296 = vadd.f32 0.0, %v3295
        %v3297 = vpop.f32.mrb[0].mxu0
        %3298 = vmatprep.mubr.f32.mxu0 0.0
        %3299 = vmatmul.mubr.f32.gmra.mrb[0].mxu0 %v3113
        %v3300 = vpop.f32.mrb[0].mxu0
        %v3301 = vadd.f32 0.0, %v3300
        %v3302 = vpop.f32.mrb[0].mxu0
        %3303 = vmatprep.mubr.f32.mxu0 0.0
        %3304 = vmatmul.mubr.f32.gmra.mrb[0].mxu0 %v3116
        %v3305 = vpop.f32.mrb[0].mxu0
        %v3306 = vadd.f32 0.0, %v3305
        %v3307 = vpop.f32.mrb[0].mxu0
        %3308 = vmatprep.mubr.f32.mxu0 0.0
        %3309 = vmatmul.mubr.f32.gmra.mrb[0].mxu0 %v3119
        %v3310 = vpop.f32.mrb[0].mxu0
        %v3311 = vadd.f32 0.0, %v3310
        %v3312 = vpop.f32.mrb[0].mxu0
        %3313 = vmatprep.mubr.f32.mxu0 0.0
        %3314 = vmatmul.mubr.f32.gmra.mrb[0].mxu0 %v3122
        %v3315 = vpop.f32.mrb[0].mxu0
        %v3316 = vadd.f32 0.0, %v3315
        %v3317 = vpop.f32.mrb[0].mxu0
        %3318 = vmatprep.mubr.f32.mxu0 0.0
        %3319 = vmatmul.mubr.f32.gmra.mrb[0].mxu0 %v3125
        %v3320 = vpop.f32.mrb[0].mxu0
        %v3321 = vadd.f32 0.0, %v3320
        %v3322 = vpop.f32.mrb[0].mxu0
        %3323 = vmatprep.mubr.f32.mxu0 0.0
        %3324 = vmatmul.mubr.f32.gmra.mrb[0].mxu0 %v3128
        %v3325 = vpop.f32.mrb[0].mxu0
        %v3326 = vadd.f32 0.0, %v3325
        %v3327 = vpop.f32.mrb[0].mxu0
        %3328 = vmatprep.mubr.f32.mxu0 0.0
        %3329 = vmatmul.mubr.f32.gmra.mrb[0].mxu0 %v3131
        %v3330 = vpop.f32.mrb[0].mxu0
        %v3331 = vadd.f32 0.0, %v3330
        %v3332 = vpop.f32.mrb[0].mxu0
        %3333 = vmatprep.mubr.f32.mxu0 0.0
        %3334 = vmatmul.mubr.f32.gmra.mrb[0].mxu0 %v3134
        %v3335 = vpop.f32.mrb[0].mxu0
        %v3336 = vadd.f32 0.0, %v3335
        %v3337 = vpop.f32.mrb[0].mxu0
        %3338 = vmatprep.mubr.f32.mxu0 0.0
        %3339 = vmatmul.mubr.f32.gmra.mrb[0].mxu0 %v3137
        %v3340 = vpop.f32.mrb[0].mxu0
        %v3341 = vadd.f32 0.0, %v3340
        %v3342 = vpop.f32.mrb[0].mxu0
        %3343 = vmatprep.mubr.f32.mxu0 0.0
        %3344 = vmatmul.mubr.f32.gmra.mrb[0].mxu0 %v3140
        %v3345 = vpop.f32.mrb[0].mxu0
        %v3346 = vadd.f32 0.0, %v3345
        %v3347 = vpop.f32.mrb[0].mxu0
        %3348 = vmatprep.mubr.f32.mxu0 0.0
        %3349 = vmatmul.mubr.f32.gmra.mrb[0].mxu0 %v3143
        %v3350 = vpop.f32.mrb[0].mxu0
        %v3351 = vadd.f32 0.0, %v3350
        %v3352 = vpop.f32.mrb[0].mxu0
        %3353 = vmatprep.mubr.f32.mxu0 0.0
        %3354 = vmatmul.mubr.f32.gmra.mrb[0].mxu0 %v3146
        %v3355 = vpop.f32.mrb[0].mxu0
        %v3356 = vadd.f32 0.0, %v3355
        %v3357 = vpop.f32.mrb[0].mxu0
        %3358 = vmatprep.mubr.f32.mxu0 0.0
        %3359 = vmatmul.mubr.f32.gmra.mrb[0].mxu0 %v3149
        %v3360 = vpop.f32.mrb[0].mxu0
        %v3361 = vadd.f32 0.0, %v3360
        %v3362 = vpop.f32.mrb[0].mxu0
        %3363 = vmatprep.mubr.f32.mxu0 0.0
        %3364 = vmatmul.mubr.f32.gmra.mrb[0].mxu0 %v3152
        %v3365 = vpop.f32.mrb[0].mxu0
        %v3366 = vadd.f32 0.0, %v3365
        %v3367 = vpop.f32.mrb[0].mxu0
        %3368 = vmatprep.mubr.f32.mxu0 0.0
        %3369 = vmatmul.mubr.f32.gmra.mrb[0].mxu0 %v3155
        %v3370 = vpop.f32.mrb[0].mxu0
        %v3371 = vadd.f32 0.0, %v3370
        %v3372 = vpop.f32.mrb[0].mxu0
        %3373 = vmatprep.mubr.f32.mxu0 0.0
        %3374 = vmatmul.mubr.f32.gmra.mrb[0].mxu0 %v3158
        %v3375 = vpop.f32.mrb[0].mxu0
        %v3376 = vadd.f32 0.0, %v3375
        %v3377 = vpop.f32.mrb[0].mxu0
        %3378 = vmatprep.mubr.f32.mxu0 0.0
        %3379 = vmatmul.mubr.f32.gmra.mrb[0].mxu0 %v3161
        %v3380 = vpop.f32.mrb[0].mxu0
        %v3381 = vadd.f32 0.0, %v3380
        %v3382 = vpop.f32.mrb[0].mxu0
        %3383 = vmatprep.mubr.f32.mxu0 0.0
        %3384 = vmatmul.mubr.f32.gmra.mrb[0].mxu0 %v3164
        %v3385 = vpop.f32.mrb[0].mxu0
        %v3386 = vadd.f32 0.0, %v3385
        %v3387 = vpop.f32.mrb[0].mxu0
        %3388 = vmatprep.mubr.f32.mxu0 0.0
        %3389 = vmatmul.mubr.f32.gmra.mrb[0].mxu0 %v3167
        %v3390 = vpop.f32.mrb[0].mxu0
        %v3391 = vadd.f32 0.0, %v3390
        %v3392 = vpop.f32.mrb[0].mxu0
        %3393 = vmatprep.mubr.f32.mxu0 0.0
        %3394 = vmatmul.mubr.f32.gmra.mrb[0].mxu0 %v3170
        %v3395 = vpop.f32.mrb[0].mxu0
        %v3396 = vadd.f32 0.0, %v3395
        %v3397 = vpop.f32.mrb[0].mxu0
        %3398 = vdwg.mxu0
        %v3399 = vadd.f32 %v3011, %v3241
        %v3400 = vadd.f32 %v3012, %v3246
        %v3401 = vadd.f32 %v3013, %v3251
        %v3402 = vadd.f32 %v3014, %v3256
        %v3403 = vadd.f32 %v3015, %v3261
        %v3404 = vadd.f32 %v3016, %v3266
        %v3405 = vadd.f32 %v3017, %v3271
        %v3406 = vadd.f32 %v3018, %v3276
        %v3407 = vadd.f32 %v3019, %v3281
        %v3408 = vadd.f32 %v3020, %v3286
        %v3409 = vadd.f32 %v3021, %v3291
        %v3410 = vadd.f32 %v3022, %v3296
        %v3411 = vadd.f32 %v3023, %v3301
        %v3412 = vadd.f32 %v3024, %v3306
        %v3413 = vadd.f32 %v3025, %v3311
        %v3414 = vadd.f32 %v3026, %v3316
        %v3415 = vadd.f32 %v3027, %v3321
        %v3416 = vadd.f32 %v3028, %v3326
        %v3417 = vadd.f32 %v3029, %v3331
        %v3418 = vadd.f32 %v3030, %v3336
        %v3419 = vadd.f32 %v3031, %v3341
        %v3420 = vadd.f32 %v3032, %v3346
        %v3421 = vadd.f32 %v3033, %v3351
        %v3422 = vadd.f32 %v3034, %v3356
        %v3423 = vadd.f32 %v3035, %v3361
        %v3424 = vadd.f32 %v3036, %v3366
        %v3425 = vadd.f32 %v3037, %v3371
        %v3426 = vadd.f32 %v3038, %v3376
        %v3427 = vadd.f32 %v3039, %v3381
        %v3428 = vadd.f32 %v3040, %v3386
        %v3429 = vadd.f32 %v3041, %v3391
        %v3430 = vadd.f32 %v3042, %v3396
        %v3431 = vld [vmem:[%s2654 + $0x2] sm:$0xff]
        %v3432 = vld [vmem:[%s2654 + $0xa] sm:$0xff]
        %v3433 = vld [vmem:[%s2654 + $0x1a] sm:$0xff]
        %v3434 = vld [vmem:[%s2654 + $0x22] sm:$0xff]
        %v3435 = vld [vmem:[%s2654 + $0x32] sm:$0xff]
        %v3436 = vld [vmem:[%s2654 + $0x3a] sm:$0xff]
        %v3437 = vld [vmem:[%s2654 + $0x4a] sm:$0xff]
        %v3438 = vld [vmem:[%s2654 + $0x52] sm:$0xff]
        %v3439 = vld [vmem:[%s2654 + $0x62] sm:$0xff]
        %v3440 = vld [vmem:[%s2654 + $0x6a] sm:$0xff]
        %v3441 = vld [vmem:[%s2654 + $0x7a] sm:$0xff]
        %v3442 = vld [vmem:[%s2654 + $0x82] sm:$0xff]
        %v3443 = vld [vmem:[%s2654 + $0x92] sm:$0xff]
        %v3444 = vld [vmem:[%s2654 + $0x9a] sm:$0xff]
        %v3445 = vld [vmem:[%s2654 + $0xaa] sm:$0xff]
        %v3446 = vld [vmem:[%s2654 + $0xb2] sm:$0xff]
        %v3447 = vld [vmem:[%s2654 + $0xc2] sm:$0xff]
        %v3448 = vld [vmem:[%s2654 + $0xca] sm:$0xff]
        %v3449 = vld [vmem:[%s2654 + $0xda] sm:$0xff]
        %v3450 = vld [vmem:[%s2654 + $0xe2] sm:$0xff]
        %v3451 = vld [vmem:[%s2654 + $0xf2] sm:$0xff]
        %v3452 = vld [vmem:[%s2654 + $0xfa] sm:$0xff]
        %v3453 = vld [vmem:[%s2654 + $0x10a] sm:$0xff]
        %v3454 = vld [vmem:[%s2654 + $0x112] sm:$0xff]
        %v3455 = vld [vmem:[%s2654 + $0x122] sm:$0xff]
        %v3456 = vld [vmem:[%s2654 + $0x12a] sm:$0xff]
        %v3457 = vld [vmem:[%s2654 + $0x13a] sm:$0xff]
        %v3458 = vld [vmem:[%s2654 + $0x142] sm:$0xff]
        %v3459 = vld [vmem:[%s2654 + $0x152] sm:$0xff]
        %v3460 = vld [vmem:[%s2654 + $0x15a] sm:$0xff]
        %v3461 = vld [vmem:[%s2654 + $0x16a] sm:$0xff]
        %v3462 = vld [vmem:[%s2654 + $0x172] sm:$0xff]
        %v3464 = vsel %vm295, %v3431, 0
        %v3467 = vsel %vm295, %v3432, 0
        %v3470 = vsel %vm295, %v3433, 0
        %v3473 = vsel %vm295, %v3434, 0
        %v3476 = vsel %vm295, %v3435, 0
        %v3479 = vsel %vm295, %v3436, 0
        %v3482 = vsel %vm295, %v3437, 0
        %v3485 = vsel %vm295, %v3438, 0
        %v3488 = vsel %vm295, %v3439, 0
        %v3491 = vsel %vm295, %v3440, 0
        %v3494 = vsel %vm295, %v3441, 0
        %v3497 = vsel %vm295, %v3442, 0
        %v3500 = vsel %vm295, %v3443, 0
        %v3503 = vsel %vm295, %v3444, 0
        %v3506 = vsel %vm295, %v3445, 0
        %v3509 = vsel %vm295, %v3446, 0
        %v3512 = vsel %vm295, %v3447, 0
        %v3515 = vsel %vm295, %v3448, 0
        %v3518 = vsel %vm295, %v3449, 0
        %v3521 = vsel %vm295, %v3450, 0
        %v3524 = vsel %vm295, %v3451, 0
        %v3527 = vsel %vm295, %v3452, 0
        %v3530 = vsel %vm295, %v3453, 0
        %v3533 = vsel %vm295, %v3454, 0
        %v3536 = vsel %vm295, %v3455, 0
        %v3539 = vsel %vm295, %v3456, 0
        %v3542 = vsel %vm295, %v3457, 0
        %v3545 = vsel %vm295, %v3458, 0
        %v3548 = vsel %vm295, %v3459, 0
        %v3551 = vsel %vm295, %v3460, 0
        %v3554 = vsel %vm295, %v3461, 0
        %v3557 = vsel %vm295, %v3462, 0
        %v3560 = vsel %vm551, %v388, 0
        %3562 = vmatprep.subr.mxu0 0.0
        %3563 = vmatpush1.msra.mxu0 %v3560
        %3564 = vmatprep.subr.mxu0 0.0
        %3565 = vmatpush1.msra.mxu0 0.0
        %3566 = vmatprep.subr.mxu0 0.0
        %3567 = vmatpush1.msra.mxu0 0.0
        %3568 = vmatprep.subr.mxu0 0.0
        %3569 = vmatpush1.msra.mxu0 0.0
        %3570 = vmatprep.subr.mxu0 0.0
        %3571 = vmatpush1.msra.mxu0 0.0
        %3572 = vmatprep.subr.mxu0 0.0
        %3573 = vmatpush1.msra.mxu0 0.0
        %3574 = vmatprep.subr.mxu0 0.0
        %3575 = vmatpush1.msra.mxu0 0.0
        %3576 = vmatprep.subr.mxu0 0.0
        %3577 = vmatpush1.msra.mxu0 0.0
        %3578 = vmatprep.subr.mxu0 0.0
        %3579 = vmatpush1.msra.mxu0 0.0
        %3580 = vmatprep.subr.mxu0 0.0
        %3581 = vmatpush1.msra.mxu0 0.0
        %3582 = vmatprep.subr.mxu0 0.0
        %3583 = vmatpush1.msra.mxu0 0.0
        %3584 = vmatprep.subr.mxu0 0.0
        %3585 = vmatpush1.msra.mxu0 0.0
        %3586 = vmatprep.subr.mxu0 0.0
        %3587 = vmatpush1.msra.mxu0 0.0
        %3588 = vmatprep.subr.mxu0 0.0
        %3589 = vmatpush1.msra.mxu0 0.0
        %3590 = vmatprep.subr.mxu0 0.0
        %3591 = vmatpush1.msra.mxu0 0.0
        %3592 = vmatprep.subr.mxu0 0.0
        %3593 = vmatpush1.msra.mxu0 0.0
        %3594 = vmatprep.subr.mxu0 0.0
        %3595 = vmatpush1.msra.mxu0 0.0
        %3596 = vmatprep.subr.mxu0 0.0
        %3597 = vmatpush1.msra.mxu0 0.0
        %3598 = vmatprep.subr.mxu0 0.0
        %3599 = vmatpush1.msra.mxu0 0.0
        %3600 = vmatprep.subr.mxu0 0.0
        %3601 = vmatpush1.msra.mxu0 0.0
        %3602 = vmatprep.subr.mxu0 0.0
        %3603 = vmatpush1.msra.mxu0 0.0
        %3604 = vmatprep.subr.mxu0 0.0
        %3605 = vmatpush1.msra.mxu0 0.0
        %3606 = vmatprep.subr.mxu0 0.0
        %3607 = vmatpush1.msra.mxu0 0.0
        %3608 = vmatprep.subr.mxu0 0.0
        %3609 = vmatpush1.msra.mxu0 0.0
        %3610 = vmatprep.subr.mxu0 0.0
        %3611 = vmatpush1.msra.mxu0 0.0
        %3612 = vmatprep.subr.mxu0 0.0
        %3613 = vmatpush1.msra.mxu0 0.0
        %3614 = vmatprep.subr.mxu0 0.0
        %3615 = vmatpush1.msra.mxu0 0.0
        %3616 = vmatprep.subr.mxu0 0.0
        %3617 = vmatpush1.msra.mxu0 0.0
        %3618 = vmatprep.subr.mxu0 0.0
        %3619 = vmatpush1.msra.mxu0 0.0
        %3620 = vmatprep.subr.mxu0 0.0
        %3621 = vmatpush1.msra.mxu0 0.0
        %3622 = vmatprep.subr.mxu0 0.0
        %3623 = vmatpush1.msra.mxu0 0.0
        %3624 = vmatprep.subr.mxu0 0.0
        %3625 = vmatpush1.msra.mxu0 0.0
        %3626 = vmatprep.mubr.f32.mxu0 0.0
        %3627 = vmatmul.mubr.f32.gmra.mrb[0].mxu0 %v3464
        %v3628 = vpop.f32.mrb[0].mxu0
        %v3629 = vadd.f32 0.0, %v3628
        %v3630 = vpop.f32.mrb[0].mxu0
        %3631 = vmatprep.mubr.f32.mxu0 0.0
        %3632 = vmatmul.mubr.f32.gmra.mrb[0].mxu0 %v3467
        %v3633 = vpop.f32.mrb[0].mxu0
        %v3634 = vadd.f32 0.0, %v3633
        %v3635 = vpop.f32.mrb[0].mxu0
        %3636 = vmatprep.mubr.f32.mxu0 0.0
        %3637 = vmatmul.mubr.f32.gmra.mrb[0].mxu0 %v3470
        %v3638 = vpop.f32.mrb[0].mxu0
        %v3639 = vadd.f32 0.0, %v3638
        %v3640 = vpop.f32.mrb[0].mxu0
        %3641 = vmatprep.mubr.f32.mxu0 0.0
        %3642 = vmatmul.mubr.f32.gmra.mrb[0].mxu0 %v3473
        %v3643 = vpop.f32.mrb[0].mxu0
        %v3644 = vadd.f32 0.0, %v3643
        %v3645 = vpop.f32.mrb[0].mxu0
        %3646 = vmatprep.mubr.f32.mxu0 0.0
        %3647 = vmatmul.mubr.f32.gmra.mrb[0].mxu0 %v3476
        %v3648 = vpop.f32.mrb[0].mxu0
        %v3649 = vadd.f32 0.0, %v3648
        %v3650 = vpop.f32.mrb[0].mxu0
        %3651 = vmatprep.mubr.f32.mxu0 0.0
        %3652 = vmatmul.mubr.f32.gmra.mrb[0].mxu0 %v3479
        %v3653 = vpop.f32.mrb[0].mxu0
        %v3654 = vadd.f32 0.0, %v3653
        %v3655 = vpop.f32.mrb[0].mxu0
        %3656 = vmatprep.mubr.f32.mxu0 0.0
        %3657 = vmatmul.mubr.f32.gmra.mrb[0].mxu0 %v3482
        %v3658 = vpop.f32.mrb[0].mxu0
        %v3659 = vadd.f32 0.0, %v3658
        %v3660 = vpop.f32.mrb[0].mxu0
        %3661 = vmatprep.mubr.f32.mxu0 0.0
        %3662 = vmatmul.mubr.f32.gmra.mrb[0].mxu0 %v3485
        %v3663 = vpop.f32.mrb[0].mxu0
        %v3664 = vadd.f32 0.0, %v3663
        %v3665 = vpop.f32.mrb[0].mxu0
        %3666 = vmatprep.mubr.f32.mxu0 0.0
        %3667 = vmatmul.mubr.f32.gmra.mrb[0].mxu0 %v3488
        %v3668 = vpop.f32.mrb[0].mxu0
        %v3669 = vadd.f32 0.0, %v3668
        %v3670 = vpop.f32.mrb[0].mxu0
        %3671 = vmatprep.mubr.f32.mxu0 0.0
        %3672 = vmatmul.mubr.f32.gmra.mrb[0].mxu0 %v3491
        %v3673 = vpop.f32.mrb[0].mxu0
        %v3674 = vadd.f32 0.0, %v3673
        %v3675 = vpop.f32.mrb[0].mxu0
        %3676 = vmatprep.mubr.f32.mxu0 0.0
        %3677 = vmatmul.mubr.f32.gmra.mrb[0].mxu0 %v3494
        %v3678 = vpop.f32.mrb[0].mxu0
        %v3679 = vadd.f32 0.0, %v3678
        %v3680 = vpop.f32.mrb[0].mxu0
        %3681 = vmatprep.mubr.f32.mxu0 0.0
        %3682 = vmatmul.mubr.f32.gmra.mrb[0].mxu0 %v3497
        %v3683 = vpop.f32.mrb[0].mxu0
        %v3684 = vadd.f32 0.0, %v3683
        %v3685 = vpop.f32.mrb[0].mxu0
        %3686 = vmatprep.mubr.f32.mxu0 0.0
        %3687 = vmatmul.mubr.f32.gmra.mrb[0].mxu0 %v3500
        %v3688 = vpop.f32.mrb[0].mxu0
        %v3689 = vadd.f32 0.0, %v3688
        %v3690 = vpop.f32.mrb[0].mxu0
        %3691 = vmatprep.mubr.f32.mxu0 0.0
        %3692 = vmatmul.mubr.f32.gmra.mrb[0].mxu0 %v3503
        %v3693 = vpop.f32.mrb[0].mxu0
        %v3694 = vadd.f32 0.0, %v3693
        %v3695 = vpop.f32.mrb[0].mxu0
        %3696 = vmatprep.mubr.f32.mxu0 0.0
        %3697 = vmatmul.mubr.f32.gmra.mrb[0].mxu0 %v3506
        %v3698 = vpop.f32.mrb[0].mxu0
        %v3699 = vadd.f32 0.0, %v3698
        %v3700 = vpop.f32.mrb[0].mxu0
        %3701 = vmatprep.mubr.f32.mxu0 0.0
        %3702 = vmatmul.mubr.f32.gmra.mrb[0].mxu0 %v3509
        %v3703 = vpop.f32.mrb[0].mxu0
        %v3704 = vadd.f32 0.0, %v3703
        %v3705 = vpop.f32.mrb[0].mxu0
        %3706 = vmatprep.mubr.f32.mxu0 0.0
        %3707 = vmatmul.mubr.f32.gmra.mrb[0].mxu0 %v3512
        %v3708 = vpop.f32.mrb[0].mxu0
        %v3709 = vadd.f32 0.0, %v3708
        %v3710 = vpop.f32.mrb[0].mxu0
        %3711 = vmatprep.mubr.f32.mxu0 0.0
        %3712 = vmatmul.mubr.f32.gmra.mrb[0].mxu0 %v3515
        %v3713 = vpop.f32.mrb[0].mxu0
        %v3714 = vadd.f32 0.0, %v3713
        %v3715 = vpop.f32.mrb[0].mxu0
        %3716 = vmatprep.mubr.f32.mxu0 0.0
        %3717 = vmatmul.mubr.f32.gmra.mrb[0].mxu0 %v3518
        %v3718 = vpop.f32.mrb[0].mxu0
        %v3719 = vadd.f32 0.0, %v3718
        %v3720 = vpop.f32.mrb[0].mxu0
        %3721 = vmatprep.mubr.f32.mxu0 0.0
        %3722 = vmatmul.mubr.f32.gmra.mrb[0].mxu0 %v3521
        %v3723 = vpop.f32.mrb[0].mxu0
        %v3724 = vadd.f32 0.0, %v3723
        %v3725 = vpop.f32.mrb[0].mxu0
        %3726 = vmatprep.mubr.f32.mxu0 0.0
        %3727 = vmatmul.mubr.f32.gmra.mrb[0].mxu0 %v3524
        %v3728 = vpop.f32.mrb[0].mxu0
        %v3729 = vadd.f32 0.0, %v3728
        %v3730 = vpop.f32.mrb[0].mxu0
        %3731 = vmatprep.mubr.f32.mxu0 0.0
        %3732 = vmatmul.mubr.f32.gmra.mrb[0].mxu0 %v3527
        %v3733 = vpop.f32.mrb[0].mxu0
        %v3734 = vadd.f32 0.0, %v3733
        %v3735 = vpop.f32.mrb[0].mxu0
        %3736 = vmatprep.mubr.f32.mxu0 0.0
        %3737 = vmatmul.mubr.f32.gmra.mrb[0].mxu0 %v3530
        %v3738 = vpop.f32.mrb[0].mxu0
        %v3739 = vadd.f32 0.0, %v3738
        %v3740 = vpop.f32.mrb[0].mxu0
        %3741 = vmatprep.mubr.f32.mxu0 0.0
        %3742 = vmatmul.mubr.f32.gmra.mrb[0].mxu0 %v3533
        %v3743 = vpop.f32.mrb[0].mxu0
        %v3744 = vadd.f32 0.0, %v3743
        %v3745 = vpop.f32.mrb[0].mxu0
        %3746 = vmatprep.mubr.f32.mxu0 0.0
        %3747 = vmatmul.mubr.f32.gmra.mrb[0].mxu0 %v3536
        %v3748 = vpop.f32.mrb[0].mxu0
        %v3749 = vadd.f32 0.0, %v3748
        %v3750 = vpop.f32.mrb[0].mxu0
        %3751 = vmatprep.mubr.f32.mxu0 0.0
        %3752 = vmatmul.mubr.f32.gmra.mrb[0].mxu0 %v3539
        %v3753 = vpop.f32.mrb[0].mxu0
        %v3754 = vadd.f32 0.0, %v3753
        %v3755 = vpop.f32.mrb[0].mxu0
        %3756 = vmatprep.mubr.f32.mxu0 0.0
        %3757 = vmatmul.mubr.f32.gmra.mrb[0].mxu0 %v3542
        %v3758 = vpop.f32.mrb[0].mxu0
        %v3759 = vadd.f32 0.0, %v3758
        %v3760 = vpop.f32.mrb[0].mxu0
        %3761 = vmatprep.mubr.f32.mxu0 0.0
        %3762 = vmatmul.mubr.f32.gmra.mrb[0].mxu0 %v3545
        %v3763 = vpop.f32.mrb[0].mxu0
        %v3764 = vadd.f32 0.0, %v3763
        %v3765 = vpop.f32.mrb[0].mxu0
        %3766 = vmatprep.mubr.f32.mxu0 0.0
        %3767 = vmatmul.mubr.f32.gmra.mrb[0].mxu0 %v3548
        %v3768 = vpop.f32.mrb[0].mxu0
        %v3769 = vadd.f32 0.0, %v3768
        %v3770 = vpop.f32.mrb[0].mxu0
        %3771 = vmatprep.mubr.f32.mxu0 0.0
        %3772 = vmatmul.mubr.f32.gmra.mrb[0].mxu0 %v3551
        %v3773 = vpop.f32.mrb[0].mxu0
        %v3774 = vadd.f32 0.0, %v3773
        %v3775 = vpop.f32.mrb[0].mxu0
        %3776 = vmatprep.mubr.f32.mxu0 0.0
        %3777 = vmatmul.mubr.f32.gmra.mrb[0].mxu0 %v3554
        %v3778 = vpop.f32.mrb[0].mxu0
        %v3779 = vadd.f32 0.0, %v3778
        %v3780 = vpop.f32.mrb[0].mxu0
        %3781 = vmatprep.mubr.f32.mxu0 0.0
        %3782 = vmatmul.mubr.f32.gmra.mrb[0].mxu0 %v3557
        %v3783 = vpop.f32.mrb[0].mxu0
        %v3784 = vadd.f32 0.0, %v3783
        %v3785 = vpop.f32.mrb[0].mxu0
        %3786 = vdwg.mxu0
        %v3787 = vadd.f32 %v3399, %v3629
        %v3788 = vadd.f32 %v3400, %v3634
        %v3789 = vadd.f32 %v3401, %v3639
        %v3790 = vadd.f32 %v3402, %v3644
        %v3791 = vadd.f32 %v3403, %v3649
        %v3792 = vadd.f32 %v3404, %v3654
        %v3793 = vadd.f32 %v3405, %v3659
        %v3794 = vadd.f32 %v3406, %v3664
        %v3795 = vadd.f32 %v3407, %v3669
        %v3796 = vadd.f32 %v3408, %v3674
        %v3797 = vadd.f32 %v3409, %v3679
        %v3798 = vadd.f32 %v3410, %v3684
        %v3799 = vadd.f32 %v3411, %v3689
        %v3800 = vadd.f32 %v3412, %v3694
        %v3801 = vadd.f32 %v3413, %v3699
        %v3802 = vadd.f32 %v3414, %v3704
        %v3803 = vadd.f32 %v3415, %v3709
        %v3804 = vadd.f32 %v3416, %v3714
        %v3805 = vadd.f32 %v3417, %v3719
        %v3806 = vadd.f32 %v3418, %v3724
        %v3807 = vadd.f32 %v3419, %v3729
        %v3808 = vadd.f32 %v3420, %v3734
        %v3809 = vadd.f32 %v3421, %v3739
        %v3810 = vadd.f32 %v3422, %v3744
        %v3811 = vadd.f32 %v3423, %v3749
        %v3812 = vadd.f32 %v3424, %v3754
        %v3813 = vadd.f32 %v3425, %v3759
        %v3814 = vadd.f32 %v3426, %v3764
        %v3815 = vadd.f32 %v3427, %v3769
        %v3816 = vadd.f32 %v3428, %v3774
        %v3817 = vadd.f32 %v3429, %v3779
        %v3818 = vadd.f32 %v3430, %v3784
        %v3819 = vld [vmem:[%s4] sm:$0x1]
        %v3821 = vlaneseq
        %v3822 = vshrl.u32 %v3821, 7
        %v3823 = vsub.s32 0, %v3822
        %v3824 = vrot.slane %v3819, %v3823
        %v3826 = vadd.f32 %v3787, %v3824
        %v3827 = vadd.f32 %v3788, %v3824
        %v3828 = vadd.f32 %v3789, %v3824
        %v3829 = vadd.f32 %v3790, %v3824
        %v3830 = vadd.f32 %v3791, %v3824
        %v3831 = vadd.f32 %v3792, %v3824
        %v3832 = vadd.f32 %v3793, %v3824
        %v3833 = vadd.f32 %v3794, %v3824
        %v3834 = vadd.f32 %v3795, %v3824
        %v3835 = vadd.f32 %v3796, %v3824
        %v3836 = vadd.f32 %v3797, %v3824
        %v3837 = vadd.f32 %v3798, %v3824
        %v3838 = vadd.f32 %v3799, %v3824
        %v3839 = vadd.f32 %v3800, %v3824
        %v3840 = vadd.f32 %v3801, %v3824
        %v3841 = vadd.f32 %v3802, %v3824
        %v3842 = vadd.f32 %v3803, %v3824
        %v3843 = vadd.f32 %v3804, %v3824
        %v3844 = vadd.f32 %v3805, %v3824
        %v3845 = vadd.f32 %v3806, %v3824
        %v3846 = vadd.f32 %v3807, %v3824
        %v3847 = vadd.f32 %v3808, %v3824
        %v3848 = vadd.f32 %v3809, %v3824
        %v3849 = vadd.f32 %v3810, %v3824
        %v3850 = vadd.f32 %v3811, %v3824
        %v3851 = vadd.f32 %v3812, %v3824
        %v3852 = vadd.f32 %v3813, %v3824
        %v3853 = vadd.f32 %v3814, %v3824
        %v3854 = vadd.f32 %v3815, %v3824
        %v3855 = vadd.f32 %v3816, %v3824
        %v3856 = vadd.f32 %v3817, %v3824
        %v3857 = vadd.f32 %v3818, %v3824
        %vm3858 = vcmask 64512
        %3859 = vst.msk [vmem:[%s262] sm:$0xff] %vm3858, %v3826
        %3860 = vst.msk [vmem:[%s262 + $0x8] sm:$0xff] %vm3858, %v3827
        %3861 = vst.msk [vmem:[%s262 + $0x10] sm:$0xff] %vm3858, %v3828
        %3862 = vst.msk [vmem:[%s262 + $0x18] sm:$0xff] %vm3858, %v3829
        %3863 = vst.msk [vmem:[%s262 + $0x20] sm:$0xff] %vm3858, %v3830
        %3864 = vst.msk [vmem:[%s262 + $0x28] sm:$0xff] %vm3858, %v3831
        %3865 = vst.msk [vmem:[%s262 + $0x30] sm:$0xff] %vm3858, %v3832
        %3866 = vst.msk [vmem:[%s262 + $0x38] sm:$0xff] %vm3858, %v3833
        %3867 = vst.msk [vmem:[%s262 + $0x40] sm:$0xff] %vm3858, %v3834
        %3868 = vst.msk [vmem:[%s262 + $0x48] sm:$0xff] %vm3858, %v3835
        %3869 = vst.msk [vmem:[%s262 + $0x50] sm:$0xff] %vm3858, %v3836
        %3870 = vst.msk [vmem:[%s262 + $0x58] sm:$0xff] %vm3858, %v3837
        %3871 = vst.msk [vmem:[%s262 + $0x60] sm:$0xff] %vm3858, %v3838
        %3872 = vst.msk [vmem:[%s262 + $0x68] sm:$0xff] %vm3858, %v3839
        %3873 = vst.msk [vmem:[%s262 + $0x70] sm:$0xff] %vm3858, %v3840
        %3874 = vst.msk [vmem:[%s262 + $0x78] sm:$0xff] %vm3858, %v3841
        %3875 = vst.msk [vmem:[%s262 + $0x80] sm:$0xff] %vm3858, %v3842
        %3876 = vst.msk [vmem:[%s262 + $0x88] sm:$0xff] %vm3858, %v3843
        %3877 = vst.msk [vmem:[%s262 + $0x90] sm:$0xff] %vm3858, %v3844
        %3878 = vst.msk [vmem:[%s262 + $0x98] sm:$0xff] %vm3858, %v3845
        %3879 = vst.msk [vmem:[%s262 + $0xa0] sm:$0xff] %vm3858, %v3846
        %3880 = vst.msk [vmem:[%s262 + $0xa8] sm:$0xff] %vm3858, %v3847
        %3881 = vst.msk [vmem:[%s262 + $0xb0] sm:$0xff] %vm3858, %v3848
        %3882 = vst.msk [vmem:[%s262 + $0xb8] sm:$0xff] %vm3858, %v3849
        %3883 = vst.msk [vmem:[%s262 + $0xc0] sm:$0xff] %vm3858, %v3850
        %3884 = vst.msk [vmem:[%s262 + $0xc8] sm:$0xff] %vm3858, %v3851
        %3885 = vst.msk [vmem:[%s262 + $0xd0] sm:$0xff] %vm3858, %v3852
        %3886 = vst.msk [vmem:[%s262 + $0xd8] sm:$0xff] %vm3858, %v3853
        %3887 = vst.msk [vmem:[%s262 + $0xe0] sm:$0xff] %vm3858, %v3854
        %3888 = vst.msk [vmem:[%s262 + $0xe8] sm:$0xff] %vm3858, %v3855
        %3889 = vst.msk [vmem:[%s262 + $0xf0] sm:$0xff] %vm3858, %v3856
        %3890 = vst.msk [vmem:[%s262 + $0xf8] sm:$0xff] %vm3858, %v3857
        %v3891 = vsel %vm3858, %v3826, 0.0
        %v3892 = vsel %vm3858, %v3827, 0.0
        %v3893 = vadd.f32 %v3891, %v3892
        %v3894 = vsel %vm3858, %v3828, 0.0
        %v3895 = vadd.f32 %v3893, %v3894
        %v3896 = vsel %vm3858, %v3829, 0.0
        %v3897 = vadd.f32 %v3895, %v3896
        %v3898 = vsel %vm3858, %v3830, 0.0
        %v3899 = vadd.f32 %v3897, %v3898
        %v3900 = vsel %vm3858, %v3831, 0.0
        %v3901 = vadd.f32 %v3899, %v3900
        %v3902 = vsel %vm3858, %v3832, 0.0
        %v3903 = vadd.f32 %v3901, %v3902
        %v3904 = vsel %vm3858, %v3833, 0.0
        %v3905 = vadd.f32 %v3903, %v3904
        %v3906 = vsel %vm3858, %v3834, 0.0
        %v3907 = vadd.f32 %v3905, %v3906
        %v3908 = vsel %vm3858, %v3835, 0.0
        %v3909 = vadd.f32 %v3907, %v3908
        %v3910 = vsel %vm3858, %v3836, 0.0
        %v3911 = vadd.f32 %v3909, %v3910
        %v3912 = vsel %vm3858, %v3837, 0.0
        %v3913 = vadd.f32 %v3911, %v3912
        %v3914 = vsel %vm3858, %v3838, 0.0
        %v3915 = vadd.f32 %v3913, %v3914
        %v3916 = vsel %vm3858, %v3839, 0.0
        %v3917 = vadd.f32 %v3915, %v3916
        %v3918 = vsel %vm3858, %v3840, 0.0
        %v3919 = vadd.f32 %v3917, %v3918
        %v3920 = vsel %vm3858, %v3841, 0.0
        %v3921 = vadd.f32 %v3919, %v3920
        %v3922 = vsel %vm3858, %v3842, 0.0
        %v3923 = vadd.f32 %v3921, %v3922
        %v3924 = vsel %vm3858, %v3843, 0.0
        %v3925 = vadd.f32 %v3923, %v3924
        %v3926 = vsel %vm3858, %v3844, 0.0
        %v3927 = vadd.f32 %v3925, %v3926
        %v3928 = vsel %vm3858, %v3845, 0.0
        %v3929 = vadd.f32 %v3927, %v3928
        %v3930 = vsel %vm3858, %v3846, 0.0
        %v3931 = vadd.f32 %v3929, %v3930
        %v3932 = vsel %vm3858, %v3847, 0.0
        %v3933 = vadd.f32 %v3931, %v3932
        %v3934 = vsel %vm3858, %v3848, 0.0
        %v3935 = vadd.f32 %v3933, %v3934
        %v3936 = vsel %vm3858, %v3849, 0.0
        %v3937 = vadd.f32 %v3935, %v3936
        %v3938 = vsel %vm3858, %v3850, 0.0
        %v3939 = vadd.f32 %v3937, %v3938
        %v3940 = vsel %vm3858, %v3851, 0.0
        %v3941 = vadd.f32 %v3939, %v3940
        %v3942 = vsel %vm3858, %v3852, 0.0
        %v3943 = vadd.f32 %v3941, %v3942
        %v3944 = vsel %vm3858, %v3853, 0.0
        %v3945 = vadd.f32 %v3943, %v3944
        %v3946 = vsel %vm3858, %v3854, 0.0
        %v3947 = vadd.f32 %v3945, %v3946
        %v3948 = vsel %vm3858, %v3855, 0.0
        %v3949 = vadd.f32 %v3947, %v3948
        %v3950 = vsel %vm3858, %v3856, 0.0
        %v3951 = vadd.f32 %v3949, %v3950
        %v3952 = vsel %vm3858, %v3857, 0.0
        %v3953 = vadd.f32 %v3951, %v3952
        %v3954 = vrot.slane %v3953, 4
        %v3955 = vadd.f32 %v3953, %v3954
        %v3956 = vrot.slane %v3955, 2
        %v3957 = vadd.f32 %v3955, %v3956
        %v3958 = vrot.slane %v3957, 1
        %v3959 = vadd.f32 %v3957, %v3958
        %v3960 = vmul.f32 %v3826, %v3826
        %v3961 = vmul.f32 %v3827, %v3827
        %v3962 = vmul.f32 %v3828, %v3828
        %v3963 = vmul.f32 %v3829, %v3829
        %v3964 = vmul.f32 %v3830, %v3830
        %v3965 = vmul.f32 %v3831, %v3831
        %v3966 = vmul.f32 %v3832, %v3832
        %v3967 = vmul.f32 %v3833, %v3833
        %v3968 = vmul.f32 %v3834, %v3834
        %v3969 = vmul.f32 %v3835, %v3835
        %v3970 = vmul.f32 %v3836, %v3836
        %v3971 = vmul.f32 %v3837, %v3837
        %v3972 = vmul.f32 %v3838, %v3838
        %v3973 = vmul.f32 %v3839, %v3839
        %v3974 = vmul.f32 %v3840, %v3840
        %v3975 = vmul.f32 %v3841, %v3841
        %v3976 = vmul.f32 %v3842, %v3842
        %v3977 = vmul.f32 %v3843, %v3843
        %v3978 = vmul.f32 %v3844, %v3844
        %v3979 = vmul.f32 %v3845, %v3845
        %v3980 = vmul.f32 %v3846, %v3846
        %v3981 = vmul.f32 %v3847, %v3847
        %v3982 = vmul.f32 %v3848, %v3848
        %v3983 = vmul.f32 %v3849, %v3849
        %v3984 = vmul.f32 %v3850, %v3850
        %v3985 = vmul.f32 %v3851, %v3851
        %v3986 = vmul.f32 %v3852, %v3852
        %v3987 = vmul.f32 %v3853, %v3853
        %v3988 = vmul.f32 %v3854, %v3854
        %v3989 = vmul.f32 %v3855, %v3855
        %v3990 = vmul.f32 %v3856, %v3856
        %v3991 = vmul.f32 %v3857, %v3857
        %v3992 = vsel %vm3858, %v3960, 0.0
        %v3993 = vsel %vm3858, %v3961, 0.0
        %v3994 = vadd.f32 %v3992, %v3993
        %v3995 = vsel %vm3858, %v3962, 0.0
        %v3996 = vadd.f32 %v3994, %v3995
        %v3997 = vsel %vm3858, %v3963, 0.0
        %v3998 = vadd.f32 %v3996, %v3997
        %v3999 = vsel %vm3858, %v3964, 0.0
        %v4000 = vadd.f32 %v3998, %v3999
        %v4001 = vsel %vm3858, %v3965, 0.0
        %v4002 = vadd.f32 %v4000, %v4001
        %v4003 = vsel %vm3858, %v3966, 0.0
        %v4004 = vadd.f32 %v4002, %v4003
        %v4005 = vsel %vm3858, %v3967, 0.0
        %v4006 = vadd.f32 %v4004, %v4005
        %v4007 = vsel %vm3858, %v3968, 0.0
        %v4008 = vadd.f32 %v4006, %v4007
        %v4009 = vsel %vm3858, %v3969, 0.0
        %v4010 = vadd.f32 %v4008, %v4009
        %v4011 = vsel %vm3858, %v3970, 0.0
        %v4012 = vadd.f32 %v4010, %v4011
        %v4013 = vsel %vm3858, %v3971, 0.0
        %v4014 = vadd.f32 %v4012, %v4013
        %v4015 = vsel %vm3858, %v3972, 0.0
        %v4016 = vadd.f32 %v4014, %v4015
        %v4017 = vsel %vm3858, %v3973, 0.0
        %v4018 = vadd.f32 %v4016, %v4017
        %v4019 = vsel %vm3858, %v3974, 0.0
        %v4020 = vadd.f32 %v4018, %v4019
        %v4021 = vsel %vm3858, %v3975, 0.0
        %v4022 = vadd.f32 %v4020, %v4021
        %v4023 = vsel %vm3858, %v3976, 0.0
        %v4024 = vadd.f32 %v4022, %v4023
        %v4025 = vsel %vm3858, %v3977, 0.0
        %v4026 = vadd.f32 %v4024, %v4025
        %v4027 = vsel %vm3858, %v3978, 0.0
        %v4028 = vadd.f32 %v4026, %v4027
        %v4029 = vsel %vm3858, %v3979, 0.0
        %v4030 = vadd.f32 %v4028, %v4029
        %v4031 = vsel %vm3858, %v3980, 0.0
        %v4032 = vadd.f32 %v4030, %v4031
        %v4033 = vsel %vm3858, %v3981, 0.0
        %v4034 = vadd.f32 %v4032, %v4033
        %v4035 = vsel %vm3858, %v3982, 0.0
        %v4036 = vadd.f32 %v4034, %v4035
        %v4037 = vsel %vm3858, %v3983, 0.0
        %v4038 = vadd.f32 %v4036, %v4037
        %v4039 = vsel %vm3858, %v3984, 0.0
        %v4040 = vadd.f32 %v4038, %v4039
        %v4041 = vsel %vm3858, %v3985, 0.0
        %v4042 = vadd.f32 %v4040, %v4041
        %v4043 = vsel %vm3858, %v3986, 0.0
        %v4044 = vadd.f32 %v4042, %v4043
        %v4045 = vsel %vm3858, %v3987, 0.0
        %v4046 = vadd.f32 %v4044, %v4045
        %v4047 = vsel %vm3858, %v3988, 0.0
        %v4048 = vadd.f32 %v4046, %v4047
        %v4049 = vsel %vm3858, %v3989, 0.0
        %v4050 = vadd.f32 %v4048, %v4049
        %v4051 = vsel %vm3858, %v3990, 0.0
        %v4052 = vadd.f32 %v4050, %v4051
        %v4053 = vsel %vm3858, %v3991, 0.0
        %v4054 = vadd.f32 %v4052, %v4053
        %v4055 = vrot.slane %v4054, 4
        %v4056 = vadd.f32 %v4054, %v4055
        %v4057 = vrot.slane %v4056, 2
        %v4058 = vadd.f32 %v4056, %v4057
        %v4059 = vrot.slane %v4058, 1
        %v4060 = vadd.f32 %v4058, %v4059
        %vm4061 = vcmask 1040384
        %v4062 = vsel %vm4061, %v3959, %v4060
        %vm4063 = vcmask 58368
        %4064 = vst.msk [vmem:[%s252] sm:$0x3] %vm4063, %v4062
        %p4065 = scmp.lt.s32.totalorder %s21, 1
        %s4066 = scalar_select %p4065, %s21, 1
        %s4067 = smul.addr %s4066, 32
        %s4068 = smul.addr %s4067, 8
        %s4069 = scalar_lea.vmem %s5, %s4068
        %s4070 = sand.u32 %s165, 1
        %s4071 = scalar_lea.sflag [#allocation4], %s4070
        %s4072 = sand.u32 %s165, 1
        %s4073 = smul.addr %s4072, 2
        %s4074 = scalar_lea.vmem [#allocation3], %s4073
        // Predicated region
        $region41: #{tpu_custom_call.1} parent=39 // pred_check
          %p4075 = pneg %p149
        $region42: #{tpu_custom_call.1} parent=39 // pred_check_branch
          %4077 = sbr.rel (%p4075) target = $region44
        $region43: #{tpu_custom_call.1} parent=39 // pred_region
          _
        $region44: #{tpu_custom_call.1} parent=39 // pred_fallthru
          _
        // Predicated region
        $region45: #{tpu_custom_call.1} parent=39 // pred_check
          %p4078 = pneg %p175
        $region46: #{tpu_custom_call.1} parent=39 // pred_check_branch
          %4080 = sbr.rel (%p4078) target = $region48
        $region47: #{tpu_custom_call.1} parent=39 // pred_region
          %s4082 = ssub.s32 32, 32
          %4083 = vsyncadd %s4071, %s4082
          %s4084 = smul.addr %s21, 32
          %s4085 = scalar_lea.hbm %s6, %s4084
          %s4087 = sshll.u32 %s4074, 4
          %s4088 = int_to_ptr.vmem [resolvable:$true] %s4087
          %4090 = dma.vmem_to_hbm [thread:$0]  %s4088, 32, %s4085, %s4071
        $region48: #{tpu_custom_call.1} parent=39 // pred_fallthru
          _
      $region40: #{tpu_custom_call.1} parent=5 // pred_fallthru
        _
      %p4091 = scmp.le.s32.totalorder 2, %s16
      // Predicated region
      $region49: #{tpu_custom_call.1} parent=5 // pred_check
        %p4092 = pneg %p4091
      $region50: #{tpu_custom_call.1} parent=5 // pred_check_branch
        %4094 = sbr.rel (%p4092) target = $region52
      $region51: #{tpu_custom_call.1} parent=5 // pred_region
        %s4095 = ssub.s32 %s16, 2
        // Predicated region
        $region53: #{tpu_custom_call.1} parent=51 // pred_check
          %p4096 = pneg %p155
        $region54: #{tpu_custom_call.1} parent=51 // pred_check_branch
          %4098 = sbr.rel (%p4096) target = $region56
        $region55: #{tpu_custom_call.1} parent=51 // pred_region
          %p4099 = scmp.lt.s32.totalorder %s22, 1
          %s4100 = scalar_select %p4099, %s22, 1
          %s4101 = smul.addr %s4100, 32
          %s4102 = smul.addr %s4101, 8
          %s4103 = scalar_lea.vmem %s5, %s4102
        $region56: #{tpu_custom_call.1} parent=51 // pred_fallthru
          _
        // Predicated region
        $region57: #{tpu_custom_call.1} parent=51 // pred_check
          %p4104 = pneg %p181
        $region58: #{tpu_custom_call.1} parent=51 // pred_check_branch
          %4106 = sbr.rel (%p4104) target = $region60
        $region59: #{tpu_custom_call.1} parent=51 // pred_region
          %s4107 = sand.u32 %s166, 1
          %s4108 = scalar_lea.sflag [#allocation4], %s4107
          %s4109 = sand.u32 %s166, 1
          %s4110 = smul.addr %s4109, 2
          %s4111 = scalar_lea.vmem [#allocation3], %s4110
          %4112 = dma.done %s4108, 32
        $region60: #{tpu_custom_call.1} parent=51 // pred_fallthru
          _
      $region52: #{tpu_custom_call.1} parent=5 // pred_fallthru
        _
    $region6: #{tpu_custom_call.1} parent=1 // loop_footer
      %s20 = sadd.s32 1, %s16
    $region7: #{tpu_custom_call.1} parent=1 // loop_footer_branch
      %15 = sbr.rel target = $region3
    $region8: #{tpu_custom_call.1} parent=1 // loop_exit
      _
    %4113 = vsyncpa [#allocation4], 1
    %s4114 = scalar_lea.sflag [#allocation4], 1
    %4115 = vsyncpa %s4114, 1

</llo_original>
